<compile_context>
chip_gen: v5e
topology: v5e:2x2
jax: 0.10.0
libtpu: 0.0.40
codegen_flags: <defaults>
</compile_context>

<pallas_src>
import functools
import math

import jax
import jax.numpy as jnp
from jax.experimental import pallas as pl
from jax.experimental.pallas import tpu as pltpu


# ==========================================================================
# Fused k x k "halo" convolution:
#   im2col slab built in a VMEM scratch (zero halo, no XLA pad) -> ONE MXU matmul
#   with K = k*k*sum(Cin) -> bias / LeakyReLU / residual fused in the epilogue.
# ==========================================================================

def _conv_kernel(*refs, k, H, W, pad, cins, act, has_res):
    n_in = len(cins)
    x_refs = refs[:n_in]
    w_ref, b_ref = refs[n_in], refs[n_in + 1]
    pos = n_in + 2
    res_ref = refs[pos] if has_res else None
    pos += int(has_res)
    o_ref = refs[pos]
    col_ref = refs[pos + 1]                       # (H, W, k*k*sum(Cin)) bf16 scratch

    HW = H * W
    kk = k * k
    cin_tot = sum(cins)

    # Zero-fill so out-of-range (halo) taps contribute 0 -- replaces the XLA jnp.pad
    # HBM round-trip.  Re-zeroed every grid step so it is independent of iteration
    # order / megacore partitioning.
    col_ref[...] = jnp.zeros_like(col_ref)

    xs_vals = [r[0] for r in x_refs]              # (H, W, Cin_i) bf16
    for t in range(kk):                           # static unroll: build im2col slab
        ki, kj = t // k, t % k
        dyy, dxx = ki - pad, kj - pad
        h0, h1 = max(0, -dyy), min(H, H - dyy)
        w0, w1 = max(0, -dxx), min(W, W - dxx)
        off = t * cin_tot
        for xv, cin in zip(xs_vals, cins):
            col_ref[h0:h1, w0:w1, off:off + cin] = (
                xv[h0 + dyy:h1 + dyy, w0 + dxx:w1 + dxx, :])
            off += cin

    xs = col_ref[...].reshape(HW, kk * cin_tot)   # (HW, K), K = 288 / 576
    acc = jnp.dot(xs, w_ref[...], preferred_element_type=jnp.float32) + b_ref[...]
    if act == "leaky":                            # nn.LeakyReLU(0.1)
        acc = jnp.where(acc >= 0.0, acc, 0.1 * acc)
    if has_res:
        acc = acc + res_ref[0]                    # residual fused in the epilogue
    # TODO(synk): emit a lane-dense (HW*Cout//128, 128) output slab once the
    # (HW, Cout<128) -> packed-lane in-kernel relayout is validated on Mosaic.
    o_ref[0] = acc.astype(o_ref.dtype)


def pallas_conv(xs, w, b, k, act="none", res=None, out_dtype=jnp.bfloat16):
    """k x k same-padded conv over the channel-concat of xs (list of (B,H,W,Cin_i)).
    w: (k*k, sum Cin, Cout), b: (Cout,), res: optional (B,H*W,Cout) f32 residual.
    Returns (B, H*W, Cout) in out_dtype."""
    B, H, W, _ = xs[0].shape
    HW = H * W
    kk, cin_tot, cout = w.shape
    cins = tuple(int(a.shape[-1]) for a in xs)
    assert sum(cins) == cin_tot and kk == k * k
    pad = (k - 1) // 2

    args = [a.astype(jnp.bfloat16) for a in xs]
    in_specs = [pl.BlockSpec((1, H, W, c), lambda bb: (bb, 0, 0, 0)) for c in cins]
    args += [w.reshape(kk * cin_tot, cout).astype(jnp.bfloat16),
             b.astype(jnp.float32).reshape(1, cout)]
    in_specs += [pl.BlockSpec((kk * cin_tot, cout), lambda bb: (0, 0)),
                 pl.BlockSpec((1, cout), lambda bb: (0, 0))]
    if res is not None:
        args.append(res.astype(jnp.float32))
        in_specs.append(pl.BlockSpec((1, HW, cout), lambda bb: (bb, 0, 0)))

    # TODO(synk): at production H*W, tile rows (with k-1 halo rows) instead of one
    # full image per grid step.
    return pl.pallas_call(
        functools.partial(_conv_kernel, k=k, H=H, W=W, pad=pad, cins=cins,
                          act=act, has_res=res is not None),
        out_shape=jax.ShapeDtypeStruct((B, HW, cout), out_dtype),
        grid=(B,),
        in_specs=in_specs,
        out_specs=pl.BlockSpec((1, HW, cout), lambda bb: (bb, 0, 0)),
        scratch_shapes=[pltpu.VMEM((H, W, kk * cin_tot), jnp.bfloat16)],
        compiler_params=pltpu.CompilerParams(dimension_semantics=("parallel",)),
    )(*args)


# ==========================================================================
# Fused DGM kernel (one grid step per batch element):
#   deform conv : dcn = cols (HW, k*k*C) @ Wdcn (k*k*C, C)      -- single K=288 dot
#   SFT         : [g|bt] = leaky(inter @ [g1|bt1]) @ blockdiag(g2, bt2)
#   text proj   : tp = relu(text @ W1 + b1) @ W2 + b2
#   attention   : single-query MHA (scale folded into Wq, bf16 head selectors,
#                 context = attn^T @ V on the MXU)
#   combine     : leaky(x + dcn + x*(g + att) + (bt + att))     -- DGB LeakyReLU fused
# ==========================================================================

def _dgm_kernel(x_ref, inter_ref, cols_ref, text_ref,
                wdcn_ref, wg1_ref, wg2_ref,
                tpw1_ref, tpb1_ref, tpw2_ref, tpb2_ref,
                wq_ref, bq_ref, wkv_ref, bkv_ref, wo_ref, bo_ref,
                hs_ref, hst_ref, o_ref):
    HW, C = x_ref.shape[1], x_ref.shape[2]
    x_bf = x_ref[0]                                   # (HW, C) bf16
    inter = inter_ref[0]                              # (HW, C) bf16

    # ---- modulated deformable conv (DCN_layer, bias=False): single big-K dot ----
    dcn = jnp.dot(cols_ref[0], wdcn_ref[...],
                  preferred_element_type=jnp.float32)            # (HW, C) f32

    # ---- SFT image gamma / beta (two 1x1-conv stacks, lane-concat / block-diag) ----
    gb = jnp.dot(inter, wg1_ref[...], preferred_element_type=jnp.float32)   # (HW, 2C)
    gb = jnp.where(gb >= 0.0, gb, 0.1 * gb).astype(jnp.bfloat16)
    gb = jnp.dot(gb, wg2_ref[...], preferred_element_type=jnp.float32)      # (HW, 2C)
    g, bt = gb[:, :C], gb[:, C:]

    # ---- TextProjectionHead ----
    tp = jnp.dot(text_ref[0], tpw1_ref[...],
                 preferred_element_type=jnp.float32) + tpb1_ref[...]        # (1, C)
    tp = jnp.maximum(tp, 0.0).astype(jnp.bfloat16)
    tp = jnp.dot(tp, tpw2_ref[...],
                 preferred_element_type=jnp.float32) + tpb2_ref[...]        # (1, C)

    # ---- single-query MHA (query = text proj, key/value = inter) ----
    # scale 1/sqrt(dh) is pre-folded into wq / bq on the wrapper side.
    q = jnp.dot(tp.astype(jnp.bfloat16), wq_ref[...],
                preferred_element_type=jnp.float32) + bq_ref[...]           # (1, C)
    kv = jnp.dot(inter, wkv_ref[...],
                 preferred_element_type=jnp.float32) + bkv_ref[...]         # (HW, 2C)
    kp, vp = kv[:, :C], kv[:, C:]
    scores = jnp.dot((kp * q).astype(jnp.bfloat16), hs_ref[...],
                     preferred_element_type=jnp.float32)                    # (HW, nh)
    m = jnp.max(scores, axis=0, keepdims=True)
    e = jnp.exp(scores - m)
    attn = e * pl.reciprocal(jnp.sum(e, axis=0, keepdims=True), approx=True)
    # context over HW on the MXU: (nh, HW) @ (HW, C) via dim-0 contraction
    ctx_h = jax.lax.dot_general(attn.astype(jnp.bfloat16), vp.astype(jnp.bfloat16),
                                (((0,), (0,)), ((), ())),
                                preferred_element_type=jnp.float32)         # (nh, C)
    ctx = jnp.sum(ctx_h * hst_ref[...], axis=0, keepdims=True)              # (1, C)
    att = jnp.dot(ctx.astype(jnp.bfloat16), wo_ref[...],
                  preferred_element_type=jnp.float32) + bo_ref[...]         # (1, C)

    # ---- DGM combine + DGB's LeakyReLU(0.1), fused ----
    # PyTorch SFT: x*(img_gamma + attended) + (img_beta + attended) (text_gamma==text_beta)
    x = x_bf.astype(jnp.float32)
    out = x + dcn + x * (g + att) + (bt + att)
    o_ref[0] = jnp.where(out >= 0.0, out, 0.1 * out).astype(o_ref.dtype)


def pallas_dgm(x_rows, inter_rows, cols, text_b, p, k, num_heads=8):
    """x_rows/inter_rows: (B,HW,C) bf16, cols: (B,HW,k*k*C) bf16, text_b: (B,1,Td)."""
    B, HW, C = x_rows.shape
    kk = k * k
    Td = text_b.shape[-1]
    dh = C // num_heads
    scale = 1.0 / math.sqrt(dh)
    sft, at = p["sft"], p["sft"]["attn"]
    bf = lambda a: a.astype(jnp.bfloat16)
    f32 = lambda a: a.astype(jnp.float32)

    zc = jnp.zeros((C, C), jnp.float32)
    wg1 = bf(jnp.concatenate([sft["g1"], sft["bt1"]], axis=1))               # (C, 2C)
    wg2 = bf(jnp.block([[sft["g2"], zc], [zc, sft["bt2"]]]))                 # (2C, 2C)
    wkv = bf(jnp.concatenate([at["wk"], at["wv"]], axis=1))                  # (C, 2C)
    bkv = f32(jnp.concatenate([at["bk"], at["bv"]]).reshape(1, 2 * C))
    wdcn = bf(p["dcn"]["w_dcn"].reshape(kk * C, C))                          # (kk*C, C)
    hsel = (jnp.arange(C)[:, None] // dh == jnp.arange(num_heads)[None, :])
    hs_bf = hsel.astype(jnp.bfloat16)                                        # (C, nh)
    hst_f = hsel.T.astype(jnp.float32)                                       # (nh, C)

    def const(shape):
        return pl.BlockSpec(shape, lambda b: (0,) * len(shape))

    def batched(shape):
        return pl.BlockSpec(shape, lambda b: (b,) + (0,) * (len(shape) - 1))

    return pl.pallas_call(
        _dgm_kernel,
        out_shape=jax.ShapeDtypeStruct((B, HW, C), jnp.bfloat16),
        grid=(B,),
        in_specs=[
            batched((1, HW, C)),                 # x (bf16)
            batched((1, HW, C)),                 # inter (bf16)
            batched((1, HW, kk * C)),            # pre-gathered deform-conv columns
            batched((1, 1, Td)),                 # text embedding
            const((kk * C, C)),                  # stacked deform-conv weight
            const((C, 2 * C)), const((2 * C, 2 * C)),
            const((Td, C)), const((1, C)), const((C, C)), const((1, C)),
            const((C, C)), const((1, C)), const((C, 2 * C)), const((1, 2 * C)),
            const((C, C)), const((1, C)),
            const((C, num_heads)), const((num_heads, C)),
        ],
        out_specs=batched((1, HW, C)),
        compiler_params=pltpu.CompilerParams(dimension_semantics=("parallel",)),
    )(bf(x_rows), bf(inter_rows), cols, bf(text_b),
      wdcn, wg1, wg2,
      bf(sft["tp_w1"]), f32(sft["tp_b1"]).reshape(1, C),
      bf(sft["tp_w2"]), f32(sft["tp_b2"]).reshape(1, C),
      bf(at["wq"] * scale), f32(at["bq"] * scale).reshape(1, C), wkv, bkv,
      bf(at["wo"]), f32(at["bo"]).reshape(1, C),
      hs_bf, hst_f)


# ==========================================================================
# Offset decode + bilinear row-gather (XLA side, O(k*k*HW*C) -- replaces the old
# dense O(HW^2) sampling matrix entirely).
# ==========================================================================

def deform_gather(off_out, feat_rows, k, pad, H, W):
    """off_out: (B, HW, 3*k*k) f32 conv_offset_mask output; feat_rows: (B, HW, C).
    Returns (B, HW, k*k*C) bf16 mask-modulated bilinearly-sampled deform-conv columns."""
    B, HW, _ = off_out.shape
    kk = k * k
    C = feat_rows.shape[-1]
    off = off_out.reshape(B, H, W, 3 * kk)
    o1, o2, mraw = off[..., :kk], off[..., kk:2 * kk], off[..., 2 * kk:]
    mask = jax.nn.sigmoid(mraw)                                     # modulation mask
    # TODO(synk): DCN_layer source is not in the spec -- offset channel ordering
    # (cat(o1,o2) read as (dy,dx) pairs per tap) kept from the reference implementation.
    pairs = jnp.concatenate([o1, o2], axis=-1).reshape(B, H, W, kk, 2)
    dy, dx = pairs[..., 0], pairs[..., 1]
    hh = jnp.arange(H, dtype=jnp.float32).reshape(1, H, 1, 1)
    ww = jnp.arange(W, dtype=jnp.float32).reshape(1, 1, W, 1)
    tki = (jnp.arange(kk) // k).astype(jnp.float32).reshape(1, 1, 1, kk)
    tkj = (jnp.arange(kk) % k).astype(jnp.float32).reshape(1, 1, 1, kk)
    py = hh - pad + tki + dy
    px = ww - pad + tkj + dx
    y0, x0 = jnp.floor(py), jnp.floor(px)
    wy1, wx1 = py - y0, px - x0
    wy0, wx0 = 1.0 - wy1, 1.0 - wx1
    y0i, x0i = y0.astype(jnp.int32), x0.astype(jnp.int32)

    xf = feat_rows.astype(jnp.float32)                              # (B, HW, C)
    acc = jnp.zeros((B, H, W, kk, C), jnp.float32)
    for yi, xi, wy, wx in ((y0i, x0i, wy0, wx0), (y0i, x0i + 1, wy0, wx1),
                           (y0i + 1, x0i, wy1, wx0), (y0i + 1, x0i + 1, wy1, wx1)):
        valid = ((yi >= 0) & (yi < H) & (xi >= 0) & (xi < W)).astype(jnp.float32)
        idx = (jnp.clip(yi, 0, H - 1) * W + jnp.clip(xi, 0, W - 1)).reshape(B, HW * kk)
        rows = jax.vmap(lambda xb, ib: xb[ib])(xf, idx)             # (B, HW*kk, C)
        wgt = (wy * wx * valid).reshape(B, H, W, kk, 1)
        acc = acc + wgt * rows.reshape(B, H, W, kk, C)
    cols = acc * mask[..., None]
    return cols.reshape(B, HW, kk * C).astype(jnp.bfloat16)


# ==========================================================================
# Module forward: DGB = leaky(dgm1) -> leaky(conv1) -> leaky(dgm2) -> conv2 + x
# ==========================================================================

def dgb_forward(params, x_nchw, inter_nchw, text_embed, k):
    x = jnp.transpose(x_nchw, (0, 2, 3, 1)).astype(jnp.float32)        # NHWC
    inter = jnp.transpose(inter_nchw, (0, 2, 3, 1)).astype(jnp.float32)
    B, H, W, C = x.shape
    HW = H * W
    pad = (k - 1) // 2

    x_bf = x.astype(jnp.bfloat16)
    inter_bf = inter.astype(jnp.bfloat16)
    inter_rows = inter_bf.reshape(B, HW, C)
    text_b = text_embed.astype(jnp.bfloat16).reshape(B, 1, -1)

    def dgm(p, feat_bf):                                               # feat: (B,H,W,C) bf16
        # conv_offset_mask over cat(feat, inter) -> decode+gather -> fused DGM kernel
        off = pallas_conv([feat_bf, inter_bf], p["dcn"]["w_off"], p["dcn"]["b_off"],
                          k, act="none", out_dtype=jnp.float32)        # (B, HW, 3*k*k)
        feat_rows = feat_bf.reshape(B, HW, C)
        cols = deform_gather(off, feat_rows, k, pad, H, W)             # (B, HW, k*k*C) bf16
        return pallas_dgm(feat_rows, inter_rows, cols, text_b, p, k)   # (B, HW, C) bf16

    out = dgm(params["dgm1"], x_bf)                                    # leaky(dgm1(.)) fused
    out = pallas_conv([out.reshape(B, H, W, C)], params["conv1_w"], params["conv1_b"],
                      k, act="leaky", out_dtype=jnp.bfloat16)          # leaky(conv1(.))
    out = dgm(params["dgm2"], out.reshape(B, H, W, C))                 # leaky(dgm2(.)) fused
    out = pallas_conv([out.reshape(B, H, W, C)], params["conv2_w"], params["conv2_b"],
                      k, act="none", res=x.reshape(B, HW, C),
                      out_dtype=jnp.float32)                           # conv2(.) + x fused
    return jnp.transpose(out.reshape(B, H, W, C), (0, 3, 1, 2))        # back to NCHW


def _init_dgm_params(key, C, k, text_dim):
    kk = k * k
    ks = jax.random.split(key, 19)

    def w(kx, shape, scale=0.05):
        return (scale * jax.random.normal(kx, shape)).astype(jnp.float32)

    return {
        "dcn": {
            "w_off": w(ks[0], (kk, 2 * C, 3 * kk), 0.02),   # conv_offset_mask (per-tap)
            "b_off": w(ks[1], (3 * kk,), 0.02),
            "w_dcn": w(ks[2], (kk, C, C)),                  # deformable conv (bias=False)
        },
        "sft": {
            "g1": w(ks[3], (C, C)), "g2": w(ks[4], (C, C)),     # conv_gamma (1x1, no bias)
            "bt1": w(ks[5], (C, C)), "bt2": w(ks[6], (C, C)),   # conv_beta  (1x1, no bias)
            "tp_w1": w(ks[7], (text_dim, C)), "tp_b1": w(ks[8], (C,)),   # TextProjectionHead
            "tp_w2": w(ks[9], (C, C)), "tp_b2": w(ks[10], (C,)),
            "attn": {
                "wq": w(ks[11], (C, C)), "bq": w(ks[12], (C,)),
                "wk": w(ks[13], (C, C)), "bk": w(ks[14], (C,)),
                "wv": w(ks[15], (C, C)), "bv": w(ks[16], (C,)),
                "wo": w(ks[17], (C, C)), "bo": w(ks[18], (C,)),
            },
            # NOTE: SFT_layer.text_gamma / text_beta sequentials are defined but unused
            # in the PyTorch forward, so no parameters are created for them.
        },
    }


if __name__ == "__main__":
    key = jax.random.PRNGKey(0)
    B, C, H, W = 2, 32, 8, 8          # n_feat=32 (divisible by num_heads=8), kernel_size=3
    k = 3
    TEXT_EMBED_DIM = 512              # clip_model.text_projection.shape[1]

    k_x, k_i, k_t, k_p1, k_p2, k_c = jax.random.split(key, 6)
    x = jax.random.normal(k_x, (B, C, H, W), jnp.float32)
    inter = jax.random.normal(k_i, (B, C, H, W), jnp.float32)
    # TODO(synk): clip.tokenize / clip_model.encode_text are frozen external models
    # (torch.no_grad) -- substitute a deterministic synthetic (B, text_embed_dim) embedding.
    text_embed = jax.random.normal(k_t, (B, TEXT_EMBED_DIM), jnp.float32)

    params = {
        "dgm1": _init_dgm_params(k_p1, C, k, TEXT_EMBED_DIM),
        "dgm2": _init_dgm_params(k_p2, C, k, TEXT_EMBED_DIM),
    }
    kc1, kc2, kb1, kb2 = jax.random.split(k_c, 4)
    # conv1 / conv2: default_conv(n_feat, n_feat, k) == Conv2d(k, padding=k//2, bias=True)
    params["conv1_w"] = (0.05 * jax.random.normal(kc1, (k * k, C, C))).astype(jnp.float32)
    params["conv1_b"] = (0.05 * jax.random.normal(kb1, (C,))).astype(jnp.float32)
    params["conv2_w"] = (0.05 * jax.random.normal(kc2, (k * k, C, C))).astype(jnp.float32)
    params["conv2_b"] = (0.05 * jax.random.normal(kb2, (C,))).astype(jnp.float32)

    fwd = jax.jit(dgb_forward, static_argnums=(4,))
    out = fwd(params, x, inter, text_embed, k)
    out = jax.block_until_ready(out)
    assert out.shape == (B, C, H, W)
    assert bool(jnp.all(jnp.isfinite(out)))
    print("KERNEL_OK")
</pallas_src>

<mosaic_0001>
module attributes {stable_mosaic.version = 11 : i64} {
  func.func @_conv_kernel(%arg0: i32, %arg1: memref<1x8x8x32xbf16, #tpu.memory_space<vmem>>, %arg2: memref<1x8x8x32xbf16, #tpu.memory_space<vmem>>, %arg3: memref<576x27xbf16, #tpu.memory_space<vmem>>, %arg4: memref<1x27xf32, #tpu.memory_space<vmem>>, %arg5: memref<1x64x27xf32, #tpu.memory_space<vmem>>, %arg6: memref<8x8x576xbf16, #tpu.memory_space<vmem>>) attributes {dimension_semantics = [#tpu.dimension_semantics<parallel>], iteration_bounds = array<i64: 2>, scalar_prefetch = 0 : i64, scratch_operands = 1 : i64, tpu.core_type = #tpu.core_type<tc>, window_params = [{transform_indices = @transform_0, window_bounds = array<i64: 1, 8, 8, 32>}, {transform_indices = @transform_1, window_bounds = array<i64: 1, 8, 8, 32>}, {pipeline_mode = #tpu.pipeline_mode<synchronous>, transform_indices = @transform_2, window_bounds = array<i64: 576, 27>}, {pipeline_mode = #tpu.pipeline_mode<synchronous>, transform_indices = @transform_3, window_bounds = array<i64: 1, 27>}, {transform_indices = @transform_4, window_bounds = array<i64: 1, 64, 27>}]} {
    %cst = arith.constant 0.000000e+00 : bf16
    %0 = vector.broadcast %cst : bf16 to vector<8x8x576xbf16>
    %c0 = arith.constant 0 : index
    %c0_0 = arith.constant 0 : index
    %c0_1 = arith.constant 0 : index
    %1 = vector.load %arg6[%c0, %c0_0, %c0_1] : memref<8x8x576xbf16, #tpu.memory_space<vmem>>, vector<8x8x576xbf16>
    tpu.vector_store %arg6[%c0, %c0_0, %c0_1], %0 {strides = array<i32>} : memref<8x8x576xbf16, #tpu.memory_space<vmem>>, vector<8x8x576xbf16>,
    %c0_2 = arith.constant 0 : index
    %c0_3 = arith.constant 0 : index
    %c0_4 = arith.constant 0 : index
    %c0_5 = arith.constant 0 : index
    %2 = vector.load %arg1[%c0_2, %c0_3, %c0_4, %c0_5] : memref<1x8x8x32xbf16, #tpu.memory_space<vmem>>, vector<1x8x8x32xbf16>
    %3 = vector.shape_cast %2 : vector<1x8x8x32xbf16> to vector<8x8x32xbf16>
    %c0_6 = arith.constant 0 : index
    %c0_7 = arith.constant 0 : index
    %c0_8 = arith.constant 0 : index
    %c0_9 = arith.constant 0 : index
    %4 = vector.load %arg2[%c0_6, %c0_7, %c0_8, %c0_9] : memref<1x8x8x32xbf16, #tpu.memory_space<vmem>>, vector<1x8x8x32xbf16>
    %5 = vector.shape_cast %4 : vector<1x8x8x32xbf16> to vector<8x8x32xbf16>
    %6 = vector.extract_strided_slice %3 {offsets = [0, 0, 0], sizes = [7, 7, 32], strides = [1, 1, 1]} : vector<8x8x32xbf16> to vector<7x7x32xbf16>
    %c1 = arith.constant 1 : index
    %c1_10 = arith.constant 1 : index
    %c0_11 = arith.constant 0 : index
    %7 = vector.load %arg6[%c1, %c1_10, %c0_11] : memref<8x8x576xbf16, #tpu.memory_space<vmem>>, vector<7x7x32xbf16>
    tpu.vector_store %arg6[%c1, %c1_10, %c0_11], %6 {strides = array<i32>} : memref<8x8x576xbf16, #tpu.memory_space<vmem>>, vector<7x7x32xbf16>,
    %8 = vector.extract_strided_slice %5 {offsets = [0, 0, 0], sizes = [7, 7, 32], strides = [1, 1, 1]} : vector<8x8x32xbf16> to vector<7x7x32xbf16>
    %c1_12 = arith.constant 1 : index
    %c1_13 = arith.constant 1 : index
    %c32 = arith.constant 32 : index
    %9 = vector.load %arg6[%c1_12, %c1_13, %c32] : memref<8x8x576xbf16, #tpu.memory_space<vmem>>, vector<7x7x32xbf16>
    tpu.vector_store %arg6[%c1_12, %c1_13, %c32], %8 {strides = array<i32>} : memref<8x8x576xbf16, #tpu.memory_space<vmem>>, vector<7x7x32xbf16>,
    %10 = vector.extract_strided_slice %3 {offsets = [0, 0, 0], sizes = [7, 8, 32], strides = [1, 1, 1]} : vector<8x8x32xbf16> to vector<7x8x32xbf16>
    %c1_14 = arith.constant 1 : index
    %c0_15 = arith.constant 0 : index
    %c64 = arith.constant 64 : index
    %11 = vector.load %arg6[%c1_14, %c0_15, %c64] : memref<8x8x576xbf16, #tpu.memory_space<vmem>>, vector<7x8x32xbf16>
    tpu.vector_store %arg6[%c1_14, %c0_15, %c64], %10 {strides = array<i32>} : memref<8x8x576xbf16, #tpu.memory_space<vmem>>, vector<7x8x32xbf16>,
    %12 = vector.extract_strided_slice %5 {offsets = [0, 0, 0], sizes = [7, 8, 32], strides = [1, 1, 1]} : vector<8x8x32xbf16> to vector<7x8x32xbf16>
    %c1_16 = arith.constant 1 : index
    %c0_17 = arith.constant 0 : index
    %c96 = arith.constant 96 : index
    %13 = vector.load %arg6[%c1_16, %c0_17, %c96] : memref<8x8x576xbf16, #tpu.memory_space<vmem>>, vector<7x8x32xbf16>
    tpu.vector_store %arg6[%c1_16, %c0_17, %c96], %12 {strides = array<i32>} : memref<8x8x576xbf16, #tpu.memory_space<vmem>>, vector<7x8x32xbf16>,
    %14 = vector.extract_strided_slice %3 {offsets = [0, 1, 0], sizes = [7, 7, 32], strides = [1, 1, 1]} : vector<8x8x32xbf16> to vector<7x7x32xbf16>
    %c1_18 = arith.constant 1 : index
    %c0_19 = arith.constant 0 : index
    %c128 = arith.constant 128 : index
    %15 = vector.load %arg6[%c1_18, %c0_19, %c128] : memref<8x8x576xbf16, #tpu.memory_space<vmem>>, vector<7x7x32xbf16>
    tpu.vector_store %arg6[%c1_18, %c0_19, %c128], %14 {strides = array<i32>} : memref<8x8x576xbf16, #tpu.memory_space<vmem>>, vector<7x7x32xbf16>,
    %16 = vector.extract_strided_slice %5 {offsets = [0, 1, 0], sizes = [7, 7, 32], strides = [1, 1, 1]} : vector<8x8x32xbf16> to vector<7x7x32xbf16>
    %c1_20 = arith.constant 1 : index
    %c0_21 = arith.constant 0 : index
    %c160 = arith.constant 160 : index
    %17 = vector.load %arg6[%c1_20, %c0_21, %c160] : memref<8x8x576xbf16, #tpu.memory_space<vmem>>, vector<7x7x32xbf16>
    tpu.vector_store %arg6[%c1_20, %c0_21, %c160], %16 {strides = array<i32>} : memref<8x8x576xbf16, #tpu.memory_space<vmem>>, vector<7x7x32xbf16>,
    %18 = vector.extract_strided_slice %3 {offsets = [0, 0, 0], sizes = [8, 7, 32], strides = [1, 1, 1]} : vector<8x8x32xbf16> to vector<8x7x32xbf16>
    %c0_22 = arith.constant 0 : index
    %c1_23 = arith.constant 1 : index
    %c192 = arith.constant 192 : index
    %19 = vector.load %arg6[%c0_22, %c1_23, %c192] : memref<8x8x576xbf16, #tpu.memory_space<vmem>>, vector<8x7x32xbf16>
    tpu.vector_store %arg6[%c0_22, %c1_23, %c192], %18 {strides = array<i32>} : memref<8x8x576xbf16, #tpu.memory_space<vmem>>, vector<8x7x32xbf16>,
    %20 = vector.extract_strided_slice %5 {offsets = [0, 0, 0], sizes = [8, 7, 32], strides = [1, 1, 1]} : vector<8x8x32xbf16> to vector<8x7x32xbf16>
    %c0_24 = arith.constant 0 : index
    %c1_25 = arith.constant 1 : index
    %c224 = arith.constant 224 : index
    %21 = vector.load %arg6[%c0_24, %c1_25, %c224] : memref<8x8x576xbf16, #tpu.memory_space<vmem>>, vector<8x7x32xbf16>
    tpu.vector_store %arg6[%c0_24, %c1_25, %c224], %20 {strides = array<i32>} : memref<8x8x576xbf16, #tpu.memory_space<vmem>>, vector<8x7x32xbf16>,
    %c0_26 = arith.constant 0 : index
    %c0_27 = arith.constant 0 : index
    %c256 = arith.constant 256 : index
    %22 = vector.load %arg6[%c0_26, %c0_27, %c256] : memref<8x8x576xbf16, #tpu.memory_space<vmem>>, vector<8x8x32xbf16>
    tpu.vector_store %arg6[%c0_26, %c0_27, %c256], %3 {strides = array<i32>} : memref<8x8x576xbf16, #tpu.memory_space<vmem>>, vector<8x8x32xbf16>,
    %c0_28 = arith.constant 0 : index
    %c0_29 = arith.constant 0 : index
    %c288 = arith.constant 288 : index
    %23 = vector.load %arg6[%c0_28, %c0_29, %c288] : memref<8x8x576xbf16, #tpu.memory_space<vmem>>, vector<8x8x32xbf16>
    tpu.vector_store %arg6[%c0_28, %c0_29, %c288], %5 {strides = array<i32>} : memref<8x8x576xbf16, #tpu.memory_space<vmem>>, vector<8x8x32xbf16>,
    %24 = vector.extract_strided_slice %3 {offsets = [0, 1, 0], sizes = [8, 7, 32], strides = [1, 1, 1]} : vector<8x8x32xbf16> to vector<8x7x32xbf16>
    %c0_30 = arith.constant 0 : index
    %c0_31 = arith.constant 0 : index
    %c320 = arith.constant 320 : index
    %25 = vector.load %arg6[%c0_30, %c0_31, %c320] : memref<8x8x576xbf16, #tpu.memory_space<vmem>>, vector<8x7x32xbf16>
    tpu.vector_store %arg6[%c0_30, %c0_31, %c320], %24 {strides = array<i32>} : memref<8x8x576xbf16, #tpu.memory_space<vmem>>, vector<8x7x32xbf16>,
    %26 = vector.extract_strided_slice %5 {offsets = [0, 1, 0], sizes = [8, 7, 32], strides = [1, 1, 1]} : vector<8x8x32xbf16> to vector<8x7x32xbf16>
    %c0_32 = arith.constant 0 : index
    %c0_33 = arith.constant 0 : index
    %c352 = arith.constant 352 : index
    %27 = vector.load %arg6[%c0_32, %c0_33, %c352] : memref<8x8x576xbf16, #tpu.memory_space<vmem>>, vector<8x7x32xbf16>
    tpu.vector_store %arg6[%c0_32, %c0_33, %c352], %26 {strides = array<i32>} : memref<8x8x576xbf16, #tpu.memory_space<vmem>>, vector<8x7x32xbf16>,
    %28 = vector.extract_strided_slice %3 {offsets = [1, 0, 0], sizes = [7, 7, 32], strides = [1, 1, 1]} : vector<8x8x32xbf16> to vector<7x7x32xbf16>
    %c0_34 = arith.constant 0 : index
    %c1_35 = arith.constant 1 : index
    %c384 = arith.constant 384 : index
    %29 = vector.load %arg6[%c0_34, %c1_35, %c384] : memref<8x8x576xbf16, #tpu.memory_space<vmem>>, vector<7x7x32xbf16>
    tpu.vector_store %arg6[%c0_34, %c1_35, %c384], %28 {strides = array<i32>} : memref<8x8x576xbf16, #tpu.memory_space<vmem>>, vector<7x7x32xbf16>,
    %30 = vector.extract_strided_slice %5 {offsets = [1, 0, 0], sizes = [7, 7, 32], strides = [1, 1, 1]} : vector<8x8x32xbf16> to vector<7x7x32xbf16>
    %c0_36 = arith.constant 0 : index
    %c1_37 = arith.constant 1 : index
    %c416 = arith.constant 416 : index
    %31 = vector.load %arg6[%c0_36, %c1_37, %c416] : memref<8x8x576xbf16, #tpu.memory_space<vmem>>, vector<7x7x32xbf16>
    tpu.vector_store %arg6[%c0_36, %c1_37, %c416], %30 {strides = array<i32>} : memref<8x8x576xbf16, #tpu.memory_space<vmem>>, vector<7x7x32xbf16>,
    %32 = vector.extract_strided_slice %3 {offsets = [1, 0, 0], sizes = [7, 8, 32], strides = [1, 1, 1]} : vector<8x8x32xbf16> to vector<7x8x32xbf16>
    %c0_38 = arith.constant 0 : index
    %c0_39 = arith.constant 0 : index
    %c448 = arith.constant 448 : index
    %33 = vector.load %arg6[%c0_38, %c0_39, %c448] : memref<8x8x576xbf16, #tpu.memory_space<vmem>>, vector<7x8x32xbf16>
    tpu.vector_store %arg6[%c0_38, %c0_39, %c448], %32 {strides = array<i32>} : memref<8x8x576xbf16, #tpu.memory_space<vmem>>, vector<7x8x32xbf16>,
    %34 = vector.extract_strided_slice %5 {offsets = [1, 0, 0], sizes = [7, 8, 32], strides = [1, 1, 1]} : vector<8x8x32xbf16> to vector<7x8x32xbf16>
    %c0_40 = arith.constant 0 : index
    %c0_41 = arith.constant 0 : index
    %c480 = arith.constant 480 : index
    %35 = vector.load %arg6[%c0_40, %c0_41, %c480] : memref<8x8x576xbf16, #tpu.memory_space<vmem>>, vector<7x8x32xbf16>
    tpu.vector_store %arg6[%c0_40, %c0_41, %c480], %34 {strides = array<i32>} : memref<8x8x576xbf16, #tpu.memory_space<vmem>>, vector<7x8x32xbf16>,
    %36 = vector.extract_strided_slice %3 {offsets = [1, 1, 0], sizes = [7, 7, 32], strides = [1, 1, 1]} : vector<8x8x32xbf16> to vector<7x7x32xbf16>
    %c0_42 = arith.constant 0 : index
    %c0_43 = arith.constant 0 : index
    %c512 = arith.constant 512 : index
    %37 = vector.load %arg6[%c0_42, %c0_43, %c512] : memref<8x8x576xbf16, #tpu.memory_space<vmem>>, vector<7x7x32xbf16>
    tpu.vector_store %arg6[%c0_42, %c0_43, %c512], %36 {strides = array<i32>} : memref<8x8x576xbf16, #tpu.memory_space<vmem>>, vector<7x7x32xbf16>,
    %38 = vector.extract_strided_slice %5 {offsets = [1, 1, 0], sizes = [7, 7, 32], strides = [1, 1, 1]} : vector<8x8x32xbf16> to vector<7x7x32xbf16>
    %c0_44 = arith.constant 0 : index
    %c0_45 = arith.constant 0 : index
    %c544 = arith.constant 544 : index
    %39 = vector.load %arg6[%c0_44, %c0_45, %c544] : memref<8x8x576xbf16, #tpu.memory_space<vmem>>, vector<7x7x32xbf16>
    tpu.vector_store %arg6[%c0_44, %c0_45, %c544], %38 {strides = array<i32>} : memref<8x8x576xbf16, #tpu.memory_space<vmem>>, vector<7x7x32xbf16>,
    %c0_46 = arith.constant 0 : index
    %c0_47 = arith.constant 0 : index
    %c0_48 = arith.constant 0 : index
    %40 = vector.load %arg6[%c0_46, %c0_47, %c0_48] : memref<8x8x576xbf16, #tpu.memory_space<vmem>>, vector<8x8x576xbf16>
    %41 = vector.shape_cast %40 : vector<8x8x576xbf16> to vector<64x576xbf16>
    %c0_49 = arith.constant 0 : index
    %c0_50 = arith.constant 0 : index
    %42 = vector.load %arg3[%c0_49, %c0_50] : memref<576x27xbf16, #tpu.memory_space<vmem>>, vector<576x27xbf16>
    %cst_51 = arith.constant dense<0.000000e+00> : vector<64x27xf32>
    %43 = tpu.matmul %41, %42, %cst_51 {dimension_numbers = #tpu.dot_dimension_numbers<[1], [0], [0], [1], [0, 0, 1, 1], [], []>} : vector<64x576xbf16>, vector<576x27xbf16>, vector<64x27xf32> -> vector<64x27xf32>
    %c0_52 = arith.constant 0 : index
    %c0_53 = arith.constant 0 : index
    %44 = vector.load %arg4[%c0_52, %c0_53] : memref<1x27xf32, #tpu.memory_space<vmem>>, vector<1x27xf32>
    %45 = vector.broadcast %44 : vector<1x27xf32> to vector<64x27xf32>
    %46 = arith.addf %43, %45 : vector<64x27xf32>
    %c0_54 = arith.constant 0 : index
    %c0_55 = arith.constant 0 : index
    %c0_56 = arith.constant 0 : index
    %47 = vector.load %arg5[%c0_54, %c0_55, %c0_56] : memref<1x64x27xf32, #tpu.memory_space<vmem>>, vector<1x64x27xf32>
    %48 = vector.shape_cast %47 : vector<1x64x27xf32> to vector<64x27xf32>
    %49 = vector.shape_cast %46 : vector<64x27xf32> to vector<1x64x27xf32>
    tpu.vector_store %arg5[%c0_54, %c0_55, %c0_56], %49 {strides = array<i32>} : memref<1x64x27xf32, #tpu.memory_space<vmem>>, vector<1x64x27xf32>,
    return
  }
  func.func @transform_0(%arg0: i32) -> (i32, i32, i32, i32) {
    %c0_i32 = arith.constant 0 : i32
    %c0_i32_0 = arith.constant 0 : i32
    %c0_i32_1 = arith.constant 0 : i32
    %c0_i32_2 = arith.constant 0 : i32
    return %arg0, %c0_i32, %c0_i32_0, %c0_i32_1 : i32, i32, i32, i32
  }
  func.func @transform_1(%arg0: i32) -> (i32, i32, i32, i32) {
    %c0_i32 = arith.constant 0 : i32
    %c0_i32_0 = arith.constant 0 : i32
    %c0_i32_1 = arith.constant 0 : i32
    %c0_i32_2 = arith.constant 0 : i32
    return %arg0, %c0_i32, %c0_i32_0, %c0_i32_1 : i32, i32, i32, i32
  }
  func.func @transform_2(%arg0: i32) -> (i32, i32) {
    %c0_i32 = arith.constant 0 : i32
    %c0_i32_0 = arith.constant 0 : i32
    %c0_i32_1 = arith.constant 0 : i32
    return %c0_i32, %c0_i32_0 : i32, i32
  }
  func.func @transform_3(%arg0: i32) -> (i32, i32) {
    %c0_i32 = arith.constant 0 : i32
    %c0_i32_0 = arith.constant 0 : i32
    %c0_i32_1 = arith.constant 0 : i32
    return %c0_i32, %c0_i32_0 : i32, i32
  }
  func.func @transform_4(%arg0: i32) -> (i32, i32, i32) {
    %c0_i32 = arith.constant 0 : i32
    %c0_i32_0 = arith.constant 0 : i32
    %c0_i32_1 = arith.constant 0 : i32
    return %arg0, %c0_i32, %c0_i32_0 : i32, i32, i32
  }
}

module attributes {stable_mosaic.version = 11 : i64} {
  func.func @_conv_kernel(%arg0: i32, %arg1: memref<1x8x8x32xbf16, #tpu.memory_space<vmem>>, %arg2: memref<288x32xbf16, #tpu.memory_space<vmem>>, %arg3: memref<1x32xf32, #tpu.memory_space<vmem>>, %arg4: memref<1x64x32xbf16, #tpu.memory_space<vmem>>, %arg5: memref<8x8x288xbf16, #tpu.memory_space<vmem>>) attributes {dimension_semantics = [#tpu.dimension_semantics<parallel>], iteration_bounds = array<i64: 2>, scalar_prefetch = 0 : i64, scratch_operands = 1 : i64, tpu.core_type = #tpu.core_type<tc>, window_params = [{transform_indices = @transform_0, window_bounds = array<i64: 1, 8, 8, 32>}, {pipeline_mode = #tpu.pipeline_mode<synchronous>, transform_indices = @transform_1, window_bounds = array<i64: 288, 32>}, {pipeline_mode = #tpu.pipeline_mode<synchronous>, transform_indices = @transform_2, window_bounds = array<i64: 1, 32>}, {transform_indices = @transform_3, window_bounds = array<i64: 1, 64, 32>}]} {
    %cst = arith.constant 0.000000e+00 : bf16
    %0 = vector.broadcast %cst : bf16 to vector<8x8x288xbf16>
    %c0 = arith.constant 0 : index
    %c0_0 = arith.constant 0 : index
    %c0_1 = arith.constant 0 : index
    %1 = vector.load %arg5[%c0, %c0_0, %c0_1] : memref<8x8x288xbf16, #tpu.memory_space<vmem>>, vector<8x8x288xbf16>
    tpu.vector_store %arg5[%c0, %c0_0, %c0_1], %0 {strides = array<i32>} : memref<8x8x288xbf16, #tpu.memory_space<vmem>>, vector<8x8x288xbf16>,
    %c0_2 = arith.constant 0 : index
    %c0_3 = arith.constant 0 : index
    %c0_4 = arith.constant 0 : index
    %c0_5 = arith.constant 0 : index
    %2 = vector.load %arg1[%c0_2, %c0_3, %c0_4, %c0_5] : memref<1x8x8x32xbf16, #tpu.memory_space<vmem>>, vector<1x8x8x32xbf16>
    %3 = vector.shape_cast %2 : vector<1x8x8x32xbf16> to vector<8x8x32xbf16>
    %4 = vector.extract_strided_slice %3 {offsets = [0, 0, 0], sizes = [7, 7, 32], strides = [1, 1, 1]} : vector<8x8x32xbf16> to vector<7x7x32xbf16>
    %c1 = arith.constant 1 : index
    %c1_6 = arith.constant 1 : index
    %c0_7 = arith.constant 0 : index
    %5 = vector.load %arg5[%c1, %c1_6, %c0_7] : memref<8x8x288xbf16, #tpu.memory_space<vmem>>, vector<7x7x32xbf16>
    tpu.vector_store %arg5[%c1, %c1_6, %c0_7], %4 {strides = array<i32>} : memref<8x8x288xbf16, #tpu.memory_space<vmem>>, vector<7x7x32xbf16>,
    %6 = vector.extract_strided_slice %3 {offsets = [0, 0, 0], sizes = [7, 8, 32], strides = [1, 1, 1]} : vector<8x8x32xbf16> to vector<7x8x32xbf16>
    %c1_8 = arith.constant 1 : index
    %c0_9 = arith.constant 0 : index
    %c32 = arith.constant 32 : index
    %7 = vector.load %arg5[%c1_8, %c0_9, %c32] : memref<8x8x288xbf16, #tpu.memory_space<vmem>>, vector<7x8x32xbf16>
    tpu.vector_store %arg5[%c1_8, %c0_9, %c32], %6 {strides = array<i32>} : memref<8x8x288xbf16, #tpu.memory_space<vmem>>, vector<7x8x32xbf16>,
    %8 = vector.extract_strided_slice %3 {offsets = [0, 1, 0], sizes = [7, 7, 32], strides = [1, 1, 1]} : vector<8x8x32xbf16> to vector<7x7x32xbf16>
    %c1_10 = arith.constant 1 : index
    %c0_11 = arith.constant 0 : index
    %c64 = arith.constant 64 : index
    %9 = vector.load %arg5[%c1_10, %c0_11, %c64] : memref<8x8x288xbf16, #tpu.memory_space<vmem>>, vector<7x7x32xbf16>
    tpu.vector_store %arg5[%c1_10, %c0_11, %c64], %8 {strides = array<i32>} : memref<8x8x288xbf16, #tpu.memory_space<vmem>>, vector<7x7x32xbf16>,
    %10 = vector.extract_strided_slice %3 {offsets = [0, 0, 0], sizes = [8, 7, 32], strides = [1, 1, 1]} : vector<8x8x32xbf16> to vector<8x7x32xbf16>
    %c0_12 = arith.constant 0 : index
    %c1_13 = arith.constant 1 : index
    %c96 = arith.constant 96 : index
    %11 = vector.load %arg5[%c0_12, %c1_13, %c96] : memref<8x8x288xbf16, #tpu.memory_space<vmem>>, vector<8x7x32xbf16>
    tpu.vector_store %arg5[%c0_12, %c1_13, %c96], %10 {strides = array<i32>} : memref<8x8x288xbf16, #tpu.memory_space<vmem>>, vector<8x7x32xbf16>,
    %c0_14 = arith.constant 0 : index
    %c0_15 = arith.constant 0 : index
    %c128 = arith.constant 128 : index
    %12 = vector.load %arg5[%c0_14, %c0_15, %c128] : memref<8x8x288xbf16, #tpu.memory_space<vmem>>, vector<8x8x32xbf16>
    tpu.vector_store %arg5[%c0_14, %c0_15, %c128], %3 {strides = array<i32>} : memref<8x8x288xbf16, #tpu.memory_space<vmem>>, vector<8x8x32xbf16>,
    %13 = vector.extract_strided_slice %3 {offsets = [0, 1, 0], sizes = [8, 7, 32], strides = [1, 1, 1]} : vector<8x8x32xbf16> to vector<8x7x32xbf16>
    %c0_16 = arith.constant 0 : index
    %c0_17 = arith.constant 0 : index
    %c160 = arith.constant 160 : index
    %14 = vector.load %arg5[%c0_16, %c0_17, %c160] : memref<8x8x288xbf16, #tpu.memory_space<vmem>>, vector<8x7x32xbf16>
    tpu.vector_store %arg5[%c0_16, %c0_17, %c160], %13 {strides = array<i32>} : memref<8x8x288xbf16, #tpu.memory_space<vmem>>, vector<8x7x32xbf16>,
    %15 = vector.extract_strided_slice %3 {offsets = [1, 0, 0], sizes = [7, 7, 32], strides = [1, 1, 1]} : vector<8x8x32xbf16> to vector<7x7x32xbf16>
    %c0_18 = arith.constant 0 : index
    %c1_19 = arith.constant 1 : index
    %c192 = arith.constant 192 : index
    %16 = vector.load %arg5[%c0_18, %c1_19, %c192] : memref<8x8x288xbf16, #tpu.memory_space<vmem>>, vector<7x7x32xbf16>
    tpu.vector_store %arg5[%c0_18, %c1_19, %c192], %15 {strides = array<i32>} : memref<8x8x288xbf16, #tpu.memory_space<vmem>>, vector<7x7x32xbf16>,
    %17 = vector.extract_strided_slice %3 {offsets = [1, 0, 0], sizes = [7, 8, 32], strides = [1, 1, 1]} : vector<8x8x32xbf16> to vector<7x8x32xbf16>
    %c0_20 = arith.constant 0 : index
    %c0_21 = arith.constant 0 : index
    %c224 = arith.constant 224 : index
    %18 = vector.load %arg5[%c0_20, %c0_21, %c224] : memref<8x8x288xbf16, #tpu.memory_space<vmem>>, vector<7x8x32xbf16>
    tpu.vector_store %arg5[%c0_20, %c0_21, %c224], %17 {strides = array<i32>} : memref<8x8x288xbf16, #tpu.memory_space<vmem>>, vector<7x8x32xbf16>,
    %19 = vector.extract_strided_slice %3 {offsets = [1, 1, 0], sizes = [7, 7, 32], strides = [1, 1, 1]} : vector<8x8x32xbf16> to vector<7x7x32xbf16>
    %c0_22 = arith.constant 0 : index
    %c0_23 = arith.constant 0 : index
    %c256 = arith.constant 256 : index
    %20 = vector.load %arg5[%c0_22, %c0_23, %c256] : memref<8x8x288xbf16, #tpu.memory_space<vmem>>, vector<7x7x32xbf16>
    tpu.vector_store %arg5[%c0_22, %c0_23, %c256], %19 {strides = array<i32>} : memref<8x8x288xbf16, #tpu.memory_space<vmem>>, vector<7x7x32xbf16>,
    %c0_24 = arith.constant 0 : index
    %c0_25 = arith.constant 0 : index
    %c0_26 = arith.constant 0 : index
    %21 = vector.load %arg5[%c0_24, %c0_25, %c0_26] : memref<8x8x288xbf16, #tpu.memory_space<vmem>>, vector<8x8x288xbf16>
    %22 = vector.shape_cast %21 : vector<8x8x288xbf16> to vector<64x288xbf16>
    %c0_27 = arith.constant 0 : index
    %c0_28 = arith.constant 0 : index
    %23 = vector.load %arg2[%c0_27, %c0_28] : memref<288x32xbf16, #tpu.memory_space<vmem>>, vector<288x32xbf16>
    %cst_29 = arith.constant dense<0.000000e+00> : vector<64x32xf32>
    %24 = tpu.matmul %22, %23, %cst_29 {dimension_numbers = #tpu.dot_dimension_numbers<[1], [0], [0], [1], [0, 0, 1, 1], [], []>} : vector<64x288xbf16>, vector<288x32xbf16>, vector<64x32xf32> -> vector<64x32xf32>
    %c0_30 = arith.constant 0 : index
    %c0_31 = arith.constant 0 : index
    %25 = vector.load %arg3[%c0_30, %c0_31] : memref<1x32xf32, #tpu.memory_space<vmem>>, vector<1x32xf32>
    %26 = vector.broadcast %25 : vector<1x32xf32> to vector<64x32xf32>
    %27 = arith.addf %24, %26 : vector<64x32xf32>
    %cst_32 = arith.constant 0.000000e+00 : f32
    %28 = vector.broadcast %cst_32 : f32 to vector<64x32xf32>
    %29 = arith.cmpf oge, %27, %28 : vector<64x32xf32>
    %cst_33 = arith.constant 1.000000e-01 : f32
    %30 = vector.broadcast %cst_33 : f32 to vector<64x32xf32>
    %31 = arith.mulf %30, %27 : vector<64x32xf32>
    %32 = arith.select %29, %27, %31 : vector<64x32xi1>, vector<64x32xf32>
    %33 = arith.truncf %32 : vector<64x32xf32> to vector<64x32xbf16>
    %c0_34 = arith.constant 0 : index
    %c0_35 = arith.constant 0 : index
    %c0_36 = arith.constant 0 : index
    %34 = vector.load %arg4[%c0_34, %c0_35, %c0_36] : memref<1x64x32xbf16, #tpu.memory_space<vmem>>, vector<1x64x32xbf16>
    %35 = vector.shape_cast %34 : vector<1x64x32xbf16> to vector<64x32xbf16>
    %36 = vector.shape_cast %33 : vector<64x32xbf16> to vector<1x64x32xbf16>
    tpu.vector_store %arg4[%c0_34, %c0_35, %c0_36], %36 {strides = array<i32>} : memref<1x64x32xbf16, #tpu.memory_space<vmem>>, vector<1x64x32xbf16>,
    return
  }
  func.func @transform_0(%arg0: i32) -> (i32, i32, i32, i32) {
    %c0_i32 = arith.constant 0 : i32
    %c0_i32_0 = arith.constant 0 : i32
    %c0_i32_1 = arith.constant 0 : i32
    %c0_i32_2 = arith.constant 0 : i32
    return %arg0, %c0_i32, %c0_i32_0, %c0_i32_1 : i32, i32, i32, i32
  }
  func.func @transform_1(%arg0: i32) -> (i32, i32) {
    %c0_i32 = arith.constant 0 : i32
    %c0_i32_0 = arith.constant 0 : i32
    %c0_i32_1 = arith.constant 0 : i32
    return %c0_i32, %c0_i32_0 : i32, i32
  }
  func.func @transform_2(%arg0: i32) -> (i32, i32) {
    %c0_i32 = arith.constant 0 : i32
    %c0_i32_0 = arith.constant 0 : i32
    %c0_i32_1 = arith.constant 0 : i32
    return %c0_i32, %c0_i32_0 : i32, i32
  }
  func.func @transform_3(%arg0: i32) -> (i32, i32, i32) {
    %c0_i32 = arith.constant 0 : i32
    %c0_i32_0 = arith.constant 0 : i32
    %c0_i32_1 = arith.constant 0 : i32
    return %arg0, %c0_i32, %c0_i32_0 : i32, i32, i32
  }
}

module attributes {stable_mosaic.version = 11 : i64} {
  func.func @_dgm_kernel(%arg0: i32, %arg1: memref<1x64x32xbf16, #tpu.memory_space<vmem>>, %arg2: memref<1x64x32xbf16, #tpu.memory_space<vmem>>, %arg3: memref<1x64x288xbf16, #tpu.memory_space<vmem>>, %arg4: memref<1x1x512xbf16, #tpu.memory_space<vmem>>, %arg5: memref<288x32xbf16, #tpu.memory_space<vmem>>, %arg6: memref<32x64xbf16, #tpu.memory_space<vmem>>, %arg7: memref<64x64xbf16, #tpu.memory_space<vmem>>, %arg8: memref<512x32xbf16, #tpu.memory_space<vmem>>, %arg9: memref<1x32xf32, #tpu.memory_space<vmem>>, %arg10: memref<32x32xbf16, #tpu.memory_space<vmem>>, %arg11: memref<1x32xf32, #tpu.memory_space<vmem>>, %arg12: memref<32x32xbf16, #tpu.memory_space<vmem>>, %arg13: memref<1x32xf32, #tpu.memory_space<vmem>>, %arg14: memref<32x64xbf16, #tpu.memory_space<vmem>>, %arg15: memref<1x64xf32, #tpu.memory_space<vmem>>, %arg16: memref<32x32xbf16, #tpu.memory_space<vmem>>, %arg17: memref<1x32xf32, #tpu.memory_space<vmem>>, %arg18: memref<32x8xbf16, #tpu.memory_space<vmem>>, %arg19: memref<8x32xf32, #tpu.memory_space<vmem>>, %arg20: memref<1x64x32xbf16, #tpu.memory_space<vmem>>) attributes {dimension_semantics = [#tpu.dimension_semantics<parallel>], iteration_bounds = array<i64: 2>, scalar_prefetch = 0 : i64, scratch_operands = 0 : i64, tpu.core_type = #tpu.core_type<tc>, window_params = [{transform_indices = @transform_0, window_bounds = array<i64: 1, 64, 32>}, {transform_indices = @transform_1, window_bounds = array<i64: 1, 64, 32>}, {transform_indices = @transform_2, window_bounds = array<i64: 1, 64, 288>}, {transform_indices = @transform_3, window_bounds = array<i64: 1, 1, 512>}, {pipeline_mode = #tpu.pipeline_mode<synchronous>, transform_indices = @transform_4, window_bounds = array<i64: 288, 32>}, {pipeline_mode = #tpu.pipeline_mode<synchronous>, transform_indices = @transform_5, window_bounds = array<i64: 32, 64>}, {pipeline_mode = #tpu.pipeline_mode<synchronous>, transform_indices = @transform_6, window_bounds = array<i64: 64, 64>}, {pipeline_mode = #tpu.pipeline_mode<synchronous>, transform_indices = @transform_7, window_bounds = array<i64: 512, 32>}, {pipeline_mode = #tpu.pipeline_mode<synchronous>, transform_indices = @transform_8, window_bounds = array<i64: 1, 32>}, {pipeline_mode = #tpu.pipeline_mode<synchronous>, transform_indices = @transform_9, window_bounds = array<i64: 32, 32>}, {pipeline_mode = #tpu.pipeline_mode<synchronous>, transform_indices = @transform_10, window_bounds = array<i64: 1, 32>}, {pipeline_mode = #tpu.pipeline_mode<synchronous>, transform_indices = @transform_11, window_bounds = array<i64: 32, 32>}, {pipeline_mode = #tpu.pipeline_mode<synchronous>, transform_indices = @transform_12, window_bounds = array<i64: 1, 32>}, {pipeline_mode = #tpu.pipeline_mode<synchronous>, transform_indices = @transform_13, window_bounds = array<i64: 32, 64>}, {pipeline_mode = #tpu.pipeline_mode<synchronous>, transform_indices = @transform_14, window_bounds = array<i64: 1, 64>}, {pipeline_mode = #tpu.pipeline_mode<synchronous>, transform_indices = @transform_15, window_bounds = array<i64: 32, 32>}, {pipeline_mode = #tpu.pipeline_mode<synchronous>, transform_indices = @transform_16, window_bounds = array<i64: 1, 32>}, {pipeline_mode = #tpu.pipeline_mode<synchronous>, transform_indices = @transform_17, window_bounds = array<i64: 32, 8>}, {pipeline_mode = #tpu.pipeline_mode<synchronous>, transform_indices = @transform_18, window_bounds = array<i64: 8, 32>}, {transform_indices = @transform_19, window_bounds = array<i64: 1, 64, 32>}]} {
    %c0 = arith.constant 0 : index
    %c0_0 = arith.constant 0 : index
    %c0_1 = arith.constant 0 : index
    %0 = vector.load %arg1[%c0, %c0_0, %c0_1] : memref<1x64x32xbf16, #tpu.memory_space<vmem>>, vector<1x64x32xbf16>
    %1 = vector.shape_cast %0 : vector<1x64x32xbf16> to vector<64x32xbf16>
    %c0_2 = arith.constant 0 : index
    %c0_3 = arith.constant 0 : index
    %c0_4 = arith.constant 0 : index
    %2 = vector.load %arg2[%c0_2, %c0_3, %c0_4] : memref<1x64x32xbf16, #tpu.memory_space<vmem>>, vector<1x64x32xbf16>
    %3 = vector.shape_cast %2 : vector<1x64x32xbf16> to vector<64x32xbf16>
    %c0_5 = arith.constant 0 : index
    %c0_6 = arith.constant 0 : index
    %c0_7 = arith.constant 0 : index
    %4 = vector.load %arg3[%c0_5, %c0_6, %c0_7] : memref<1x64x288xbf16, #tpu.memory_space<vmem>>, vector<1x64x288xbf16>
    %5 = vector.shape_cast %4 : vector<1x64x288xbf16> to vector<64x288xbf16>
    %c0_8 = arith.constant 0 : index
    %c0_9 = arith.constant 0 : index
    %6 = vector.load %arg5[%c0_8, %c0_9] : memref<288x32xbf16, #tpu.memory_space<vmem>>, vector<288x32xbf16>
    %cst = arith.constant dense<0.000000e+00> : vector<64x32xf32>
    %7 = tpu.matmul %5, %6, %cst {dimension_numbers = #tpu.dot_dimension_numbers<[1], [0], [0], [1], [0, 0, 1, 1], [], []>} : vector<64x288xbf16>, vector<288x32xbf16>, vector<64x32xf32> -> vector<64x32xf32>
    %c0_10 = arith.constant 0 : index
    %c0_11 = arith.constant 0 : index
    %8 = vector.load %arg6[%c0_10, %c0_11] : memref<32x64xbf16, #tpu.memory_space<vmem>>, vector<32x64xbf16>
    %cst_12 = arith.constant dense<0.000000e+00> : vector<64x64xf32>
    %9 = tpu.matmul %3, %8, %cst_12 {dimension_numbers = #tpu.dot_dimension_numbers<[1], [0], [0], [1], [0, 0, 1, 1], [], []>} : vector<64x32xbf16>, vector<32x64xbf16>, vector<64x64xf32> -> vector<64x64xf32>
    %cst_13 = arith.constant 0.000000e+00 : f32
    %10 = vector.broadcast %cst_13 : f32 to vector<64x64xf32>
    %11 = arith.cmpf oge, %9, %10 : vector<64x64xf32>
    %cst_14 = arith.constant 1.000000e-01 : f32
    %12 = vector.broadcast %cst_14 : f32 to vector<64x64xf32>
    %13 = arith.mulf %12, %9 : vector<64x64xf32>
    %14 = arith.select %11, %9, %13 : vector<64x64xi1>, vector<64x64xf32>
    %15 = arith.truncf %14 : vector<64x64xf32> to vector<64x64xbf16>
    %c0_15 = arith.constant 0 : index
    %c0_16 = arith.constant 0 : index
    %16 = vector.load %arg7[%c0_15, %c0_16] : memref<64x64xbf16, #tpu.memory_space<vmem>>, vector<64x64xbf16>
    %cst_17 = arith.constant dense<0.000000e+00> : vector<64x64xf32>
    %17 = tpu.matmul %15, %16, %cst_17 {dimension_numbers = #tpu.dot_dimension_numbers<[1], [0], [0], [1], [0, 0, 1, 1], [], []>} : vector<64x64xbf16>, vector<64x64xbf16>, vector<64x64xf32> -> vector<64x64xf32>
    %18 = vector.extract_strided_slice %17 {offsets = [0, 0], sizes = [64, 32], strides = [1, 1]} : vector<64x64xf32> to vector<64x32xf32>
    %19 = vector.extract_strided_slice %17 {offsets = [0, 32], sizes = [64, 32], strides = [1, 1]} : vector<64x64xf32> to vector<64x32xf32>
    %c0_18 = arith.constant 0 : index
    %c0_19 = arith.constant 0 : index
    %c0_20 = arith.constant 0 : index
    %20 = vector.load %arg4[%c0_18, %c0_19, %c0_20] : memref<1x1x512xbf16, #tpu.memory_space<vmem>>, vector<1x1x512xbf16>
    %21 = vector.shape_cast %20 : vector<1x1x512xbf16> to vector<1x512xbf16>
    %c0_21 = arith.constant 0 : index
    %c0_22 = arith.constant 0 : index
    %22 = vector.load %arg8[%c0_21, %c0_22] : memref<512x32xbf16, #tpu.memory_space<vmem>>, vector<512x32xbf16>
    %cst_23 = arith.constant dense<0.000000e+00> : vector<1x32xf32>
    %23 = tpu.matmul %21, %22, %cst_23 {dimension_numbers = #tpu.dot_dimension_numbers<[1], [0], [0], [1], [0, 0, 1, 1], [], []>} : vector<1x512xbf16>, vector<512x32xbf16>, vector<1x32xf32> -> vector<1x32xf32>
    %c0_24 = arith.constant 0 : index
    %c0_25 = arith.constant 0 : index
    %24 = vector.load %arg9[%c0_24, %c0_25] : memref<1x32xf32, #tpu.memory_space<vmem>>, vector<1x32xf32>
    %25 = arith.addf %23, %24 : vector<1x32xf32>
    %cst_26 = arith.constant 0.000000e+00 : f32
    %26 = vector.broadcast %cst_26 : f32 to vector<1x32xf32>
    %27 = arith.maximumf %25, %26 : vector<1x32xf32>
    %28 = arith.truncf %27 : vector<1x32xf32> to vector<1x32xbf16>
    %c0_27 = arith.constant 0 : index
    %c0_28 = arith.constant 0 : index
    %29 = vector.load %arg10[%c0_27, %c0_28] : memref<32x32xbf16, #tpu.memory_space<vmem>>, vector<32x32xbf16>
    %cst_29 = arith.constant dense<0.000000e+00> : vector<1x32xf32>
    %30 = tpu.matmul %28, %29, %cst_29 {dimension_numbers = #tpu.dot_dimension_numbers<[1], [0], [0], [1], [0, 0, 1, 1], [], []>} : vector<1x32xbf16>, vector<32x32xbf16>, vector<1x32xf32> -> vector<1x32xf32>
    %c0_30 = arith.constant 0 : index
    %c0_31 = arith.constant 0 : index
    %31 = vector.load %arg11[%c0_30, %c0_31] : memref<1x32xf32, #tpu.memory_space<vmem>>, vector<1x32xf32>
    %32 = arith.addf %30, %31 : vector<1x32xf32>
    %33 = arith.truncf %32 : vector<1x32xf32> to vector<1x32xbf16>
    %c0_32 = arith.constant 0 : index
    %c0_33 = arith.constant 0 : index
    %34 = vector.load %arg12[%c0_32, %c0_33] : memref<32x32xbf16, #tpu.memory_space<vmem>>, vector<32x32xbf16>
    %cst_34 = arith.constant dense<0.000000e+00> : vector<1x32xf32>
    %35 = tpu.matmul %33, %34, %cst_34 {dimension_numbers = #tpu.dot_dimension_numbers<[1], [0], [0], [1], [0, 0, 1, 1], [], []>} : vector<1x32xbf16>, vector<32x32xbf16>, vector<1x32xf32> -> vector<1x32xf32>
    %c0_35 = arith.constant 0 : index
    %c0_36 = arith.constant 0 : index
    %36 = vector.load %arg13[%c0_35, %c0_36] : memref<1x32xf32, #tpu.memory_space<vmem>>, vector<1x32xf32>
    %37 = arith.addf %35, %36 : vector<1x32xf32>
    %c0_37 = arith.constant 0 : index
    %c0_38 = arith.constant 0 : index
    %38 = vector.load %arg14[%c0_37, %c0_38] : memref<32x64xbf16, #tpu.memory_space<vmem>>, vector<32x64xbf16>
    %cst_39 = arith.constant dense<0.000000e+00> : vector<64x64xf32>
    %39 = tpu.matmul %3, %38, %cst_39 {dimension_numbers = #tpu.dot_dimension_numbers<[1], [0], [0], [1], [0, 0, 1, 1], [], []>} : vector<64x32xbf16>, vector<32x64xbf16>, vector<64x64xf32> -> vector<64x64xf32>
    %c0_40 = arith.constant 0 : index
    %c0_41 = arith.constant 0 : index
    %40 = vector.load %arg15[%c0_40, %c0_41] : memref<1x64xf32, #tpu.memory_space<vmem>>, vector<1x64xf32>
    %41 = vector.broadcast %40 : vector<1x64xf32> to vector<64x64xf32>
    %42 = arith.addf %39, %41 : vector<64x64xf32>
    %43 = vector.extract_strided_slice %42 {offsets = [0, 0], sizes = [64, 32], strides = [1, 1]} : vector<64x64xf32> to vector<64x32xf32>
    %44 = vector.extract_strided_slice %42 {offsets = [0, 32], sizes = [64, 32], strides = [1, 1]} : vector<64x64xf32> to vector<64x32xf32>
    %45 = vector.broadcast %37 : vector<1x32xf32> to vector<64x32xf32>
    %46 = arith.mulf %43, %45 : vector<64x32xf32>
    %47 = arith.truncf %46 : vector<64x32xf32> to vector<64x32xbf16>
    %c0_42 = arith.constant 0 : index
    %c0_43 = arith.constant 0 : index
    %48 = vector.load %arg18[%c0_42, %c0_43] : memref<32x8xbf16, #tpu.memory_space<vmem>>, vector<32x8xbf16>
    %cst_44 = arith.constant dense<0.000000e+00> : vector<64x8xf32>
    %49 = tpu.matmul %47, %48, %cst_44 {dimension_numbers = #tpu.dot_dimension_numbers<[1], [0], [0], [1], [0, 0, 1, 1], [], []>} : vector<64x32xbf16>, vector<32x8xbf16>, vector<64x8xf32> -> vector<64x8xf32>
    %cst_45 = arith.constant dense<0xFF800000> : vector<8xf32>
    %50 = vector.multi_reduction <maximumf>, %49, %cst_45 [0] : vector<64x8xf32> to vector<8xf32>
    %51 = vector.shape_cast %50 : vector<8xf32> to vector<1x8xf32>
    %52 = vector.broadcast %51 : vector<1x8xf32> to vector<64x8xf32>
    %53 = arith.subf %49, %52 : vector<64x8xf32>
    %54 = math.exp %53 : vector<64x8xf32>
    %cst_46 = arith.constant dense<0.000000e+00> : vector<8xf32>
    %55 = vector.multi_reduction <add>, %54, %cst_46 [0] : vector<64x8xf32> to vector<8xf32>
    %56 = vector.shape_cast %55 : vector<8xf32> to vector<1x8xf32>
    %57 = tpu.reciprocal %56 {approx = true} : vector<1x8xf32> -> vector<1x8xf32>
    %58 = vector.broadcast %57 : vector<1x8xf32> to vector<64x8xf32>
    %59 = arith.mulf %54, %58 : vector<64x8xf32>
    %60 = arith.truncf %59 : vector<64x8xf32> to vector<64x8xbf16>
    %61 = arith.truncf %44 : vector<64x32xf32> to vector<64x32xbf16>
    %cst_47 = arith.constant dense<0.000000e+00> : vector<8x32xf32>
    %62 = tpu.matmul %60, %61, %cst_47 {dimension_numbers = #tpu.dot_dimension_numbers<[0], [0], [1], [1], [0, 1, 1, 1], [], []>} : vector<64x8xbf16>, vector<64x32xbf16>, vector<8x32xf32> -> vector<8x32xf32>
    %c0_48 = arith.constant 0 : index
    %c0_49 = arith.constant 0 : index
    %63 = vector.load %arg19[%c0_48, %c0_49] : memref<8x32xf32, #tpu.memory_space<vmem>>, vector<8x32xf32>
    %64 = arith.mulf %62, %63 : vector<8x32xf32>
    %cst_50 = arith.constant dense<0.000000e+00> : vector<32xf32>
    %65 = vector.multi_reduction <add>, %64, %cst_50 [0] : vector<8x32xf32> to vector<32xf32>
    %66 = vector.shape_cast %65 : vector<32xf32> to vector<1x32xf32>
    %67 = arith.truncf %66 : vector<1x32xf32> to vector<1x32xbf16>
    %c0_51 = arith.constant 0 : index
    %c0_52 = arith.constant 0 : index
    %68 = vector.load %arg16[%c0_51, %c0_52] : memref<32x32xbf16, #tpu.memory_space<vmem>>, vector<32x32xbf16>
    %cst_53 = arith.constant dense<0.000000e+00> : vector<1x32xf32>
    %69 = tpu.matmul %67, %68, %cst_53 {dimension_numbers = #tpu.dot_dimension_numbers<[1], [0], [0], [1], [0, 0, 1, 1], [], []>} : vector<1x32xbf16>, vector<32x32xbf16>, vector<1x32xf32> -> vector<1x32xf32>
    %c0_54 = arith.constant 0 : index
    %c0_55 = arith.constant 0 : index
    %70 = vector.load %arg17[%c0_54, %c0_55] : memref<1x32xf32, #tpu.memory_space<vmem>>, vector<1x32xf32>
    %71 = arith.addf %69, %70 : vector<1x32xf32>
    %72 = arith.extf %1 : vector<64x32xbf16> to vector<64x32xf32>
    %73 = arith.addf %72, %7 : vector<64x32xf32>
    %74 = vector.broadcast %71 : vector<1x32xf32> to vector<64x32xf32>
    %75 = arith.addf %18, %74 : vector<64x32xf32>
    %76 = arith.mulf %72, %75 : vector<64x32xf32>
    %77 = arith.addf %73, %76 : vector<64x32xf32>
    %78 = vector.broadcast %71 : vector<1x32xf32> to vector<64x32xf32>
    %79 = arith.addf %19, %78 : vector<64x32xf32>
    %80 = arith.addf %77, %79 : vector<64x32xf32>
    %cst_56 = arith.constant 0.000000e+00 : f32
    %81 = vector.broadcast %cst_56 : f32 to vector<64x32xf32>
    %82 = arith.cmpf oge, %80, %81 : vector<64x32xf32>
    %cst_57 = arith.constant 1.000000e-01 : f32
    %83 = vector.broadcast %cst_57 : f32 to vector<64x32xf32>
    %84 = arith.mulf %83, %80 : vector<64x32xf32>
    %85 = arith.select %82, %80, %84 : vector<64x32xi1>, vector<64x32xf32>
    %86 = arith.truncf %85 : vector<64x32xf32> to vector<64x32xbf16>
    %c0_58 = arith.constant 0 : index
    %c0_59 = arith.constant 0 : index
    %c0_60 = arith.constant 0 : index
    %87 = vector.load %arg20[%c0_58, %c0_59, %c0_60] : memref<1x64x32xbf16, #tpu.memory_space<vmem>>, vector<1x64x32xbf16>
    %88 = vector.shape_cast %87 : vector<1x64x32xbf16> to vector<64x32xbf16>
    %89 = vector.shape_cast %86 : vector<64x32xbf16> to vector<1x64x32xbf16>
    tpu.vector_store %arg20[%c0_58, %c0_59, %c0_60], %89 {strides = array<i32>} : memref<1x64x32xbf16, #tpu.memory_space<vmem>>, vector<1x64x32xbf16>,
    return
  }
  func.func @transform_0(%arg0: i32) -> (i32, i32, i32) {
    %c0_i32 = arith.constant 0 : i32
    %c0_i32_0 = arith.constant 0 : i32
    %c0_i32_1 = arith.constant 0 : i32
    return %arg0, %c0_i32, %c0_i32_0 : i32, i32, i32
  }
  func.func @transform_1(%arg0: i32) -> (i32, i32, i32) {
    %c0_i32 = arith.constant 0 : i32
    %c0_i32_0 = arith.constant 0 : i32
    %c0_i32_1 = arith.constant 0 : i32
    return %arg0, %c0_i32, %c0_i32_0 : i32, i32, i32
  }
  func.func @transform_2(%arg0: i32) -> (i32, i32, i32) {
    %c0_i32 = arith.constant 0 : i32
    %c0_i32_0 = arith.constant 0 : i32
    %c0_i32_1 = arith.constant 0 : i32
    return %arg0, %c0_i32, %c0_i32_0 : i32, i32, i32
  }
  func.func @transform_3(%arg0: i32) -> (i32, i32, i32) {
    %c0_i32 = arith.constant 0 : i32
    %c0_i32_0 = arith.constant 0 : i32
    %c0_i32_1 = arith.constant 0 : i32
    return %arg0, %c0_i32, %c0_i32_0 : i32, i32, i32
  }
  func.func @transform_4(%arg0: i32) -> (i32, i32) {
    %c0_i32 = arith.constant 0 : i32
    %c0_i32_0 = arith.constant 0 : i32
    %c0_i32_1 = arith.constant 0 : i32
    return %c0_i32, %c0_i32_0 : i32, i32
  }
  func.func @transform_5(%arg0: i32) -> (i32, i32) {
    %c0_i32 = arith.constant 0 : i32
    %c0_i32_0 = arith.constant 0 : i32
    %c0_i32_1 = arith.constant 0 : i32
    return %c0_i32, %c0_i32_0 : i32, i32
  }
  func.func @transform_6(%arg0: i32) -> (i32, i32) {
    %c0_i32 = arith.constant 0 : i32
    %c0_i32_0 = arith.constant 0 : i32
    %c0_i32_1 = arith.constant 0 : i32
    return %c0_i32, %c0_i32_0 : i32, i32
  }
  func.func @transform_7(%arg0: i32) -> (i32, i32) {
    %c0_i32 = arith.constant 0 : i32
    %c0_i32_0 = arith.constant 0 : i32
    %c0_i32_1 = arith.constant 0 : i32
    return %c0_i32, %c0_i32_0 : i32, i32
  }
  func.func @transform_8(%arg0: i32) -> (i32, i32) {
    %c0_i32 = arith.constant 0 : i32
    %c0_i32_0 = arith.constant 0 : i32
    %c0_i32_1 = arith.constant 0 : i32
    return %c0_i32, %c0_i32_0 : i32, i32
  }
  func.func @transform_9(%arg0: i32) -> (i32, i32) {
    %c0_i32 = arith.constant 0 : i32
    %c0_i32_0 = arith.constant 0 : i32
    %c0_i32_1 = arith.constant 0 : i32
    return %c0_i32, %c0_i32_0 : i32, i32
  }
  func.func @transform_10(%arg0: i32) -> (i32, i32) {
    %c0_i32 = arith.constant 0 : i32
    %c0_i32_0 = arith.constant 0 : i32
    %c0_i32_1 = arith.constant 0 : i32
    return %c0_i32, %c0_i32_0 : i32, i32
  }
  func.func @transform_11(%arg0: i32) -> (i32, i32) {
    %c0_i32 = arith.constant 0 : i32
    %c0_i32_0 = arith.constant 0 : i32
    %c0_i32_1 = arith.constant 0 : i32
    return %c0_i32, %c0_i32_0 : i32, i32
  }
  func.func @transform_12(%arg0: i32) -> (i32, i32) {
    %c0_i32 = arith.constant 0 : i32
    %c0_i32_0 = arith.constant 0 : i32
    %c0_i32_1 = arith.constant 0 : i32
    return %c0_i32, %c0_i32_0 : i32, i32
  }
  func.func @transform_13(%arg0: i32) -> (i32, i32) {
    %c0_i32 = arith.constant 0 : i32
    %c0_i32_0 = arith.constant 0 : i32
    %c0_i32_1 = arith.constant 0 : i32
    return %c0_i32, %c0_i32_0 : i32, i32
  }
  func.func @transform_14(%arg0: i32) -> (i32, i32) {
    %c0_i32 = arith.constant 0 : i32
    %c0_i32_0 = arith.constant 0 : i32
    %c0_i32_1 = arith.constant 0 : i32
    return %c0_i32, %c0_i32_0 : i32, i32
  }
  func.func @transform_15(%arg0: i32) -> (i32, i32) {
    %c0_i32 = arith.constant 0 : i32
    %c0_i32_0 = arith.constant 0 : i32
    %c0_i32_1 = arith.constant 0 : i32
    return %c0_i32, %c0_i32_0 : i32, i32
  }
  func.func @transform_16(%arg0: i32) -> (i32, i32) {
    %c0_i32 = arith.constant 0 : i32
    %c0_i32_0 = arith.constant 0 : i32
    %c0_i32_1 = arith.constant 0 : i32
    return %c0_i32, %c0_i32_0 : i32, i32
  }
  func.func @transform_17(%arg0: i32) -> (i32, i32) {
    %c0_i32 = arith.constant 0 : i32
    %c0_i32_0 = arith.constant 0 : i32
    %c0_i32_1 = arith.constant 0 : i32
    return %c0_i32, %c0_i32_0 : i32, i32
  }
  func.func @transform_18(%arg0: i32) -> (i32, i32) {
    %c0_i32 = arith.constant 0 : i32
    %c0_i32_0 = arith.constant 0 : i32
    %c0_i32_1 = arith.constant 0 : i32
    return %c0_i32, %c0_i32_0 : i32, i32
  }
  func.func @transform_19(%arg0: i32) -> (i32, i32, i32) {
    %c0_i32 = arith.constant 0 : i32
    %c0_i32_0 = arith.constant 0 : i32
    %c0_i32_1 = arith.constant 0 : i32
    return %arg0, %c0_i32, %c0_i32_0 : i32, i32, i32
  }
}

module attributes {stable_mosaic.version = 11 : i64} {
  func.func @_conv_kernel(%arg0: i32, %arg1: memref<1x8x8x32xbf16, #tpu.memory_space<vmem>>, %arg2: memref<288x32xbf16, #tpu.memory_space<vmem>>, %arg3: memref<1x32xf32, #tpu.memory_space<vmem>>, %arg4: memref<1x64x32xf32, #tpu.memory_space<vmem>>, %arg5: memref<1x64x32xf32, #tpu.memory_space<vmem>>, %arg6: memref<8x8x288xbf16, #tpu.memory_space<vmem>>) attributes {dimension_semantics = [#tpu.dimension_semantics<parallel>], iteration_bounds = array<i64: 2>, scalar_prefetch = 0 : i64, scratch_operands = 1 : i64, tpu.core_type = #tpu.core_type<tc>, window_params = [{transform_indices = @transform_0, window_bounds = array<i64: 1, 8, 8, 32>}, {pipeline_mode = #tpu.pipeline_mode<synchronous>, transform_indices = @transform_1, window_bounds = array<i64: 288, 32>}, {pipeline_mode = #tpu.pipeline_mode<synchronous>, transform_indices = @transform_2, window_bounds = array<i64: 1, 32>}, {transform_indices = @transform_3, window_bounds = array<i64: 1, 64, 32>}, {transform_indices = @transform_4, window_bounds = array<i64: 1, 64, 32>}]} {
    %cst = arith.constant 0.000000e+00 : bf16
    %0 = vector.broadcast %cst : bf16 to vector<8x8x288xbf16>
    %c0 = arith.constant 0 : index
    %c0_0 = arith.constant 0 : index
    %c0_1 = arith.constant 0 : index
    %1 = vector.load %arg6[%c0, %c0_0, %c0_1] : memref<8x8x288xbf16, #tpu.memory_space<vmem>>, vector<8x8x288xbf16>
    tpu.vector_store %arg6[%c0, %c0_0, %c0_1], %0 {strides = array<i32>} : memref<8x8x288xbf16, #tpu.memory_space<vmem>>, vector<8x8x288xbf16>,
    %c0_2 = arith.constant 0 : index
    %c0_3 = arith.constant 0 : index
    %c0_4 = arith.constant 0 : index
    %c0_5 = arith.constant 0 : index
    %2 = vector.load %arg1[%c0_2, %c0_3, %c0_4, %c0_5] : memref<1x8x8x32xbf16, #tpu.memory_space<vmem>>, vector<1x8x8x32xbf16>
    %3 = vector.shape_cast %2 : vector<1x8x8x32xbf16> to vector<8x8x32xbf16>
    %4 = vector.extract_strided_slice %3 {offsets = [0, 0, 0], sizes = [7, 7, 32], strides = [1, 1, 1]} : vector<8x8x32xbf16> to vector<7x7x32xbf16>
    %c1 = arith.constant 1 : index
    %c1_6 = arith.constant 1 : index
    %c0_7 = arith.constant 0 : index
    %5 = vector.load %arg6[%c1, %c1_6, %c0_7] : memref<8x8x288xbf16, #tpu.memory_space<vmem>>, vector<7x7x32xbf16>
    tpu.vector_store %arg6[%c1, %c1_6, %c0_7], %4 {strides = array<i32>} : memref<8x8x288xbf16, #tpu.memory_space<vmem>>, vector<7x7x32xbf16>,
    %6 = vector.extract_strided_slice %3 {offsets = [0, 0, 0], sizes = [7, 8, 32], strides = [1, 1, 1]} : vector<8x8x32xbf16> to vector<7x8x32xbf16>
    %c1_8 = arith.constant 1 : index
    %c0_9 = arith.constant 0 : index
    %c32 = arith.constant 32 : index
    %7 = vector.load %arg6[%c1_8, %c0_9, %c32] : memref<8x8x288xbf16, #tpu.memory_space<vmem>>, vector<7x8x32xbf16>
    tpu.vector_store %arg6[%c1_8, %c0_9, %c32], %6 {strides = array<i32>} : memref<8x8x288xbf16, #tpu.memory_space<vmem>>, vector<7x8x32xbf16>,
    %8 = vector.extract_strided_slice %3 {offsets = [0, 1, 0], sizes = [7, 7, 32], strides = [1, 1, 1]} : vector<8x8x32xbf16> to vector<7x7x32xbf16>
    %c1_10 = arith.constant 1 : index
    %c0_11 = arith.constant 0 : index
    %c64 = arith.constant 64 : index
    %9 = vector.load %arg6[%c1_10, %c0_11, %c64] : memref<8x8x288xbf16, #tpu.memory_space<vmem>>, vector<7x7x32xbf16>
    tpu.vector_store %arg6[%c1_10, %c0_11, %c64], %8 {strides = array<i32>} : memref<8x8x288xbf16, #tpu.memory_space<vmem>>, vector<7x7x32xbf16>,
    %10 = vector.extract_strided_slice %3 {offsets = [0, 0, 0], sizes = [8, 7, 32], strides = [1, 1, 1]} : vector<8x8x32xbf16> to vector<8x7x32xbf16>
    %c0_12 = arith.constant 0 : index
    %c1_13 = arith.constant 1 : index
    %c96 = arith.constant 96 : index
    %11 = vector.load %arg6[%c0_12, %c1_13, %c96] : memref<8x8x288xbf16, #tpu.memory_space<vmem>>, vector<8x7x32xbf16>
    tpu.vector_store %arg6[%c0_12, %c1_13, %c96], %10 {strides = array<i32>} : memref<8x8x288xbf16, #tpu.memory_space<vmem>>, vector<8x7x32xbf16>,
    %c0_14 = arith.constant 0 : index
    %c0_15 = arith.constant 0 : index
    %c128 = arith.constant 128 : index
    %12 = vector.load %arg6[%c0_14, %c0_15, %c128] : memref<8x8x288xbf16, #tpu.memory_space<vmem>>, vector<8x8x32xbf16>
    tpu.vector_store %arg6[%c0_14, %c0_15, %c128], %3 {strides = array<i32>} : memref<8x8x288xbf16, #tpu.memory_space<vmem>>, vector<8x8x32xbf16>,
    %13 = vector.extract_strided_slice %3 {offsets = [0, 1, 0], sizes = [8, 7, 32], strides = [1, 1, 1]} : vector<8x8x32xbf16> to vector<8x7x32xbf16>
    %c0_16 = arith.constant 0 : index
    %c0_17 = arith.constant 0 : index
    %c160 = arith.constant 160 : index
    %14 = vector.load %arg6[%c0_16, %c0_17, %c160] : memref<8x8x288xbf16, #tpu.memory_space<vmem>>, vector<8x7x32xbf16>
    tpu.vector_store %arg6[%c0_16, %c0_17, %c160], %13 {strides = array<i32>} : memref<8x8x288xbf16, #tpu.memory_space<vmem>>, vector<8x7x32xbf16>,
    %15 = vector.extract_strided_slice %3 {offsets = [1, 0, 0], sizes = [7, 7, 32], strides = [1, 1, 1]} : vector<8x8x32xbf16> to vector<7x7x32xbf16>
    %c0_18 = arith.constant 0 : index
    %c1_19 = arith.constant 1 : index
    %c192 = arith.constant 192 : index
    %16 = vector.load %arg6[%c0_18, %c1_19, %c192] : memref<8x8x288xbf16, #tpu.memory_space<vmem>>, vector<7x7x32xbf16>
    tpu.vector_store %arg6[%c0_18, %c1_19, %c192], %15 {strides = array<i32>} : memref<8x8x288xbf16, #tpu.memory_space<vmem>>, vector<7x7x32xbf16>,
    %17 = vector.extract_strided_slice %3 {offsets = [1, 0, 0], sizes = [7, 8, 32], strides = [1, 1, 1]} : vector<8x8x32xbf16> to vector<7x8x32xbf16>
    %c0_20 = arith.constant 0 : index
    %c0_21 = arith.constant 0 : index
    %c224 = arith.constant 224 : index
    %18 = vector.load %arg6[%c0_20, %c0_21, %c224] : memref<8x8x288xbf16, #tpu.memory_space<vmem>>, vector<7x8x32xbf16>
    tpu.vector_store %arg6[%c0_20, %c0_21, %c224], %17 {strides = array<i32>} : memref<8x8x288xbf16, #tpu.memory_space<vmem>>, vector<7x8x32xbf16>,
    %19 = vector.extract_strided_slice %3 {offsets = [1, 1, 0], sizes = [7, 7, 32], strides = [1, 1, 1]} : vector<8x8x32xbf16> to vector<7x7x32xbf16>
    %c0_22 = arith.constant 0 : index
    %c0_23 = arith.constant 0 : index
    %c256 = arith.constant 256 : index
    %20 = vector.load %arg6[%c0_22, %c0_23, %c256] : memref<8x8x288xbf16, #tpu.memory_space<vmem>>, vector<7x7x32xbf16>
    tpu.vector_store %arg6[%c0_22, %c0_23, %c256], %19 {strides = array<i32>} : memref<8x8x288xbf16, #tpu.memory_space<vmem>>, vector<7x7x32xbf16>,
    %c0_24 = arith.constant 0 : index
    %c0_25 = arith.constant 0 : index
    %c0_26 = arith.constant 0 : index
    %21 = vector.load %arg6[%c0_24, %c0_25, %c0_26] : memref<8x8x288xbf16, #tpu.memory_space<vmem>>, vector<8x8x288xbf16>
    %22 = vector.shape_cast %21 : vector<8x8x288xbf16> to vector<64x288xbf16>
    %c0_27 = arith.constant 0 : index
    %c0_28 = arith.constant 0 : index
    %23 = vector.load %arg2[%c0_27, %c0_28] : memref<288x32xbf16, #tpu.memory_space<vmem>>, vector<288x32xbf16>
    %cst_29 = arith.constant dense<0.000000e+00> : vector<64x32xf32>
    %24 = tpu.matmul %22, %23, %cst_29 {dimension_numbers = #tpu.dot_dimension_numbers<[1], [0], [0], [1], [0, 0, 1, 1], [], []>} : vector<64x288xbf16>, vector<288x32xbf16>, vector<64x32xf32> -> vector<64x32xf32>
    %c0_30 = arith.constant 0 : index
    %c0_31 = arith.constant 0 : index
    %25 = vector.load %arg3[%c0_30, %c0_31] : memref<1x32xf32, #tpu.memory_space<vmem>>, vector<1x32xf32>
    %26 = vector.broadcast %25 : vector<1x32xf32> to vector<64x32xf32>
    %27 = arith.addf %24, %26 : vector<64x32xf32>
    %c0_32 = arith.constant 0 : index
    %c0_33 = arith.constant 0 : index
    %c0_34 = arith.constant 0 : index
    %28 = vector.load %arg4[%c0_32, %c0_33, %c0_34] : memref<1x64x32xf32, #tpu.memory_space<vmem>>, vector<1x64x32xf32>
    %29 = vector.shape_cast %28 : vector<1x64x32xf32> to vector<64x32xf32>
    %30 = arith.addf %27, %29 : vector<64x32xf32>
    %c0_35 = arith.constant 0 : index
    %c0_36 = arith.constant 0 : index
    %c0_37 = arith.constant 0 : index
    %31 = vector.load %arg5[%c0_35, %c0_36, %c0_37] : memref<1x64x32xf32, #tpu.memory_space<vmem>>, vector<1x64x32xf32>
    %32 = vector.shape_cast %31 : vector<1x64x32xf32> to vector<64x32xf32>
    %33 = vector.shape_cast %30 : vector<64x32xf32> to vector<1x64x32xf32>
    tpu.vector_store %arg5[%c0_35, %c0_36, %c0_37], %33 {strides = array<i32>} : memref<1x64x32xf32, #tpu.memory_space<vmem>>, vector<1x64x32xf32>,
    return
  }
  func.func @transform_0(%arg0: i32) -> (i32, i32, i32, i32) {
    %c0_i32 = arith.constant 0 : i32
    %c0_i32_0 = arith.constant 0 : i32
    %c0_i32_1 = arith.constant 0 : i32
    %c0_i32_2 = arith.constant 0 : i32
    return %arg0, %c0_i32, %c0_i32_0, %c0_i32_1 : i32, i32, i32, i32
  }
  func.func @transform_1(%arg0: i32) -> (i32, i32) {
    %c0_i32 = arith.constant 0 : i32
    %c0_i32_0 = arith.constant 0 : i32
    %c0_i32_1 = arith.constant 0 : i32
    return %c0_i32, %c0_i32_0 : i32, i32
  }
  func.func @transform_2(%arg0: i32) -> (i32, i32) {
    %c0_i32 = arith.constant 0 : i32
    %c0_i32_0 = arith.constant 0 : i32
    %c0_i32_1 = arith.constant 0 : i32
    return %c0_i32, %c0_i32_0 : i32, i32
  }
  func.func @transform_3(%arg0: i32) -> (i32, i32, i32) {
    %c0_i32 = arith.constant 0 : i32
    %c0_i32_0 = arith.constant 0 : i32
    %c0_i32_1 = arith.constant 0 : i32
    return %arg0, %c0_i32, %c0_i32_0 : i32, i32, i32
  }
  func.func @transform_4(%arg0: i32) -> (i32, i32, i32) {
    %c0_i32 = arith.constant 0 : i32
    %c0_i32_0 = arith.constant 0 : i32
    %c0_i32_1 = arith.constant 0 : i32
    return %arg0, %c0_i32, %c0_i32_0 : i32, i32, i32
  }
}

</mosaic_0001>

<llo_original>
// kernel: dgb_forward.6
$region0: #{dgb_forward.6}
  #allocation0 [shape = 'u32[]', space=smem, size = 0x4, offset = 0x4, fixed_abs, tag = 'smem constant byte address 0x4 - core index']
  #allocation1 [shape = 'u32[72,128]{1,0:T(1,128)}', space=vmem, size = 0x9000, scoped, tag = 'internal scratch']
  #allocation2 [shape = 'bf16[8,8,576]{2,1,0:T(8,128)(2,1)}', space=vmem, size = 0x14000, scoped, tag = 'scratch operand']
  %s0 = inlined_call_operand.vmem [shape: bf16[2,8,8,32], index: 0, kind: input, shape index: {}]
  %s1 = inlined_call_operand.vmem [shape: bf16[2,8,8,32], index: 1, kind: input, shape index: {}]
  %s2 = inlined_call_operand.vmem [shape: bf16[576,27], index: 2, kind: input, shape index: {}]
  %s3 = inlined_call_operand.vmem [shape: f32[1,27], index: 3, kind: input, shape index: {}]
  %s4 = inlined_call_operand.vmem [shape: f32[2,64,27], index: 4, kind: output, shape index: {}]
  %s5 = sld [smem:[#allocation0]]
  $region49: #{dgb_forward.6} parent=0
    _
  %s7 = ssub.s32 1, %s5
  %s8 = scalar_select 0, %s7, %s5
  loop: start=0, step=1, limit=4
  $region2: #{dgb_forward.6} parent=0 // loop_pre_header
    _
  $region3: #{dgb_forward.6} parent=0 // loop_header
    %s10 = sphi 0, %s14
    %p11 = scmp.ge.s32.totalorder %s10, 4
    %s20 = sphi 0, %s22
    %s23 = sphi 0, %s20
    %s24 = sphi 0, %s23
    %s40 = sphi 0, %s24
    %s46 = sphi 0, %s48
    %s49 = sphi 0, %s46
    %s50 = sphi 0, %s49
    %s66 = sphi 0, %s50
    %s70 = sphi 0, %s70
    %s72 = sphi 0, %s70
    %s73 = sphi 0, %s72
    %s87 = sphi 0, %s73
    %s91 = sphi 0, %s91
    %s93 = sphi 0, %s91
    %s94 = sphi 0, %s93
    %s108 = sphi 0, %s94
    %s114 = sphi 0, %s116
    %s117 = sphi 0, %s114
    %s118 = sphi 0, %s117
    %s134 = sphi 0, %s118
  $region4: #{dgb_forward.6} parent=0 // loop_header_branch
    %13 = sbr.rel (%p11) target = $region8
  $region5: #{dgb_forward.6} parent=0 // loop_body
    %s15 = ssub.s32 %s10, 1
    %s16 = ssub.s32 %s10, 2
    %s17 = sadd.s32 %s10, 1
    %s18 = ssub.s32 %s10, %s17
    %p19 = scmp.eq.s32.totalorder %s18, 0
    %s21 = sadd.s32 %s20, 1
    %s22 = scalar_select %p19, %s20, %s21
    %p25 = pneg %p19
    %p26 = scmp.eq.s32.totalorder %s10, 1
    %p27 = por %p25, %p26
    %p28 = scmp.ne.s32.totalorder %s20, %s23
    %p29 = scmp.eq.s32.totalorder %s10, 0
    %p30 = por %p28, %p29
    %p31 = scmp.ne.s32.totalorder %s20, %s23
    %p32 = scmp.eq.s32.totalorder %s15, 1
    %p33 = por %p31, %p32
    %p34 = scmp.ne.s32.totalorder %s23, %s24
    %p35 = scmp.eq.s32.totalorder %s15, 0
    %p36 = por %p34, %p35
    %p37 = scmp.ne.s32.totalorder %s23, %s24
    %p38 = scmp.eq.s32.totalorder %s16, 1
    %p39 = por %p37, %p38
    %p41 = scmp.ne.s32.totalorder %s24, %s40
    %p42 = scmp.eq.s32.totalorder %s16, 0
    %p43 = por %p41, %p42
    %s44 = ssub.s32 %s10, %s17
    %p45 = scmp.eq.s32.totalorder %s44, 0
    %s47 = sadd.s32 %s46, 1
    %s48 = scalar_select %p45, %s46, %s47
    %p51 = pneg %p45
    %p52 = scmp.eq.s32.totalorder %s10, 1
    %p53 = por %p51, %p52
    %p54 = scmp.ne.s32.totalorder %s46, %s49
    %p55 = scmp.eq.s32.totalorder %s10, 0
    %p56 = por %p54, %p55
    %p57 = scmp.ne.s32.totalorder %s46, %s49
    %p58 = scmp.eq.s32.totalorder %s15, 1
    %p59 = por %p57, %p58
    %p60 = scmp.ne.s32.totalorder %s49, %s50
    %p61 = scmp.eq.s32.totalorder %s15, 0
    %p62 = por %p60, %p61
    %p63 = scmp.ne.s32.totalorder %s49, %s50
    %p64 = scmp.eq.s32.totalorder %s16, 1
    %p65 = por %p63, %p64
    %p67 = scmp.ne.s32.totalorder %s50, %s66
    %p68 = scmp.eq.s32.totalorder %s16, 0
    %p69 = por %p67, %p68
    %s71 = sadd.s32 %s70, 1
    %p74 = scmp.eq.s32.totalorder %s10, 1
    %p75 = scmp.ne.s32.totalorder %s70, %s72
    %p76 = scmp.eq.s32.totalorder %s10, 0
    %p77 = por %p75, %p76
    %p78 = scmp.ne.s32.totalorder %s70, %s72
    %p79 = scmp.eq.s32.totalorder %s15, 1
    %p80 = por %p78, %p79
    %p81 = scmp.ne.s32.totalorder %s72, %s73
    %p82 = scmp.eq.s32.totalorder %s15, 0
    %p83 = por %p81, %p82
    %p84 = scmp.ne.s32.totalorder %s72, %s73
    %p85 = scmp.eq.s32.totalorder %s16, 1
    %p86 = por %p84, %p85
    %p88 = scmp.ne.s32.totalorder %s73, %s87
    %p89 = scmp.eq.s32.totalorder %s16, 0
    %p90 = por %p88, %p89
    %s92 = sadd.s32 %s91, 1
    %p95 = scmp.eq.s32.totalorder %s10, 1
    %p96 = scmp.ne.s32.totalorder %s91, %s93
    %p97 = scmp.eq.s32.totalorder %s10, 0
    %p98 = por %p96, %p97
    %p99 = scmp.ne.s32.totalorder %s91, %s93
    %p100 = scmp.eq.s32.totalorder %s15, 1
    %p101 = por %p99, %p100
    %p102 = scmp.ne.s32.totalorder %s93, %s94
    %p103 = scmp.eq.s32.totalorder %s15, 0
    %p104 = por %p102, %p103
    %p105 = scmp.ne.s32.totalorder %s93, %s94
    %p106 = scmp.eq.s32.totalorder %s16, 1
    %p107 = por %p105, %p106
    %p109 = scmp.ne.s32.totalorder %s94, %s108
    %p110 = scmp.eq.s32.totalorder %s16, 0
    %p111 = por %p109, %p110
    %s112 = ssub.s32 %s10, %s17
    %p113 = scmp.eq.s32.totalorder %s112, 0
    %s115 = sadd.s32 %s114, 1
    %s116 = scalar_select %p113, %s114, %s115
    %p119 = pneg %p113
    %p120 = scmp.eq.s32.totalorder %s10, 1
    %p121 = por %p119, %p120
    %p122 = scmp.ne.s32.totalorder %s114, %s117
    %p123 = scmp.eq.s32.totalorder %s10, 0
    %p124 = por %p122, %p123
    %p125 = scmp.ne.s32.totalorder %s114, %s117
    %p126 = scmp.eq.s32.totalorder %s15, 1
    %p127 = por %p125, %p126
    %p128 = scmp.ne.s32.totalorder %s117, %s118
    %p129 = scmp.eq.s32.totalorder %s15, 0
    %p130 = por %p128, %p129
    %p131 = scmp.ne.s32.totalorder %s117, %s118
    %p132 = scmp.eq.s32.totalorder %s16, 1
    %p133 = por %p131, %p132
    %p135 = scmp.ne.s32.totalorder %s118, %s134
    %p136 = scmp.eq.s32.totalorder %s16, 0
    %p137 = por %p135, %p136
    %p138 = scmp.le.s32.totalorder 1, %s10
    %p139 = scmp.lt.s32.totalorder %s10, 3
    %p140 = pnand %p138, %p139
    %p141 = pneg %p140
    // Predicated region
    $region9: #{dgb_forward.6} parent=5 // pred_check
      _
    $region10: #{dgb_forward.6} parent=5 // pred_check_branch
      %143 = sbr.rel (%p140) target = $region12
    $region11: #{dgb_forward.6} parent=5 // pred_region
      %s144 = ssub.s32 %s10, 1
      // Predicated region
      $region13: #{dgb_forward.6} parent=11 // pred_check
        %p145 = pneg %p83
      $region14: #{dgb_forward.6} parent=11 // pred_check_branch
        %147 = sbr.rel (%p145) target = $region16
      $region15: #{dgb_forward.6} parent=11 // pred_region
        _
      $region16: #{dgb_forward.6} parent=11 // pred_fallthru
        _
      // Predicated region
      $region17: #{dgb_forward.6} parent=11 // pred_check
        %p148 = pneg %p104
      $region18: #{dgb_forward.6} parent=11 // pred_check_branch
        %150 = sbr.rel (%p148) target = $region20
      $region19: #{dgb_forward.6} parent=11 // pred_region
        _
      $region20: #{dgb_forward.6} parent=11 // pred_fallthru
        _
    $region12: #{dgb_forward.6} parent=5 // pred_fallthru
      _
    %p151 = scmp.lt.s32.totalorder %s10, 2
    // Predicated region
    $region21: #{dgb_forward.6} parent=5 // pred_check
      %p152 = pneg %p151
    $region22: #{dgb_forward.6} parent=5 // pred_check_branch
      %154 = sbr.rel (%p152) target = $region24
    $region23: #{dgb_forward.6} parent=5 // pred_region
      // Predicated region
      $region25: #{dgb_forward.6} parent=23 // pred_check
        %p155 = pneg %p30
      $region26: #{dgb_forward.6} parent=23 // pred_check_branch
        %157 = sbr.rel (%p155) target = $region28
      $region27: #{dgb_forward.6} parent=23 // pred_region
        %p158 = scmp.lt.s32.totalorder %s10, 1
        %s159 = scalar_select %p158, %s10, 1
        %s160 = smul.addr %s159, 8
        %s161 = smul.addr %s160, 4
        %s162 = scalar_lea.vmem %s0, %s161
      $region28: #{dgb_forward.6} parent=23 // pred_fallthru
        _
      // Predicated region
      $region29: #{dgb_forward.6} parent=23 // pred_check
        %p163 = pneg %p56
      $region30: #{dgb_forward.6} parent=23 // pred_check_branch
        %165 = sbr.rel (%p163) target = $region32
      $region31: #{dgb_forward.6} parent=23 // pred_region
        %p166 = scmp.lt.s32.totalorder %s10, 1
        %s167 = scalar_select %p166, %s10, 1
        %s168 = smul.addr %s167, 8
        %s169 = smul.addr %s168, 4
        %s170 = scalar_lea.vmem %s1, %s169
      $region32: #{dgb_forward.6} parent=23 // pred_fallthru
        _
    $region24: #{dgb_forward.6} parent=5 // pred_fallthru
      _
    %p171 = scmp.le.s32.totalorder 1, %s10
    %p172 = scmp.lt.s32.totalorder %s10, 3
    %p173 = pnand %p171, %p172
    %p174 = pneg %p173
    // Predicated region
    $region33: #{dgb_forward.6} parent=5 // pred_check
      _
    $region34: #{dgb_forward.6} parent=5 // pred_check_branch
      %176 = sbr.rel (%p173) target = $region36
    $region35: #{dgb_forward.6} parent=5 // pred_region
      %s177 = ssub.s32 %s10, 1
      %p178 = scmp.lt.s32.totalorder %s15, 1
      %s179 = scalar_select %p178, %s15, 1
      %s180 = smul.addr %s179, 8
      %s181 = smul.addr %s180, 4
      %s182 = scalar_lea.vmem %s0, %s181
      %p183 = pneg %p36
      %p184 = pneg %p33
      %p185 = scmp.lt.s32.totalorder %s15, 1
      %s186 = scalar_select %p185, %s15, 1
      %s187 = smul.addr %s186, 8
      %s188 = smul.addr %s187, 4
      %s189 = scalar_lea.vmem %s1, %s188
      %p190 = pneg %p62
      %p191 = pneg %p59
      %p192 = pneg %p83
      %p193 = pneg %p80
      %p194 = pneg %p104
      %p195 = pneg %p101
      %p196 = pneg %p130
      %p197 = pneg %p127
      %p198 = scmp.lt.s32.totalorder %s15, 1
      %s199 = scalar_select %p198, %s15, 1
      %s200 = smul.addr %s199, 8
      %s201 = smul.addr %s200, 8
      %s202 = scalar_lea.vmem %s4, %s201
      %p203 = scmp.lt.s32.totalorder %s15, 1
      %s204 = scalar_select %p203, %s15, 1
      %s205 = smul.addr %s204, 8
      %s206 = smul.addr %s205, 4
      %s207 = scalar_lea.vmem %s0, %s206
      %p208 = scmp.lt.s32.totalorder %s15, 1
      %s209 = scalar_select %p208, %s15, 1
      %s210 = smul.addr %s209, 8
      %s211 = smul.addr %s210, 4
      %s212 = scalar_lea.vmem %s1, %s211
      %p213 = scmp.lt.s32.totalorder %s15, 1
      %s214 = scalar_select %p213, %s15, 1
      %s215 = smul.addr %s214, 8
      %s216 = smul.addr %s215, 8
      %s217 = scalar_lea.vmem %s4, %s216
      %219 = vst [vmem:[#allocation2] sm:$0xff] 0
      %220 = vst [vmem:[#allocation2 + $0x8] sm:$0xff] 0
      %vm221 = vcmask 519168
      %222 = vst.msk [vmem:[#allocation2 + $0x10] sm:$0xf] %vm221, 0
      %223 = vst [vmem:[#allocation2 + $0x14] sm:$0xff] 0
      %224 = vst [vmem:[#allocation2 + $0x1c] sm:$0xff] 0
      %225 = vst.msk [vmem:[#allocation2 + $0x24] sm:$0xf] %vm221, 0
      %226 = vst [vmem:[#allocation2 + $0x28] sm:$0xff] 0
      %227 = vst [vmem:[#allocation2 + $0x30] sm:$0xff] 0
      %228 = vst.msk [vmem:[#allocation2 + $0x38] sm:$0xf] %vm221, 0
      %229 = vst [vmem:[#allocation2 + $0x3c] sm:$0xff] 0
      %230 = vst [vmem:[#allocation2 + $0x44] sm:$0xff] 0
      %231 = vst.msk [vmem:[#allocation2 + $0x4c] sm:$0xf] %vm221, 0
      %232 = vst [vmem:[#allocation2 + $0x50] sm:$0xff] 0
      %233 = vst [vmem:[#allocation2 + $0x58] sm:$0xff] 0
      %234 = vst.msk [vmem:[#allocation2 + $0x60] sm:$0xf] %vm221, 0
      %235 = vst [vmem:[#allocation2 + $0x64] sm:$0xff] 0
      %236 = vst [vmem:[#allocation2 + $0x6c] sm:$0xff] 0
      %237 = vst.msk [vmem:[#allocation2 + $0x74] sm:$0xf] %vm221, 0
      %238 = vst [vmem:[#allocation2 + $0x78] sm:$0xff] 0
      %239 = vst [vmem:[#allocation2 + $0x80] sm:$0xff] 0
      %240 = vst.msk [vmem:[#allocation2 + $0x88] sm:$0xf] %vm221, 0
      %241 = vst [vmem:[#allocation2 + $0x8c] sm:$0xff] 0
      %242 = vst [vmem:[#allocation2 + $0x94] sm:$0xff] 0
      %243 = vst.msk [vmem:[#allocation2 + $0x9c] sm:$0xf] %vm221, 0
      %v244 = vld [vmem:[%s207] sm:$0xf]
      %v245 = vld [vmem:[%s207 + $0x4] sm:$0xf]
      %v246 = vld [vmem:[%s207 + $0x8] sm:$0xf]
      %v247 = vld [vmem:[%s207 + $0xc] sm:$0xf]
      %v248 = vld [vmem:[%s207 + $0x10] sm:$0xf]
      %v249 = vld [vmem:[%s207 + $0x14] sm:$0xf]
      %v250 = vld [vmem:[%s207 + $0x18] sm:$0xf]
      %v251 = vld [vmem:[%s207 + $0x1c] sm:$0xf]
      %v252 = vld [vmem:[%s212] sm:$0xf]
      %v253 = vld [vmem:[%s212 + $0x4] sm:$0xf]
      %v254 = vld [vmem:[%s212 + $0x8] sm:$0xf]
      %v255 = vld [vmem:[%s212 + $0xc] sm:$0xf]
      %v256 = vld [vmem:[%s212 + $0x10] sm:$0xf]
      %v257 = vld [vmem:[%s212 + $0x14] sm:$0xf]
      %v258 = vld [vmem:[%s212 + $0x18] sm:$0xf]
      %v259 = vld [vmem:[%s212 + $0x1c] sm:$0xf]
      %v261 = vshrl.u32 %v244, 16
      %v263 = vrot.slane %v261, 7
      %v264 = vshll.u32 %v244, 16
      %v266 = vor.u32 %v263, %v264
      %v268 = vshrl.u32 %v245, 16
      %v270 = vrot.slane %v268, 7
      %v271 = vshll.u32 %v245, 16
      %v273 = vor.u32 %v270, %v271
      %v275 = vshrl.u32 %v246, 16
      %v277 = vrot.slane %v275, 7
      %v278 = vshll.u32 %v246, 16
      %v280 = vor.u32 %v277, %v278
      %v282 = vshrl.u32 %v247, 16
      %v284 = vrot.slane %v282, 7
      %v285 = vshll.u32 %v247, 16
      %v287 = vor.u32 %v284, %v285
      %v289 = vshrl.u32 %v248, 16
      %v291 = vrot.slane %v289, 7
      %v292 = vshll.u32 %v248, 16
      %v294 = vor.u32 %v291, %v292
      %v296 = vshrl.u32 %v249, 16
      %v298 = vrot.slane %v296, 7
      %v299 = vshll.u32 %v249, 16
      %v301 = vor.u32 %v298, %v299
      %v303 = vshrl.u32 %v250, 16
      %v305 = vrot.slane %v303, 7
      %v306 = vshll.u32 %v250, 16
      %v308 = vor.u32 %v305, %v306
      %s316 = scalar_lea.vmem [#allocation2], 20
      %vm317 = vcmask 257024
      %vm318 = vsmask.f32 7938
      %vm319 = vmand %vm317, %vm318
      %v320 = vld [vmem:[%s316] sm:$0xf]
      %v321 = vsel %vm319, %v266, %v320
      %322 = vst [vmem:[%s316] sm:$0xf] %v321
      %v323 = vld [vmem:[%s316 + $0x14] sm:$0xf]
      %v324 = vsel %vm319, %v273, %v323
      %325 = vst [vmem:[%s316 + $0x14] sm:$0xf] %v324
      %v326 = vld [vmem:[%s316 + $0x28] sm:$0xf]
      %v327 = vsel %vm319, %v280, %v326
      %328 = vst [vmem:[%s316 + $0x28] sm:$0xf] %v327
      %v329 = vld [vmem:[%s316 + $0x3c] sm:$0xf]
      %v330 = vsel %vm319, %v287, %v329
      %331 = vst [vmem:[%s316 + $0x3c] sm:$0xf] %v330
      %v332 = vld [vmem:[%s316 + $0x50] sm:$0xf]
      %v333 = vsel %vm319, %v294, %v332
      %334 = vst [vmem:[%s316 + $0x50] sm:$0xf] %v333
      %v335 = vld [vmem:[%s316 + $0x64] sm:$0xf]
      %v336 = vsel %vm319, %v301, %v335
      %337 = vst [vmem:[%s316 + $0x64] sm:$0xf] %v336
      %v338 = vld [vmem:[%s316 + $0x78] sm:$0xf]
      %v339 = vsel %vm319, %v308, %v338
      %340 = vst [vmem:[%s316 + $0x78] sm:$0xf] %v339
      %v342 = vshrl.u32 %v252, 16
      %v344 = vrot.slane %v342, 7
      %v345 = vshll.u32 %v252, 16
      %v347 = vor.u32 %v344, %v345
      %v349 = vshrl.u32 %v253, 16
      %v351 = vrot.slane %v349, 7
      %v352 = vshll.u32 %v253, 16
      %v354 = vor.u32 %v351, %v352
      %v356 = vshrl.u32 %v254, 16
      %v358 = vrot.slane %v356, 7
      %v359 = vshll.u32 %v254, 16
      %v361 = vor.u32 %v358, %v359
      %v363 = vshrl.u32 %v255, 16
      %v365 = vrot.slane %v363, 7
      %v366 = vshll.u32 %v255, 16
      %v368 = vor.u32 %v365, %v366
      %v370 = vshrl.u32 %v256, 16
      %v372 = vrot.slane %v370, 7
      %v373 = vshll.u32 %v256, 16
      %v375 = vor.u32 %v372, %v373
      %v377 = vshrl.u32 %v257, 16
      %v379 = vrot.slane %v377, 7
      %v380 = vshll.u32 %v257, 16
      %v382 = vor.u32 %v379, %v380
      %v384 = vshrl.u32 %v258, 16
      %v386 = vrot.slane %v384, 7
      %v387 = vshll.u32 %v258, 16
      %v389 = vor.u32 %v386, %v387
      %390 = vrot.lane.b32.xlu0 %v347, 32
      %v391 = vpop.permute.xlu0 %390
      %392 = vrot.lane.b32.xlu0 %v354, 32
      %v393 = vpop.permute.xlu0 %392
      %394 = vrot.lane.b32.xlu0 %v361, 32
      %v395 = vpop.permute.xlu0 %394
      %396 = vrot.lane.b32.xlu0 %v368, 32
      %v397 = vpop.permute.xlu0 %396
      %398 = vrot.lane.b32.xlu0 %v375, 32
      %v399 = vpop.permute.xlu0 %398
      %400 = vrot.lane.b32.xlu0 %v382, 32
      %v401 = vpop.permute.xlu0 %400
      %402 = vrot.lane.b32.xlu0 %v389, 32
      %v403 = vpop.permute.xlu0 %402
      %vm411 = vcmask 519424
      %vm412 = vmand %vm411, %vm318
      %v413 = vld [vmem:[%s316] sm:$0xf]
      %v414 = vsel %vm412, %v391, %v413
      %415 = vst [vmem:[%s316] sm:$0xf] %v414
      %v416 = vld [vmem:[%s316 + $0x14] sm:$0xf]
      %v417 = vsel %vm412, %v393, %v416
      %418 = vst [vmem:[%s316 + $0x14] sm:$0xf] %v417
      %v419 = vld [vmem:[%s316 + $0x28] sm:$0xf]
      %v420 = vsel %vm412, %v395, %v419
      %421 = vst [vmem:[%s316 + $0x28] sm:$0xf] %v420
      %v422 = vld [vmem:[%s316 + $0x3c] sm:$0xf]
      %v423 = vsel %vm412, %v397, %v422
      %424 = vst [vmem:[%s316 + $0x3c] sm:$0xf] %v423
      %v425 = vld [vmem:[%s316 + $0x50] sm:$0xf]
      %v426 = vsel %vm412, %v399, %v425
      %427 = vst [vmem:[%s316 + $0x50] sm:$0xf] %v426
      %v428 = vld [vmem:[%s316 + $0x64] sm:$0xf]
      %v429 = vsel %vm412, %v401, %v428
      %430 = vst [vmem:[%s316 + $0x64] sm:$0xf] %v429
      %v431 = vld [vmem:[%s316 + $0x78] sm:$0xf]
      %v432 = vsel %vm412, %v403, %v431
      %433 = vst [vmem:[%s316 + $0x78] sm:$0xf] %v432
      %441 = vrot.lane.b32.xlu0 %v244, 64
      %v442 = vpop.permute.xlu0 %441
      %443 = vrot.lane.b32.xlu0 %v245, 64
      %v444 = vpop.permute.xlu0 %443
      %445 = vrot.lane.b32.xlu0 %v246, 64
      %v446 = vpop.permute.xlu0 %445
      %447 = vrot.lane.b32.xlu0 %v247, 64
      %v448 = vpop.permute.xlu0 %447
      %449 = vrot.lane.b32.xlu0 %v248, 64
      %v450 = vpop.permute.xlu0 %449
      %451 = vrot.lane.b32.xlu0 %v249, 64
      %v452 = vpop.permute.xlu0 %451
      %453 = vrot.lane.b32.xlu0 %v250, 64
      %v454 = vpop.permute.xlu0 %453
      %vm462 = vcmask 781824
      %463 = vst.msk [vmem:[%s316] sm:$0xf] %vm462, %v442
      %464 = vst.msk [vmem:[%s316 + $0x14] sm:$0xf] %vm462, %v444
      %465 = vst.msk [vmem:[%s316 + $0x28] sm:$0xf] %vm462, %v446
      %466 = vst.msk [vmem:[%s316 + $0x3c] sm:$0xf] %vm462, %v448
      %467 = vst.msk [vmem:[%s316 + $0x50] sm:$0xf] %vm462, %v450
      %468 = vst.msk [vmem:[%s316 + $0x64] sm:$0xf] %vm462, %v452
      %469 = vst.msk [vmem:[%s316 + $0x78] sm:$0xf] %vm462, %v454
      %477 = vrot.lane.b32.xlu0 %v252, 96
      %v478 = vpop.permute.xlu0 %477
      %479 = vrot.lane.b32.xlu0 %v253, 96
      %v480 = vpop.permute.xlu0 %479
      %481 = vrot.lane.b32.xlu0 %v254, 96
      %v482 = vpop.permute.xlu0 %481
      %483 = vrot.lane.b32.xlu0 %v255, 96
      %v484 = vpop.permute.xlu0 %483
      %485 = vrot.lane.b32.xlu0 %v256, 96
      %v486 = vpop.permute.xlu0 %485
      %487 = vrot.lane.b32.xlu0 %v257, 96
      %v488 = vpop.permute.xlu0 %487
      %489 = vrot.lane.b32.xlu0 %v258, 96
      %v490 = vpop.permute.xlu0 %489
      %vm498 = vcmask 1044224
      %499 = vst.msk [vmem:[%s316] sm:$0xf] %vm498, %v478
      %500 = vst.msk [vmem:[%s316 + $0x14] sm:$0xf] %vm498, %v480
      %501 = vst.msk [vmem:[%s316 + $0x28] sm:$0xf] %vm498, %v482
      %502 = vst.msk [vmem:[%s316 + $0x3c] sm:$0xf] %vm498, %v484
      %503 = vst.msk [vmem:[%s316 + $0x50] sm:$0xf] %vm498, %v486
      %504 = vst.msk [vmem:[%s316 + $0x64] sm:$0xf] %vm498, %v488
      %505 = vst.msk [vmem:[%s316 + $0x78] sm:$0xf] %vm498, %v490
      %v506 = vrot.slane %v261, 4
      %v507 = vrot.slane %v264, 5
      %v508 = vor.u32 %v506, %v507
      %v509 = vrot.slane %v508, 4
      %v510 = vrot.slane %v268, 4
      %v511 = vrot.slane %v271, 5
      %v512 = vor.u32 %v510, %v511
      %v513 = vrot.slane %v512, 4
      %v514 = vrot.slane %v275, 4
      %v515 = vrot.slane %v278, 5
      %v516 = vor.u32 %v514, %v515
      %v517 = vrot.slane %v516, 4
      %v518 = vrot.slane %v282, 4
      %v519 = vrot.slane %v285, 5
      %v520 = vor.u32 %v518, %v519
      %v521 = vrot.slane %v520, 4
      %v522 = vrot.slane %v289, 4
      %v523 = vrot.slane %v292, 5
      %v524 = vor.u32 %v522, %v523
      %v525 = vrot.slane %v524, 4
      %v526 = vrot.slane %v296, 4
      %v527 = vrot.slane %v299, 5
      %v528 = vor.u32 %v526, %v527
      %v529 = vrot.slane %v528, 4
      %v530 = vrot.slane %v303, 4
      %v531 = vrot.slane %v306, 5
      %v532 = vor.u32 %v530, %v531
      %v533 = vrot.slane %v532, 4
      %vm541 = vsmask.f32 3328
      %vm542 = vmand %vm317, %vm541
      %v543 = vld [vmem:[%s316 + $0x4] sm:$0xf]
      %v544 = vsel %vm542, %v509, %v543
      %545 = vst [vmem:[%s316 + $0x4] sm:$0xf] %v544
      %v546 = vld [vmem:[%s316 + $0x18] sm:$0xf]
      %v547 = vsel %vm542, %v513, %v546
      %548 = vst [vmem:[%s316 + $0x18] sm:$0xf] %v547
      %v549 = vld [vmem:[%s316 + $0x2c] sm:$0xf]
      %v550 = vsel %vm542, %v517, %v549
      %551 = vst [vmem:[%s316 + $0x2c] sm:$0xf] %v550
      %v552 = vld [vmem:[%s316 + $0x40] sm:$0xf]
      %v553 = vsel %vm542, %v521, %v552
      %554 = vst [vmem:[%s316 + $0x40] sm:$0xf] %v553
      %v555 = vld [vmem:[%s316 + $0x54] sm:$0xf]
      %v556 = vsel %vm542, %v525, %v555
      %557 = vst [vmem:[%s316 + $0x54] sm:$0xf] %v556
      %v558 = vld [vmem:[%s316 + $0x68] sm:$0xf]
      %v559 = vsel %vm542, %v529, %v558
      %560 = vst [vmem:[%s316 + $0x68] sm:$0xf] %v559
      %v561 = vld [vmem:[%s316 + $0x7c] sm:$0xf]
      %v562 = vsel %vm542, %v533, %v561
      %563 = vst [vmem:[%s316 + $0x7c] sm:$0xf] %v562
      %v564 = vrot.slane %v342, 4
      %v565 = vrot.slane %v345, 5
      %v566 = vor.u32 %v564, %v565
      %v567 = vrot.slane %v566, 4
      %v568 = vrot.slane %v349, 4
      %v569 = vrot.slane %v352, 5
      %v570 = vor.u32 %v568, %v569
      %v571 = vrot.slane %v570, 4
      %v572 = vrot.slane %v356, 4
      %v573 = vrot.slane %v359, 5
      %v574 = vor.u32 %v572, %v573
      %v575 = vrot.slane %v574, 4
      %v576 = vrot.slane %v363, 4
      %v577 = vrot.slane %v366, 5
      %v578 = vor.u32 %v576, %v577
      %v579 = vrot.slane %v578, 4
      %v580 = vrot.slane %v370, 4
      %v581 = vrot.slane %v373, 5
      %v582 = vor.u32 %v580, %v581
      %v583 = vrot.slane %v582, 4
      %v584 = vrot.slane %v377, 4
      %v585 = vrot.slane %v380, 5
      %v586 = vor.u32 %v584, %v585
      %v587 = vrot.slane %v586, 4
      %v588 = vrot.slane %v384, 4
      %v589 = vrot.slane %v387, 5
      %v590 = vor.u32 %v588, %v589
      %v591 = vrot.slane %v590, 4
      %592 = vrot.lane.b32.xlu0 %v567, 32
      %v593 = vpop.permute.xlu0 %592
      %594 = vrot.lane.b32.xlu0 %v571, 32
      %v595 = vpop.permute.xlu0 %594
      %596 = vrot.lane.b32.xlu0 %v575, 32
      %v597 = vpop.permute.xlu0 %596
      %598 = vrot.lane.b32.xlu0 %v579, 32
      %v599 = vpop.permute.xlu0 %598
      %600 = vrot.lane.b32.xlu0 %v583, 32
      %v601 = vpop.permute.xlu0 %600
      %602 = vrot.lane.b32.xlu0 %v587, 32
      %v603 = vpop.permute.xlu0 %602
      %604 = vrot.lane.b32.xlu0 %v591, 32
      %v605 = vpop.permute.xlu0 %604
      %vm613 = vmand %vm411, %vm541
      %v614 = vld [vmem:[%s316 + $0x4] sm:$0xf]
      %v615 = vsel %vm613, %v593, %v614
      %616 = vst [vmem:[%s316 + $0x4] sm:$0xf] %v615
      %v617 = vld [vmem:[%s316 + $0x18] sm:$0xf]
      %v618 = vsel %vm613, %v595, %v617
      %619 = vst [vmem:[%s316 + $0x18] sm:$0xf] %v618
      %v620 = vld [vmem:[%s316 + $0x2c] sm:$0xf]
      %v621 = vsel %vm613, %v597, %v620
      %622 = vst [vmem:[%s316 + $0x2c] sm:$0xf] %v621
      %v623 = vld [vmem:[%s316 + $0x40] sm:$0xf]
      %v624 = vsel %vm613, %v599, %v623
      %625 = vst [vmem:[%s316 + $0x40] sm:$0xf] %v624
      %v626 = vld [vmem:[%s316 + $0x54] sm:$0xf]
      %v627 = vsel %vm613, %v601, %v626
      %628 = vst [vmem:[%s316 + $0x54] sm:$0xf] %v627
      %v629 = vld [vmem:[%s316 + $0x68] sm:$0xf]
      %v630 = vsel %vm613, %v603, %v629
      %631 = vst [vmem:[%s316 + $0x68] sm:$0xf] %v630
      %v632 = vld [vmem:[%s316 + $0x7c] sm:$0xf]
      %v633 = vsel %vm613, %v605, %v632
      %634 = vst [vmem:[%s316 + $0x7c] sm:$0xf] %v633
      %v636 = vshrl.u32 %v251, 16
      %v638 = vrot.slane %v636, 7
      %v639 = vshll.u32 %v251, 16
      %v641 = vor.u32 %v638, %v639
      %642 = vrot.lane.b32.xlu0 %v266, 64
      %v643 = vpop.permute.xlu0 %642
      %644 = vrot.lane.b32.xlu0 %v273, 64
      %v645 = vpop.permute.xlu0 %644
      %646 = vrot.lane.b32.xlu0 %v280, 64
      %v647 = vpop.permute.xlu0 %646
      %648 = vrot.lane.b32.xlu0 %v287, 64
      %v649 = vpop.permute.xlu0 %648
      %650 = vrot.lane.b32.xlu0 %v294, 64
      %v651 = vpop.permute.xlu0 %650
      %652 = vrot.lane.b32.xlu0 %v301, 64
      %v653 = vpop.permute.xlu0 %652
      %654 = vrot.lane.b32.xlu0 %v308, 64
      %v655 = vpop.permute.xlu0 %654
      %656 = vrot.lane.b32.xlu0 %v641, 64
      %v657 = vpop.permute.xlu0 %656
      %vm666 = vcmask 781824
      %vm667 = vmand %vm666, %vm318
      %v668 = vld [vmem:[#allocation2 + $0x4] sm:$0xf]
      %v669 = vsel %vm667, %v643, %v668
      %670 = vst [vmem:[#allocation2 + $0x4] sm:$0xf] %v669
      %v671 = vld [vmem:[#allocation2 + $0x18] sm:$0xf]
      %v672 = vsel %vm667, %v645, %v671
      %673 = vst [vmem:[#allocation2 + $0x18] sm:$0xf] %v672
      %v674 = vld [vmem:[#allocation2 + $0x2c] sm:$0xf]
      %v675 = vsel %vm667, %v647, %v674
      %676 = vst [vmem:[#allocation2 + $0x2c] sm:$0xf] %v675
      %v677 = vld [vmem:[#allocation2 + $0x40] sm:$0xf]
      %v678 = vsel %vm667, %v649, %v677
      %679 = vst [vmem:[#allocation2 + $0x40] sm:$0xf] %v678
      %v680 = vld [vmem:[#allocation2 + $0x54] sm:$0xf]
      %v681 = vsel %vm667, %v651, %v680
      %682 = vst [vmem:[#allocation2 + $0x54] sm:$0xf] %v681
      %v683 = vld [vmem:[#allocation2 + $0x68] sm:$0xf]
      %v684 = vsel %vm667, %v653, %v683
      %685 = vst [vmem:[#allocation2 + $0x68] sm:$0xf] %v684
      %v686 = vld [vmem:[#allocation2 + $0x7c] sm:$0xf]
      %v687 = vsel %vm667, %v655, %v686
      %688 = vst [vmem:[#allocation2 + $0x7c] sm:$0xf] %v687
      %v689 = vld [vmem:[#allocation2 + $0x90] sm:$0xf]
      %v690 = vsel %vm667, %v657, %v689
      %691 = vst [vmem:[#allocation2 + $0x90] sm:$0xf] %v690
      %v693 = vshrl.u32 %v259, 16
      %v695 = vrot.slane %v693, 7
      %v696 = vshll.u32 %v259, 16
      %v698 = vor.u32 %v695, %v696
      %699 = vrot.lane.b32.xlu0 %v347, 96
      %v700 = vpop.permute.xlu0 %699
      %701 = vrot.lane.b32.xlu0 %v354, 96
      %v702 = vpop.permute.xlu0 %701
      %703 = vrot.lane.b32.xlu0 %v361, 96
      %v704 = vpop.permute.xlu0 %703
      %705 = vrot.lane.b32.xlu0 %v368, 96
      %v706 = vpop.permute.xlu0 %705
      %707 = vrot.lane.b32.xlu0 %v375, 96
      %v708 = vpop.permute.xlu0 %707
      %709 = vrot.lane.b32.xlu0 %v382, 96
      %v710 = vpop.permute.xlu0 %709
      %711 = vrot.lane.b32.xlu0 %v389, 96
      %v712 = vpop.permute.xlu0 %711
      %713 = vrot.lane.b32.xlu0 %v698, 96
      %v714 = vpop.permute.xlu0 %713
      %vm723 = vcmask 1044224
      %vm724 = vmand %vm723, %vm318
      %v725 = vld [vmem:[#allocation2 + $0x4] sm:$0xf]
      %v726 = vsel %vm724, %v700, %v725
      %727 = vst [vmem:[#allocation2 + $0x4] sm:$0xf] %v726
      %v728 = vld [vmem:[#allocation2 + $0x18] sm:$0xf]
      %v729 = vsel %vm724, %v702, %v728
      %730 = vst [vmem:[#allocation2 + $0x18] sm:$0xf] %v729
      %v731 = vld [vmem:[#allocation2 + $0x2c] sm:$0xf]
      %v732 = vsel %vm724, %v704, %v731
      %733 = vst [vmem:[#allocation2 + $0x2c] sm:$0xf] %v732
      %v734 = vld [vmem:[#allocation2 + $0x40] sm:$0xf]
      %v735 = vsel %vm724, %v706, %v734
      %736 = vst [vmem:[#allocation2 + $0x40] sm:$0xf] %v735
      %v737 = vld [vmem:[#allocation2 + $0x54] sm:$0xf]
      %v738 = vsel %vm724, %v708, %v737
      %739 = vst [vmem:[#allocation2 + $0x54] sm:$0xf] %v738
      %v740 = vld [vmem:[#allocation2 + $0x68] sm:$0xf]
      %v741 = vsel %vm724, %v710, %v740
      %742 = vst [vmem:[#allocation2 + $0x68] sm:$0xf] %v741
      %v743 = vld [vmem:[#allocation2 + $0x7c] sm:$0xf]
      %v744 = vsel %vm724, %v712, %v743
      %745 = vst [vmem:[#allocation2 + $0x7c] sm:$0xf] %v744
      %v746 = vld [vmem:[#allocation2 + $0x90] sm:$0xf]
      %v747 = vsel %vm724, %v714, %v746
      %748 = vst [vmem:[#allocation2 + $0x90] sm:$0xf] %v747
      %vm749 = vcmask 257024
      %750 = vst.msk [vmem:[#allocation2 + $0x8] sm:$0xf] %vm749, %v244
      %751 = vst.msk [vmem:[#allocation2 + $0x1c] sm:$0xf] %vm749, %v245
      %752 = vst.msk [vmem:[#allocation2 + $0x30] sm:$0xf] %vm749, %v246
      %753 = vst.msk [vmem:[#allocation2 + $0x44] sm:$0xf] %vm749, %v247
      %754 = vst.msk [vmem:[#allocation2 + $0x58] sm:$0xf] %vm749, %v248
      %755 = vst.msk [vmem:[#allocation2 + $0x6c] sm:$0xf] %vm749, %v249
      %756 = vst.msk [vmem:[#allocation2 + $0x80] sm:$0xf] %vm749, %v250
      %757 = vst.msk [vmem:[#allocation2 + $0x94] sm:$0xf] %vm749, %v251
      %759 = vrot.lane.b32.xlu0 %v252, 32
      %v760 = vpop.permute.xlu0 %759
      %761 = vrot.lane.b32.xlu0 %v253, 32
      %v762 = vpop.permute.xlu0 %761
      %763 = vrot.lane.b32.xlu0 %v254, 32
      %v764 = vpop.permute.xlu0 %763
      %765 = vrot.lane.b32.xlu0 %v255, 32
      %v766 = vpop.permute.xlu0 %765
      %767 = vrot.lane.b32.xlu0 %v256, 32
      %v768 = vpop.permute.xlu0 %767
      %769 = vrot.lane.b32.xlu0 %v257, 32
      %v770 = vpop.permute.xlu0 %769
      %771 = vrot.lane.b32.xlu0 %v258, 32
      %v772 = vpop.permute.xlu0 %771
      %773 = vrot.lane.b32.xlu0 %v259, 32
      %v774 = vpop.permute.xlu0 %773
      %vm783 = vcmask 519424
      %784 = vst.msk [vmem:[#allocation2 + $0x8] sm:$0xf] %vm783, %v760
      %785 = vst.msk [vmem:[#allocation2 + $0x1c] sm:$0xf] %vm783, %v762
      %786 = vst.msk [vmem:[#allocation2 + $0x30] sm:$0xf] %vm783, %v764
      %787 = vst.msk [vmem:[#allocation2 + $0x44] sm:$0xf] %vm783, %v766
      %788 = vst.msk [vmem:[#allocation2 + $0x58] sm:$0xf] %vm783, %v768
      %789 = vst.msk [vmem:[#allocation2 + $0x6c] sm:$0xf] %vm783, %v770
      %790 = vst.msk [vmem:[#allocation2 + $0x80] sm:$0xf] %vm783, %v772
      %791 = vst.msk [vmem:[#allocation2 + $0x94] sm:$0xf] %vm783, %v774
      %v792 = vrot.slane %v636, 4
      %v793 = vrot.slane %v639, 5
      %v794 = vor.u32 %v792, %v793
      %v795 = vrot.slane %v794, 4
      %796 = vrot.lane.b32.xlu0 %v509, 64
      %v797 = vpop.permute.xlu0 %796
      %798 = vrot.lane.b32.xlu0 %v513, 64
      %v799 = vpop.permute.xlu0 %798
      %800 = vrot.lane.b32.xlu0 %v517, 64
      %v801 = vpop.permute.xlu0 %800
      %802 = vrot.lane.b32.xlu0 %v521, 64
      %v803 = vpop.permute.xlu0 %802
      %804 = vrot.lane.b32.xlu0 %v525, 64
      %v805 = vpop.permute.xlu0 %804
      %806 = vrot.lane.b32.xlu0 %v529, 64
      %v807 = vpop.permute.xlu0 %806
      %808 = vrot.lane.b32.xlu0 %v533, 64
      %v809 = vpop.permute.xlu0 %808
      %810 = vrot.lane.b32.xlu0 %v795, 64
      %v811 = vpop.permute.xlu0 %810
      %vm820 = vmand %vm666, %vm541
      %v821 = vld [vmem:[#allocation2 + $0x8] sm:$0xf]
      %v822 = vsel %vm820, %v797, %v821
      %823 = vst [vmem:[#allocation2 + $0x8] sm:$0xf] %v822
      %v824 = vld [vmem:[#allocation2 + $0x1c] sm:$0xf]
      %v825 = vsel %vm820, %v799, %v824
      %826 = vst [vmem:[#allocation2 + $0x1c] sm:$0xf] %v825
      %v827 = vld [vmem:[#allocation2 + $0x30] sm:$0xf]
      %v828 = vsel %vm820, %v801, %v827
      %829 = vst [vmem:[#allocation2 + $0x30] sm:$0xf] %v828
      %v830 = vld [vmem:[#allocation2 + $0x44] sm:$0xf]
      %v831 = vsel %vm820, %v803, %v830
      %832 = vst [vmem:[#allocation2 + $0x44] sm:$0xf] %v831
      %v833 = vld [vmem:[#allocation2 + $0x58] sm:$0xf]
      %v834 = vsel %vm820, %v805, %v833
      %835 = vst [vmem:[#allocation2 + $0x58] sm:$0xf] %v834
      %v836 = vld [vmem:[#allocation2 + $0x6c] sm:$0xf]
      %v837 = vsel %vm820, %v807, %v836
      %838 = vst [vmem:[#allocation2 + $0x6c] sm:$0xf] %v837
      %v839 = vld [vmem:[#allocation2 + $0x80] sm:$0xf]
      %v840 = vsel %vm820, %v809, %v839
      %841 = vst [vmem:[#allocation2 + $0x80] sm:$0xf] %v840
      %v842 = vld [vmem:[#allocation2 + $0x94] sm:$0xf]
      %v843 = vsel %vm820, %v811, %v842
      %844 = vst [vmem:[#allocation2 + $0x94] sm:$0xf] %v843
      %v845 = vrot.slane %v693, 4
      %v846 = vrot.slane %v696, 5
      %v847 = vor.u32 %v845, %v846
      %v848 = vrot.slane %v847, 4
      %849 = vrot.lane.b32.xlu0 %v567, 96
      %v850 = vpop.permute.xlu0 %849
      %851 = vrot.lane.b32.xlu0 %v571, 96
      %v852 = vpop.permute.xlu0 %851
      %853 = vrot.lane.b32.xlu0 %v575, 96
      %v854 = vpop.permute.xlu0 %853
      %855 = vrot.lane.b32.xlu0 %v579, 96
      %v856 = vpop.permute.xlu0 %855
      %857 = vrot.lane.b32.xlu0 %v583, 96
      %v858 = vpop.permute.xlu0 %857
      %859 = vrot.lane.b32.xlu0 %v587, 96
      %v860 = vpop.permute.xlu0 %859
      %861 = vrot.lane.b32.xlu0 %v591, 96
      %v862 = vpop.permute.xlu0 %861
      %863 = vrot.lane.b32.xlu0 %v848, 96
      %v864 = vpop.permute.xlu0 %863
      %vm873 = vmand %vm723, %vm541
      %v874 = vld [vmem:[#allocation2 + $0x8] sm:$0xf]
      %v875 = vsel %vm873, %v850, %v874
      %876 = vst [vmem:[#allocation2 + $0x8] sm:$0xf] %v875
      %v877 = vld [vmem:[#allocation2 + $0x1c] sm:$0xf]
      %v878 = vsel %vm873, %v852, %v877
      %879 = vst [vmem:[#allocation2 + $0x1c] sm:$0xf] %v878
      %v880 = vld [vmem:[#allocation2 + $0x30] sm:$0xf]
      %v881 = vsel %vm873, %v854, %v880
      %882 = vst [vmem:[#allocation2 + $0x30] sm:$0xf] %v881
      %v883 = vld [vmem:[#allocation2 + $0x44] sm:$0xf]
      %v884 = vsel %vm873, %v856, %v883
      %885 = vst [vmem:[#allocation2 + $0x44] sm:$0xf] %v884
      %v886 = vld [vmem:[#allocation2 + $0x58] sm:$0xf]
      %v887 = vsel %vm873, %v858, %v886
      %888 = vst [vmem:[#allocation2 + $0x58] sm:$0xf] %v887
      %v889 = vld [vmem:[#allocation2 + $0x6c] sm:$0xf]
      %v890 = vsel %vm873, %v860, %v889
      %891 = vst [vmem:[#allocation2 + $0x6c] sm:$0xf] %v890
      %v892 = vld [vmem:[#allocation2 + $0x80] sm:$0xf]
      %v893 = vsel %vm873, %v862, %v892
      %894 = vst [vmem:[#allocation2 + $0x80] sm:$0xf] %v893
      %v895 = vld [vmem:[#allocation2 + $0x94] sm:$0xf]
      %v896 = vsel %vm873, %v864, %v895
      %897 = vst [vmem:[#allocation2 + $0x94] sm:$0xf] %v896
      %v899 = vld [vmem:[#allocation2 + $0xc] sm:$0xf]
      %v900 = vsel %vm319, %v273, %v899
      %901 = vst [vmem:[#allocation2 + $0xc] sm:$0xf] %v900
      %v902 = vld [vmem:[#allocation2 + $0x20] sm:$0xf]
      %v903 = vsel %vm319, %v280, %v902
      %904 = vst [vmem:[#allocation2 + $0x20] sm:$0xf] %v903
      %v905 = vld [vmem:[#allocation2 + $0x34] sm:$0xf]
      %v906 = vsel %vm319, %v287, %v905
      %907 = vst [vmem:[#allocation2 + $0x34] sm:$0xf] %v906
      %v908 = vld [vmem:[#allocation2 + $0x48] sm:$0xf]
      %v909 = vsel %vm319, %v294, %v908
      %910 = vst [vmem:[#allocation2 + $0x48] sm:$0xf] %v909
      %v911 = vld [vmem:[#allocation2 + $0x5c] sm:$0xf]
      %v912 = vsel %vm319, %v301, %v911
      %913 = vst [vmem:[#allocation2 + $0x5c] sm:$0xf] %v912
      %v914 = vld [vmem:[#allocation2 + $0x70] sm:$0xf]
      %v915 = vsel %vm319, %v308, %v914
      %916 = vst [vmem:[#allocation2 + $0x70] sm:$0xf] %v915
      %v917 = vld [vmem:[#allocation2 + $0x84] sm:$0xf]
      %v918 = vsel %vm319, %v641, %v917
      %919 = vst [vmem:[#allocation2 + $0x84] sm:$0xf] %v918
      %920 = vrot.lane.b32.xlu0 %v698, 32
      %v921 = vpop.permute.xlu0 %920
      %v923 = vld [vmem:[#allocation2 + $0xc] sm:$0xf]
      %v924 = vsel %vm412, %v393, %v923
      %925 = vst [vmem:[#allocation2 + $0xc] sm:$0xf] %v924
      %v926 = vld [vmem:[#allocation2 + $0x20] sm:$0xf]
      %v927 = vsel %vm412, %v395, %v926
      %928 = vst [vmem:[#allocation2 + $0x20] sm:$0xf] %v927
      %v929 = vld [vmem:[#allocation2 + $0x34] sm:$0xf]
      %v930 = vsel %vm412, %v397, %v929
      %931 = vst [vmem:[#allocation2 + $0x34] sm:$0xf] %v930
      %v932 = vld [vmem:[#allocation2 + $0x48] sm:$0xf]
      %v933 = vsel %vm412, %v399, %v932
      %934 = vst [vmem:[#allocation2 + $0x48] sm:$0xf] %v933
      %v935 = vld [vmem:[#allocation2 + $0x5c] sm:$0xf]
      %v936 = vsel %vm412, %v401, %v935
      %937 = vst [vmem:[#allocation2 + $0x5c] sm:$0xf] %v936
      %v938 = vld [vmem:[#allocation2 + $0x70] sm:$0xf]
      %v939 = vsel %vm412, %v403, %v938
      %940 = vst [vmem:[#allocation2 + $0x70] sm:$0xf] %v939
      %v941 = vld [vmem:[#allocation2 + $0x84] sm:$0xf]
      %v942 = vsel %vm412, %v921, %v941
      %943 = vst [vmem:[#allocation2 + $0x84] sm:$0xf] %v942
      %945 = vrot.lane.b32.xlu0 %v251, 64
      %v946 = vpop.permute.xlu0 %945
      %948 = vst.msk [vmem:[#allocation2 + $0xc] sm:$0xf] %vm462, %v444
      %949 = vst.msk [vmem:[#allocation2 + $0x20] sm:$0xf] %vm462, %v446
      %950 = vst.msk [vmem:[#allocation2 + $0x34] sm:$0xf] %vm462, %v448
      %951 = vst.msk [vmem:[#allocation2 + $0x48] sm:$0xf] %vm462, %v450
      %952 = vst.msk [vmem:[#allocation2 + $0x5c] sm:$0xf] %vm462, %v452
      %953 = vst.msk [vmem:[#allocation2 + $0x70] sm:$0xf] %vm462, %v454
      %954 = vst.msk [vmem:[#allocation2 + $0x84] sm:$0xf] %vm462, %v946
      %955 = vrot.lane.b32.xlu0 %v259, 96
      %v956 = vpop.permute.xlu0 %955
      %958 = vst.msk [vmem:[#allocation2 + $0xc] sm:$0xf] %vm498, %v480
      %959 = vst.msk [vmem:[#allocation2 + $0x20] sm:$0xf] %vm498, %v482
      %960 = vst.msk [vmem:[#allocation2 + $0x34] sm:$0xf] %vm498, %v484
      %961 = vst.msk [vmem:[#allocation2 + $0x48] sm:$0xf] %vm498, %v486
      %962 = vst.msk [vmem:[#allocation2 + $0x5c] sm:$0xf] %vm498, %v488
      %963 = vst.msk [vmem:[#allocation2 + $0x70] sm:$0xf] %vm498, %v490
      %964 = vst.msk [vmem:[#allocation2 + $0x84] sm:$0xf] %vm498, %v956
      %v966 = vld [vmem:[#allocation2 + $0x10] sm:$0xf]
      %v967 = vsel %vm542, %v513, %v966
      %968 = vst [vmem:[#allocation2 + $0x10] sm:$0xf] %v967
      %v969 = vld [vmem:[#allocation2 + $0x24] sm:$0xf]
      %v970 = vsel %vm542, %v517, %v969
      %971 = vst [vmem:[#allocation2 + $0x24] sm:$0xf] %v970
      %v972 = vld [vmem:[#allocation2 + $0x38] sm:$0xf]
      %v973 = vsel %vm542, %v521, %v972
      %974 = vst [vmem:[#allocation2 + $0x38] sm:$0xf] %v973
      %v975 = vld [vmem:[#allocation2 + $0x4c] sm:$0xf]
      %v976 = vsel %vm542, %v525, %v975
      %977 = vst [vmem:[#allocation2 + $0x4c] sm:$0xf] %v976
      %v978 = vld [vmem:[#allocation2 + $0x60] sm:$0xf]
      %v979 = vsel %vm542, %v529, %v978
      %980 = vst [vmem:[#allocation2 + $0x60] sm:$0xf] %v979
      %v981 = vld [vmem:[#allocation2 + $0x74] sm:$0xf]
      %v982 = vsel %vm542, %v533, %v981
      %983 = vst [vmem:[#allocation2 + $0x74] sm:$0xf] %v982
      %v984 = vld [vmem:[#allocation2 + $0x88] sm:$0xf]
      %v985 = vsel %vm542, %v795, %v984
      %986 = vst [vmem:[#allocation2 + $0x88] sm:$0xf] %v985
      %987 = vrot.lane.b32.xlu0 %v848, 32
      %v988 = vpop.permute.xlu0 %987
      %v990 = vld [vmem:[#allocation2 + $0x10] sm:$0xf]
      %v991 = vsel %vm613, %v595, %v990
      %992 = vst [vmem:[#allocation2 + $0x10] sm:$0xf] %v991
      %v993 = vld [vmem:[#allocation2 + $0x24] sm:$0xf]
      %v994 = vsel %vm613, %v597, %v993
      %995 = vst [vmem:[#allocation2 + $0x24] sm:$0xf] %v994
      %v996 = vld [vmem:[#allocation2 + $0x38] sm:$0xf]
      %v997 = vsel %vm613, %v599, %v996
      %998 = vst [vmem:[#allocation2 + $0x38] sm:$0xf] %v997
      %v999 = vld [vmem:[#allocation2 + $0x4c] sm:$0xf]
      %v1000 = vsel %vm613, %v601, %v999
      %1001 = vst [vmem:[#allocation2 + $0x4c] sm:$0xf] %v1000
      %v1002 = vld [vmem:[#allocation2 + $0x60] sm:$0xf]
      %v1003 = vsel %vm613, %v603, %v1002
      %1004 = vst [vmem:[#allocation2 + $0x60] sm:$0xf] %v1003
      %v1005 = vld [vmem:[#allocation2 + $0x74] sm:$0xf]
      %v1006 = vsel %vm613, %v605, %v1005
      %1007 = vst [vmem:[#allocation2 + $0x74] sm:$0xf] %v1006
      %v1008 = vld [vmem:[#allocation2 + $0x88] sm:$0xf]
      %v1009 = vsel %vm613, %v988, %v1008
      %1010 = vst [vmem:[#allocation2 + $0x88] sm:$0xf] %v1009
      %v1011 = vld [vmem:[#allocation2] sm:$0xff]
      %v1012 = vld [vmem:[#allocation2 + $0x8] sm:$0xff]
      %v1013 = vld [vmem:[#allocation2 + $0x10] sm:$0xf]
      %v1014 = vld [vmem:[#allocation2 + $0x14] sm:$0xff]
      %v1015 = vld [vmem:[#allocation2 + $0x1c] sm:$0xff]
      %v1016 = vld [vmem:[#allocation2 + $0x24] sm:$0xf]
      %v1017 = vld [vmem:[#allocation2 + $0x28] sm:$0xff]
      %v1018 = vld [vmem:[#allocation2 + $0x30] sm:$0xff]
      %v1019 = vld [vmem:[#allocation2 + $0x38] sm:$0xf]
      %v1020 = vld [vmem:[#allocation2 + $0x3c] sm:$0xff]
      %v1021 = vld [vmem:[#allocation2 + $0x44] sm:$0xff]
      %v1022 = vld [vmem:[#allocation2 + $0x4c] sm:$0xf]
      %v1023 = vld [vmem:[#allocation2 + $0x50] sm:$0xff]
      %v1024 = vld [vmem:[#allocation2 + $0x58] sm:$0xff]
      %v1025 = vld [vmem:[#allocation2 + $0x60] sm:$0xf]
      %v1026 = vld [vmem:[#allocation2 + $0x64] sm:$0xff]
      %v1027 = vld [vmem:[#allocation2 + $0x6c] sm:$0xff]
      %v1028 = vld [vmem:[#allocation2 + $0x74] sm:$0xf]
      %v1029 = vld [vmem:[#allocation2 + $0x78] sm:$0xff]
      %v1030 = vld [vmem:[#allocation2 + $0x80] sm:$0xff]
      %v1031 = vld [vmem:[#allocation2 + $0x88] sm:$0xf]
      %v1032 = vld [vmem:[#allocation2 + $0x8c] sm:$0xff]
      %v1033 = vld [vmem:[#allocation2 + $0x94] sm:$0xff]
      %v1034 = vld [vmem:[#allocation2 + $0x9c] sm:$0xf]
      %v1035 = vld [vmem:[%s2] sm:$0xf]
      %v1036 = vld [vmem:[%s2 + $0x4] sm:$0xf]
      %v1037 = vld [vmem:[%s2 + $0x8] sm:$0xf]
      %v1038 = vld [vmem:[%s2 + $0xc] sm:$0xf]
      %v1039 = vld [vmem:[%s2 + $0x10] sm:$0xf]
      %v1040 = vld [vmem:[%s2 + $0x14] sm:$0xf]
      %v1041 = vld [vmem:[%s2 + $0x18] sm:$0xf]
      %v1042 = vld [vmem:[%s2 + $0x1c] sm:$0xf]
      %v1043 = vld [vmem:[%s2 + $0x20] sm:$0xf]
      %v1044 = vld [vmem:[%s2 + $0x24] sm:$0xf]
      %v1045 = vld [vmem:[%s2 + $0x28] sm:$0xf]
      %v1046 = vld [vmem:[%s2 + $0x2c] sm:$0xf]
      %v1047 = vld [vmem:[%s2 + $0x30] sm:$0xf]
      %v1048 = vld [vmem:[%s2 + $0x34] sm:$0xf]
      %v1049 = vld [vmem:[%s2 + $0x38] sm:$0xf]
      %v1050 = vld [vmem:[%s2 + $0x3c] sm:$0xf]
      %v1051 = vld [vmem:[%s2 + $0x40] sm:$0xf]
      %v1052 = vld [vmem:[%s2 + $0x44] sm:$0xf]
      %v1053 = vld [vmem:[%s2 + $0x48] sm:$0xf]
      %v1054 = vld [vmem:[%s2 + $0x4c] sm:$0xf]
      %v1055 = vld [vmem:[%s2 + $0x50] sm:$0xf]
      %v1056 = vld [vmem:[%s2 + $0x54] sm:$0xf]
      %v1057 = vld [vmem:[%s2 + $0x58] sm:$0xf]
      %v1058 = vld [vmem:[%s2 + $0x5c] sm:$0xf]
      %v1059 = vld [vmem:[%s2 + $0x60] sm:$0xf]
      %v1060 = vld [vmem:[%s2 + $0x64] sm:$0xf]
      %v1061 = vld [vmem:[%s2 + $0x68] sm:$0xf]
      %v1062 = vld [vmem:[%s2 + $0x6c] sm:$0xf]
      %v1063 = vld [vmem:[%s2 + $0x70] sm:$0xf]
      %v1064 = vld [vmem:[%s2 + $0x74] sm:$0xf]
      %v1065 = vld [vmem:[%s2 + $0x78] sm:$0xf]
      %v1066 = vld [vmem:[%s2 + $0x7c] sm:$0xf]
      %v1067 = vld [vmem:[%s2 + $0x80] sm:$0xf]
      %v1068 = vld [vmem:[%s2 + $0x84] sm:$0xf]
      %v1069 = vld [vmem:[%s2 + $0x88] sm:$0xf]
      %v1070 = vld [vmem:[%s2 + $0x8c] sm:$0xf]
      %v1071 = vld [vmem:[%s2 + $0x90] sm:$0xf]
      %v1072 = vld [vmem:[%s2 + $0x94] sm:$0xf]
      %v1073 = vld [vmem:[%s2 + $0x98] sm:$0xf]
      %v1074 = vld [vmem:[%s2 + $0x9c] sm:$0xf]
      %v1075 = vld [vmem:[%s2 + $0xa0] sm:$0xf]
      %v1076 = vld [vmem:[%s2 + $0xa4] sm:$0xf]
      %v1077 = vld [vmem:[%s2 + $0xa8] sm:$0xf]
      %v1078 = vld [vmem:[%s2 + $0xac] sm:$0xf]
      %v1079 = vld [vmem:[%s2 + $0xb0] sm:$0xf]
      %v1080 = vld [vmem:[%s2 + $0xb4] sm:$0xf]
      %v1081 = vld [vmem:[%s2 + $0xb8] sm:$0xf]
      %v1082 = vld [vmem:[%s2 + $0xbc] sm:$0xf]
      %v1083 = vld [vmem:[%s2 + $0xc0] sm:$0xf]
      %v1084 = vld [vmem:[%s2 + $0xc4] sm:$0xf]
      %v1085 = vld [vmem:[%s2 + $0xc8] sm:$0xf]
      %v1086 = vld [vmem:[%s2 + $0xcc] sm:$0xf]
      %v1087 = vld [vmem:[%s2 + $0xd0] sm:$0xf]
      %v1088 = vld [vmem:[%s2 + $0xd4] sm:$0xf]
      %v1089 = vld [vmem:[%s2 + $0xd8] sm:$0xf]
      %v1090 = vld [vmem:[%s2 + $0xdc] sm:$0xf]
      %v1091 = vld [vmem:[%s2 + $0xe0] sm:$0xf]
      %v1092 = vld [vmem:[%s2 + $0xe4] sm:$0xf]
      %v1093 = vld [vmem:[%s2 + $0xe8] sm:$0xf]
      %v1094 = vld [vmem:[%s2 + $0xec] sm:$0xf]
      %v1095 = vld [vmem:[%s2 + $0xf0] sm:$0xf]
      %v1096 = vld [vmem:[%s2 + $0xf4] sm:$0xf]
      %v1097 = vld [vmem:[%s2 + $0xf8] sm:$0xf]
      %v1098 = vld [vmem:[%s2 + $0xfc] sm:$0xf]
      %v1099 = vld [vmem:[%s2 + $0x100] sm:$0xf]
      %v1100 = vld [vmem:[%s2 + $0x104] sm:$0xf]
      %v1101 = vld [vmem:[%s2 + $0x108] sm:$0xf]
      %v1102 = vld [vmem:[%s2 + $0x10c] sm:$0xf]
      %v1103 = vld [vmem:[%s2 + $0x110] sm:$0xf]
      %v1104 = vld [vmem:[%s2 + $0x114] sm:$0xf]
      %v1105 = vld [vmem:[%s2 + $0x118] sm:$0xf]
      %v1106 = vld [vmem:[%s2 + $0x11c] sm:$0xf]
      %v1107 = vld [vmem:[%s3] sm:$0x1]
      %v1109 = vperm.slane %v1107, 0
      %v1135 = vunpack.c.l.b16 %v1011
      %v1136 = vunpack.c.h.b16 %v1011
      %v1137 = vunpack.c.l.b16 %v1012
      %v1138 = vunpack.c.h.b16 %v1012
      %v1139 = vunpack.c.l.b16 %v1013
      %v1140 = vunpack.c.l.b16 %v1014
      %v1141 = vunpack.c.h.b16 %v1014
      %v1142 = vunpack.c.l.b16 %v1015
      %v1143 = vunpack.c.h.b16 %v1015
      %v1144 = vunpack.c.l.b16 %v1016
      %v1145 = vunpack.c.l.b16 %v1017
      %v1146 = vunpack.c.h.b16 %v1017
      %v1147 = vunpack.c.l.b16 %v1018
      %v1148 = vunpack.c.h.b16 %v1018
      %v1149 = vunpack.c.l.b16 %v1019
      %v1150 = vunpack.c.l.b16 %v1020
      %v1151 = vunpack.c.h.b16 %v1020
      %v1152 = vunpack.c.l.b16 %v1021
      %v1153 = vunpack.c.h.b16 %v1021
      %v1154 = vunpack.c.l.b16 %v1022
      %v1155 = vunpack.c.l.b16 %v1023
      %v1156 = vunpack.c.h.b16 %v1023
      %v1157 = vunpack.c.l.b16 %v1024
      %v1158 = vunpack.c.h.b16 %v1024
      %v1159 = vunpack.c.l.b16 %v1025
      %v1160 = vunpack.c.l.b16 %v1026
      %v1161 = vunpack.c.h.b16 %v1026
      %v1162 = vunpack.c.l.b16 %v1027
      %v1163 = vunpack.c.h.b16 %v1027
      %v1164 = vunpack.c.l.b16 %v1028
      %v1165 = vunpack.c.l.b16 %v1029
      %v1166 = vunpack.c.h.b16 %v1029
      %v1167 = vunpack.c.l.b16 %v1030
      %v1168 = vunpack.c.h.b16 %v1030
      %v1169 = vunpack.c.l.b16 %v1031
      %v1170 = vunpack.c.l.b16 %v1032
      %v1171 = vunpack.c.h.b16 %v1032
      %v1172 = vunpack.c.l.b16 %v1033
      %v1173 = vunpack.c.h.b16 %v1033
      %v1174 = vunpack.c.l.b16 %v1034
      %v1175 = vpack.c.b16 %v1140, %v1135
      %v1176 = vpack.c.b16 %v1141, %v1136
      %v1177 = vpack.c.b16 %v1142, %v1137
      %v1178 = vpack.c.b16 %v1143, %v1138
      %v1179 = vpack.c.b16 %v1144, %v1139
      %v1180 = vpack.c.b16 %v1150, %v1145
      %v1181 = vpack.c.b16 %v1151, %v1146
      %v1182 = vpack.c.b16 %v1152, %v1147
      %v1183 = vpack.c.b16 %v1153, %v1148
      %v1184 = vpack.c.b16 %v1154, %v1149
      %v1185 = vpack.c.b16 %v1160, %v1155
      %v1186 = vpack.c.b16 %v1161, %v1156
      %v1187 = vpack.c.b16 %v1162, %v1157
      %v1188 = vpack.c.b16 %v1163, %v1158
      %v1189 = vpack.c.b16 %v1164, %v1159
      %v1190 = vpack.c.b16 %v1170, %v1165
      %v1191 = vpack.c.b16 %v1171, %v1166
      %v1192 = vpack.c.b16 %v1172, %v1167
      %v1193 = vpack.c.b16 %v1173, %v1168
      %v1194 = vpack.c.b16 %v1174, %v1169
      %v1283 = vunpack.c.l.b16 %v1035
      %v1284 = vunpack.c.l.b16 %v1036
      %v1285 = vunpack.c.l.b16 %v1037
      %v1286 = vunpack.c.l.b16 %v1038
      %v1287 = vunpack.c.l.b16 %v1039
      %v1288 = vunpack.c.l.b16 %v1040
      %v1289 = vunpack.c.l.b16 %v1041
      %v1290 = vunpack.c.l.b16 %v1042
      %v1291 = vunpack.c.l.b16 %v1043
      %v1292 = vunpack.c.l.b16 %v1044
      %v1293 = vunpack.c.l.b16 %v1045
      %v1294 = vunpack.c.l.b16 %v1046
      %v1295 = vunpack.c.l.b16 %v1047
      %v1296 = vunpack.c.l.b16 %v1048
      %v1297 = vunpack.c.l.b16 %v1049
      %v1298 = vunpack.c.l.b16 %v1050
      %v1299 = vunpack.c.l.b16 %v1051
      %v1300 = vunpack.c.l.b16 %v1052
      %v1301 = vunpack.c.l.b16 %v1053
      %v1302 = vunpack.c.l.b16 %v1054
      %v1303 = vunpack.c.l.b16 %v1055
      %v1304 = vunpack.c.l.b16 %v1056
      %v1305 = vunpack.c.l.b16 %v1057
      %v1306 = vunpack.c.l.b16 %v1058
      %v1307 = vunpack.c.l.b16 %v1059
      %v1308 = vunpack.c.l.b16 %v1060
      %v1309 = vunpack.c.l.b16 %v1061
      %v1310 = vunpack.c.l.b16 %v1062
      %v1311 = vunpack.c.l.b16 %v1063
      %v1312 = vunpack.c.l.b16 %v1064
      %v1313 = vunpack.c.l.b16 %v1065
      %v1314 = vunpack.c.l.b16 %v1066
      %v1315 = vunpack.c.l.b16 %v1067
      %v1316 = vunpack.c.l.b16 %v1068
      %v1317 = vunpack.c.l.b16 %v1069
      %v1318 = vunpack.c.l.b16 %v1070
      %v1319 = vunpack.c.l.b16 %v1071
      %v1320 = vunpack.c.l.b16 %v1072
      %v1321 = vunpack.c.l.b16 %v1073
      %v1322 = vunpack.c.l.b16 %v1074
      %v1323 = vunpack.c.l.b16 %v1075
      %v1324 = vunpack.c.l.b16 %v1076
      %v1325 = vunpack.c.l.b16 %v1077
      %v1326 = vunpack.c.l.b16 %v1078
      %v1327 = vunpack.c.l.b16 %v1079
      %v1328 = vunpack.c.l.b16 %v1080
      %v1329 = vunpack.c.l.b16 %v1081
      %v1330 = vunpack.c.l.b16 %v1082
      %v1331 = vunpack.c.l.b16 %v1083
      %v1332 = vunpack.c.l.b16 %v1084
      %v1333 = vunpack.c.l.b16 %v1085
      %v1334 = vunpack.c.l.b16 %v1086
      %v1335 = vunpack.c.l.b16 %v1087
      %v1336 = vunpack.c.l.b16 %v1088
      %v1337 = vunpack.c.l.b16 %v1089
      %v1338 = vunpack.c.l.b16 %v1090
      %v1339 = vunpack.c.l.b16 %v1091
      %v1340 = vunpack.c.l.b16 %v1092
      %v1341 = vunpack.c.l.b16 %v1093
      %v1342 = vunpack.c.l.b16 %v1094
      %v1343 = vunpack.c.l.b16 %v1095
      %v1344 = vunpack.c.l.b16 %v1096
      %v1345 = vunpack.c.l.b16 %v1097
      %v1346 = vunpack.c.l.b16 %v1098
      %v1347 = vunpack.c.l.b16 %v1099
      %v1348 = vunpack.c.l.b16 %v1100
      %v1349 = vunpack.c.l.b16 %v1101
      %v1350 = vunpack.c.l.b16 %v1102
      %v1351 = vunpack.c.l.b16 %v1103
      %v1352 = vunpack.c.l.b16 %v1104
      %v1353 = vunpack.c.l.b16 %v1105
      %v1354 = vunpack.c.l.b16 %v1106
      %v1355 = vpack.c.b16 %v1284, %v1283
      %v1356 = vpack.c.b16 %v1286, %v1285
      %v1357 = vpack.c.b16 %v1288, %v1287
      %v1358 = vpack.c.b16 %v1290, %v1289
      %v1359 = vpack.c.b16 %v1292, %v1291
      %v1360 = vpack.c.b16 %v1294, %v1293
      %v1361 = vpack.c.b16 %v1296, %v1295
      %v1362 = vpack.c.b16 %v1298, %v1297
      %v1363 = vpack.c.b16 %v1300, %v1299
      %v1364 = vpack.c.b16 %v1302, %v1301
      %v1365 = vpack.c.b16 %v1304, %v1303
      %v1366 = vpack.c.b16 %v1306, %v1305
      %v1367 = vpack.c.b16 %v1308, %v1307
      %v1368 = vpack.c.b16 %v1310, %v1309
      %v1369 = vpack.c.b16 %v1312, %v1311
      %v1370 = vpack.c.b16 %v1314, %v1313
      %v1371 = vpack.c.b16 %v1316, %v1315
      %v1372 = vpack.c.b16 %v1318, %v1317
      %v1373 = vpack.c.b16 %v1320, %v1319
      %v1374 = vpack.c.b16 %v1322, %v1321
      %v1375 = vpack.c.b16 %v1324, %v1323
      %v1376 = vpack.c.b16 %v1326, %v1325
      %v1377 = vpack.c.b16 %v1328, %v1327
      %v1378 = vpack.c.b16 %v1330, %v1329
      %v1379 = vpack.c.b16 %v1332, %v1331
      %v1380 = vpack.c.b16 %v1334, %v1333
      %v1381 = vpack.c.b16 %v1336, %v1335
      %v1382 = vpack.c.b16 %v1338, %v1337
      %v1383 = vpack.c.b16 %v1340, %v1339
      %v1384 = vpack.c.b16 %v1342, %v1341
      %v1385 = vpack.c.b16 %v1344, %v1343
      %v1386 = vpack.c.b16 %v1346, %v1345
      %v1387 = vpack.c.b16 %v1348, %v1347
      %v1388 = vpack.c.b16 %v1350, %v1349
      %v1389 = vpack.c.b16 %v1352, %v1351
      %v1390 = vpack.c.b16 %v1354, %v1353
      %vm1427 = vcmask 523264
      %v1429 = vsel %vm1427, %v1179, 0
      %v1432 = vsel %vm1427, %v1184, 0
      %v1435 = vsel %vm1427, %v1189, 0
      %v1438 = vsel %vm1427, %v1194, 0
      %1440 = vmatpush.bf16.msra.mxu0 %v1362
      %1441 = vmatpush.bf16.msra.mxu0 %v1361
      %1442 = vmatpush.bf16.msra.mxu0 %v1360
      %1443 = vmatpush.bf16.msra.mxu0 %v1359
      %1444 = vmatpush.bf16.msra.mxu0 %v1358
      %1445 = vmatpush.bf16.msra.mxu0 %v1357
      %1446 = vmatpush.bf16.msra.mxu0 %v1356
      %1447 = vmatpush.bf16.msra.mxu0 %v1355
      %1448 = vmatmul.bf16.gmra.mxu0 %v1175
      %v1449 = vpop.f32.mrf.mxu0
      %v1450 = vadd.f32 %v1109, %v1449
      %v1451 = vpop.f32.mrf.mxu0
      %v1452 = vadd.f32 %v1109, %v1451
      %1453 = vmatmul.bf16.gmra.mxu0 %v1180
      %v1454 = vpop.f32.mrf.mxu0
      %v1455 = vadd.f32 %v1109, %v1454
      %v1456 = vpop.f32.mrf.mxu0
      %v1457 = vadd.f32 %v1109, %v1456
      %1458 = vmatmul.bf16.gmra.mxu0 %v1185
      %v1459 = vpop.f32.mrf.mxu0
      %v1460 = vadd.f32 %v1109, %v1459
      %v1461 = vpop.f32.mrf.mxu0
      %v1462 = vadd.f32 %v1109, %v1461
      %1463 = vmatmul.bf16.gmra.mxu0 %v1190
      %v1464 = vpop.f32.mrf.mxu0
      %v1465 = vadd.f32 %v1109, %v1464
      %v1466 = vpop.f32.mrf.mxu0
      %v1467 = vadd.f32 %v1109, %v1466
      %1468 = vdwg.mxu0
      %1469 = vmatpush.bf16.msra.mxu0 %v1370
      %1470 = vmatpush.bf16.msra.mxu0 %v1369
      %1471 = vmatpush.bf16.msra.mxu0 %v1368
      %1472 = vmatpush.bf16.msra.mxu0 %v1367
      %1473 = vmatpush.bf16.msra.mxu0 %v1366
      %1474 = vmatpush.bf16.msra.mxu0 %v1365
      %1475 = vmatpush.bf16.msra.mxu0 %v1364
      %1476 = vmatpush.bf16.msra.mxu0 %v1363
      %1477 = vmatmul.bf16.gmra.mxu0 %v1176
      %v1478 = vpop.f32.mrf.mxu0
      %v1479 = vadd.f32 %v1450, %v1478
      %v1480 = vpop.f32.mrf.mxu0
      %v1481 = vadd.f32 %v1452, %v1480
      %1482 = vmatmul.bf16.gmra.mxu0 %v1181
      %v1483 = vpop.f32.mrf.mxu0
      %v1484 = vadd.f32 %v1455, %v1483
      %v1485 = vpop.f32.mrf.mxu0
      %v1486 = vadd.f32 %v1457, %v1485
      %1487 = vmatmul.bf16.gmra.mxu0 %v1186
      %v1488 = vpop.f32.mrf.mxu0
      %v1489 = vadd.f32 %v1460, %v1488
      %v1490 = vpop.f32.mrf.mxu0
      %v1491 = vadd.f32 %v1462, %v1490
      %1492 = vmatmul.bf16.gmra.mxu0 %v1191
      %v1493 = vpop.f32.mrf.mxu0
      %v1494 = vadd.f32 %v1465, %v1493
      %v1495 = vpop.f32.mrf.mxu0
      %v1496 = vadd.f32 %v1467, %v1495
      %1497 = vdwg.mxu0
      %1498 = vmatpush.bf16.msra.mxu0 %v1378
      %1499 = vmatpush.bf16.msra.mxu0 %v1377
      %1500 = vmatpush.bf16.msra.mxu0 %v1376
      %1501 = vmatpush.bf16.msra.mxu0 %v1375
      %1502 = vmatpush.bf16.msra.mxu0 %v1374
      %1503 = vmatpush.bf16.msra.mxu0 %v1373
      %1504 = vmatpush.bf16.msra.mxu0 %v1372
      %1505 = vmatpush.bf16.msra.mxu0 %v1371
      %1506 = vmatmul.bf16.gmra.mxu0 %v1177
      %v1507 = vpop.f32.mrf.mxu0
      %v1508 = vadd.f32 %v1479, %v1507
      %v1509 = vpop.f32.mrf.mxu0
      %v1510 = vadd.f32 %v1481, %v1509
      %1511 = vmatmul.bf16.gmra.mxu0 %v1182
      %v1512 = vpop.f32.mrf.mxu0
      %v1513 = vadd.f32 %v1484, %v1512
      %v1514 = vpop.f32.mrf.mxu0
      %v1515 = vadd.f32 %v1486, %v1514
      %1516 = vmatmul.bf16.gmra.mxu0 %v1187
      %v1517 = vpop.f32.mrf.mxu0
      %v1518 = vadd.f32 %v1489, %v1517
      %v1519 = vpop.f32.mrf.mxu0
      %v1520 = vadd.f32 %v1491, %v1519
      %1521 = vmatmul.bf16.gmra.mxu0 %v1192
      %v1522 = vpop.f32.mrf.mxu0
      %v1523 = vadd.f32 %v1494, %v1522
      %v1524 = vpop.f32.mrf.mxu0
      %v1525 = vadd.f32 %v1496, %v1524
      %1526 = vdwg.mxu0
      %1527 = vmatpush.bf16.msra.mxu0 %v1386
      %1528 = vmatpush.bf16.msra.mxu0 %v1385
      %1529 = vmatpush.bf16.msra.mxu0 %v1384
      %1530 = vmatpush.bf16.msra.mxu0 %v1383
      %1531 = vmatpush.bf16.msra.mxu0 %v1382
      %1532 = vmatpush.bf16.msra.mxu0 %v1381
      %1533 = vmatpush.bf16.msra.mxu0 %v1380
      %1534 = vmatpush.bf16.msra.mxu0 %v1379
      %1535 = vmatmul.bf16.gmra.mxu0 %v1178
      %v1536 = vpop.f32.mrf.mxu0
      %v1537 = vadd.f32 %v1508, %v1536
      %v1538 = vpop.f32.mrf.mxu0
      %v1539 = vadd.f32 %v1510, %v1538
      %1540 = vmatmul.bf16.gmra.mxu0 %v1183
      %v1541 = vpop.f32.mrf.mxu0
      %v1542 = vadd.f32 %v1513, %v1541
      %v1543 = vpop.f32.mrf.mxu0
      %v1544 = vadd.f32 %v1515, %v1543
      %1545 = vmatmul.bf16.gmra.mxu0 %v1188
      %v1546 = vpop.f32.mrf.mxu0
      %v1547 = vadd.f32 %v1518, %v1546
      %v1548 = vpop.f32.mrf.mxu0
      %v1549 = vadd.f32 %v1520, %v1548
      %1550 = vmatmul.bf16.gmra.mxu0 %v1193
      %v1551 = vpop.f32.mrf.mxu0
      %v1552 = vadd.f32 %v1523, %v1551
      %v1553 = vpop.f32.mrf.mxu0
      %v1554 = vadd.f32 %v1525, %v1553
      %1555 = vdwg.mxu0
      %1556 = vmatpush.bf16.msra.mxu0 0
      %1557 = vmatpush.bf16.msra.mxu0 0
      %1558 = vmatpush.bf16.msra.mxu0 0
      %1559 = vmatpush.bf16.msra.mxu0 0
      %1560 = vmatpush.bf16.msra.mxu0 %v1390
      %1561 = vmatpush.bf16.msra.mxu0 %v1389
      %1562 = vmatpush.bf16.msra.mxu0 %v1388
      %1563 = vmatpush.bf16.msra.mxu0 %v1387
      %1564 = vmatmul.bf16.gmra.mxu0 %v1429
      %v1565 = vpop.f32.mrf.mxu0
      %v1566 = vadd.f32 %v1537, %v1565
      %v1567 = vpop.f32.mrf.mxu0
      %v1568 = vadd.f32 %v1539, %v1567
      %1569 = vmatmul.bf16.gmra.mxu0 %v1432
      %v1570 = vpop.f32.mrf.mxu0
      %v1571 = vadd.f32 %v1542, %v1570
      %v1572 = vpop.f32.mrf.mxu0
      %v1573 = vadd.f32 %v1544, %v1572
      %1574 = vmatmul.bf16.gmra.mxu0 %v1435
      %v1575 = vpop.f32.mrf.mxu0
      %v1576 = vadd.f32 %v1547, %v1575
      %v1577 = vpop.f32.mrf.mxu0
      %v1578 = vadd.f32 %v1549, %v1577
      %1579 = vmatmul.bf16.gmra.mxu0 %v1438
      %v1580 = vpop.f32.mrf.mxu0
      %v1581 = vadd.f32 %v1552, %v1580
      %v1582 = vpop.f32.mrf.mxu0
      %v1583 = vadd.f32 %v1554, %v1582
      %1584 = vdwg.mxu0
      %vm1585 = vcmask 220160
      %1586 = vst.msk [vmem:[%s217] sm:$0xff] %vm1585, %v1566
      %1587 = vst.msk [vmem:[%s217 + $0x8] sm:$0xff] %vm1585, %v1568
      %1588 = vst.msk [vmem:[%s217 + $0x10] sm:$0xff] %vm1585, %v1571
      %1589 = vst.msk [vmem:[%s217 + $0x18] sm:$0xff] %vm1585, %v1573
      %1590 = vst.msk [vmem:[%s217 + $0x20] sm:$0xff] %vm1585, %v1576
      %1591 = vst.msk [vmem:[%s217 + $0x28] sm:$0xff] %vm1585, %v1578
      %1592 = vst.msk [vmem:[%s217 + $0x30] sm:$0xff] %vm1585, %v1581
      %1593 = vst.msk [vmem:[%s217 + $0x38] sm:$0xff] %vm1585, %v1583
      %p1594 = scmp.lt.s32.totalorder %s15, 1
      %s1595 = scalar_select %p1594, %s15, 1
      %s1596 = smul.addr %s1595, 8
      %s1597 = smul.addr %s1596, 8
      %s1598 = scalar_lea.vmem %s4, %s1597
      // Predicated region
      $region37: #{dgb_forward.6} parent=35 // pred_check
        %p1599 = pneg %p127
      $region38: #{dgb_forward.6} parent=35 // pred_check_branch
        %1601 = sbr.rel (%p1599) target = $region40
      $region39: #{dgb_forward.6} parent=35 // pred_region
        _
      $region40: #{dgb_forward.6} parent=35 // pred_fallthru
        _
    $region36: #{dgb_forward.6} parent=5 // pred_fallthru
      _
    %p1602 = scmp.le.s32.totalorder 2, %s10
    // Predicated region
    $region41: #{dgb_forward.6} parent=5 // pred_check
      %p1603 = pneg %p1602
    $region42: #{dgb_forward.6} parent=5 // pred_check_branch
      %1605 = sbr.rel (%p1603) target = $region44
    $region43: #{dgb_forward.6} parent=5 // pred_region
      %s1606 = ssub.s32 %s10, 2
      // Predicated region
      $region45: #{dgb_forward.6} parent=43 // pred_check
        %p1607 = pneg %p133
      $region46: #{dgb_forward.6} parent=43 // pred_check_branch
        %1609 = sbr.rel (%p1607) target = $region48
      $region47: #{dgb_forward.6} parent=43 // pred_region
        %p1610 = scmp.lt.s32.totalorder %s16, 1
        %s1611 = scalar_select %p1610, %s16, 1
        %s1612 = smul.addr %s1611, 8
        %s1613 = smul.addr %s1612, 8
        %s1614 = scalar_lea.vmem %s4, %s1613
      $region48: #{dgb_forward.6} parent=43 // pred_fallthru
        _
    $region44: #{dgb_forward.6} parent=5 // pred_fallthru
      _
  $region6: #{dgb_forward.6} parent=0 // loop_footer
    %s14 = sadd.s32 1, %s10
  $region7: #{dgb_forward.6} parent=0 // loop_footer_branch
    %9 = sbr.rel target = $region3
  $region8: #{dgb_forward.6} parent=0 // loop_exit
    _

// kernel: dgb_forward.8
$region0: #{dgb_forward.8}
  #allocation0 [shape = 'u32[]', space=smem, size = 0x4, offset = 0x4, fixed_abs, tag = 'smem constant byte address 0x4 - core index']
  #allocation1 [shape = 'u32[72,128]{1,0:T(1,128)}', space=vmem, size = 0x9000, scoped, tag = 'internal scratch']
  #allocation2 [shape = 'bf16[8,8,288]{2,1,0:T(8,128)(2,1)}', space=vmem, size = 0xc000, scoped, tag = 'scratch operand']
  %s0 = inlined_call_operand.vmem [shape: bf16[2,8,8,32], index: 0, kind: input, shape index: {}]
  %s1 = inlined_call_operand.vmem [shape: bf16[288,32], index: 1, kind: input, shape index: {}]
  %s2 = inlined_call_operand.vmem [shape: f32[1,32], index: 2, kind: input, shape index: {}]
  %s3 = inlined_call_operand.vmem [shape: bf16[2,64,32], index: 3, kind: output, shape index: {}]
  %s4 = sld [smem:[#allocation0]]
  $region45: #{dgb_forward.8} parent=0
    _
  %s6 = ssub.s32 1, %s4
  %s7 = scalar_select 0, %s6, %s4
  loop: start=0, step=1, limit=4
  $region2: #{dgb_forward.8} parent=0 // loop_pre_header
    _
  $region3: #{dgb_forward.8} parent=0 // loop_header
    %s9 = sphi 0, %s13
    %p10 = scmp.ge.s32.totalorder %s9, 4
    %s19 = sphi 0, %s21
    %s22 = sphi 0, %s19
    %s23 = sphi 0, %s22
    %s39 = sphi 0, %s23
    %s43 = sphi 0, %s43
    %s45 = sphi 0, %s43
    %s46 = sphi 0, %s45
    %s60 = sphi 0, %s46
    %s64 = sphi 0, %s64
    %s66 = sphi 0, %s64
    %s67 = sphi 0, %s66
    %s81 = sphi 0, %s67
    %s87 = sphi 0, %s89
    %s90 = sphi 0, %s87
    %s91 = sphi 0, %s90
    %s107 = sphi 0, %s91
  $region4: #{dgb_forward.8} parent=0 // loop_header_branch
    %12 = sbr.rel (%p10) target = $region8
  $region5: #{dgb_forward.8} parent=0 // loop_body
    %s14 = ssub.s32 %s9, 1
    %s15 = ssub.s32 %s9, 2
    %s16 = sadd.s32 %s9, 1
    %s17 = ssub.s32 %s9, %s16
    %p18 = scmp.eq.s32.totalorder %s17, 0
    %s20 = sadd.s32 %s19, 1
    %s21 = scalar_select %p18, %s19, %s20
    %p24 = pneg %p18
    %p25 = scmp.eq.s32.totalorder %s9, 1
    %p26 = por %p24, %p25
    %p27 = scmp.ne.s32.totalorder %s19, %s22
    %p28 = scmp.eq.s32.totalorder %s9, 0
    %p29 = por %p27, %p28
    %p30 = scmp.ne.s32.totalorder %s19, %s22
    %p31 = scmp.eq.s32.totalorder %s14, 1
    %p32 = por %p30, %p31
    %p33 = scmp.ne.s32.totalorder %s22, %s23
    %p34 = scmp.eq.s32.totalorder %s14, 0
    %p35 = por %p33, %p34
    %p36 = scmp.ne.s32.totalorder %s22, %s23
    %p37 = scmp.eq.s32.totalorder %s15, 1
    %p38 = por %p36, %p37
    %p40 = scmp.ne.s32.totalorder %s23, %s39
    %p41 = scmp.eq.s32.totalorder %s15, 0
    %p42 = por %p40, %p41
    %s44 = sadd.s32 %s43, 1
    %p47 = scmp.eq.s32.totalorder %s9, 1
    %p48 = scmp.ne.s32.totalorder %s43, %s45
    %p49 = scmp.eq.s32.totalorder %s9, 0
    %p50 = por %p48, %p49
    %p51 = scmp.ne.s32.totalorder %s43, %s45
    %p52 = scmp.eq.s32.totalorder %s14, 1
    %p53 = por %p51, %p52
    %p54 = scmp.ne.s32.totalorder %s45, %s46
    %p55 = scmp.eq.s32.totalorder %s14, 0
    %p56 = por %p54, %p55
    %p57 = scmp.ne.s32.totalorder %s45, %s46
    %p58 = scmp.eq.s32.totalorder %s15, 1
    %p59 = por %p57, %p58
    %p61 = scmp.ne.s32.totalorder %s46, %s60
    %p62 = scmp.eq.s32.totalorder %s15, 0
    %p63 = por %p61, %p62
    %s65 = sadd.s32 %s64, 1
    %p68 = scmp.eq.s32.totalorder %s9, 1
    %p69 = scmp.ne.s32.totalorder %s64, %s66
    %p70 = scmp.eq.s32.totalorder %s9, 0
    %p71 = por %p69, %p70
    %p72 = scmp.ne.s32.totalorder %s64, %s66
    %p73 = scmp.eq.s32.totalorder %s14, 1
    %p74 = por %p72, %p73
    %p75 = scmp.ne.s32.totalorder %s66, %s67
    %p76 = scmp.eq.s32.totalorder %s14, 0
    %p77 = por %p75, %p76
    %p78 = scmp.ne.s32.totalorder %s66, %s67
    %p79 = scmp.eq.s32.totalorder %s15, 1
    %p80 = por %p78, %p79
    %p82 = scmp.ne.s32.totalorder %s67, %s81
    %p83 = scmp.eq.s32.totalorder %s15, 0
    %p84 = por %p82, %p83
    %s85 = ssub.s32 %s9, %s16
    %p86 = scmp.eq.s32.totalorder %s85, 0
    %s88 = sadd.s32 %s87, 1
    %s89 = scalar_select %p86, %s87, %s88
    %p92 = pneg %p86
    %p93 = scmp.eq.s32.totalorder %s9, 1
    %p94 = por %p92, %p93
    %p95 = scmp.ne.s32.totalorder %s87, %s90
    %p96 = scmp.eq.s32.totalorder %s9, 0
    %p97 = por %p95, %p96
    %p98 = scmp.ne.s32.totalorder %s87, %s90
    %p99 = scmp.eq.s32.totalorder %s14, 1
    %p100 = por %p98, %p99
    %p101 = scmp.ne.s32.totalorder %s90, %s91
    %p102 = scmp.eq.s32.totalorder %s14, 0
    %p103 = por %p101, %p102
    %p104 = scmp.ne.s32.totalorder %s90, %s91
    %p105 = scmp.eq.s32.totalorder %s15, 1
    %p106 = por %p104, %p105
    %p108 = scmp.ne.s32.totalorder %s91, %s107
    %p109 = scmp.eq.s32.totalorder %s15, 0
    %p110 = por %p108, %p109
    %p111 = scmp.le.s32.totalorder 1, %s9
    %p112 = scmp.lt.s32.totalorder %s9, 3
    %p113 = pnand %p111, %p112
    %p114 = pneg %p113
    // Predicated region
    $region9: #{dgb_forward.8} parent=5 // pred_check
      _
    $region10: #{dgb_forward.8} parent=5 // pred_check_branch
      %116 = sbr.rel (%p113) target = $region12
    $region11: #{dgb_forward.8} parent=5 // pred_region
      %s117 = ssub.s32 %s9, 1
      // Predicated region
      $region13: #{dgb_forward.8} parent=11 // pred_check
        %p118 = pneg %p56
      $region14: #{dgb_forward.8} parent=11 // pred_check_branch
        %120 = sbr.rel (%p118) target = $region16
      $region15: #{dgb_forward.8} parent=11 // pred_region
        _
      $region16: #{dgb_forward.8} parent=11 // pred_fallthru
        _
      // Predicated region
      $region17: #{dgb_forward.8} parent=11 // pred_check
        %p121 = pneg %p77
      $region18: #{dgb_forward.8} parent=11 // pred_check_branch
        %123 = sbr.rel (%p121) target = $region20
      $region19: #{dgb_forward.8} parent=11 // pred_region
        _
      $region20: #{dgb_forward.8} parent=11 // pred_fallthru
        _
    $region12: #{dgb_forward.8} parent=5 // pred_fallthru
      _
    %p124 = scmp.lt.s32.totalorder %s9, 2
    // Predicated region
    $region21: #{dgb_forward.8} parent=5 // pred_check
      %p125 = pneg %p124
    $region22: #{dgb_forward.8} parent=5 // pred_check_branch
      %127 = sbr.rel (%p125) target = $region24
    $region23: #{dgb_forward.8} parent=5 // pred_region
      // Predicated region
      $region25: #{dgb_forward.8} parent=23 // pred_check
        %p128 = pneg %p29
      $region26: #{dgb_forward.8} parent=23 // pred_check_branch
        %130 = sbr.rel (%p128) target = $region28
      $region27: #{dgb_forward.8} parent=23 // pred_region
        %p131 = scmp.lt.s32.totalorder %s9, 1
        %s132 = scalar_select %p131, %s9, 1
        %s133 = smul.addr %s132, 8
        %s134 = smul.addr %s133, 4
        %s135 = scalar_lea.vmem %s0, %s134
      $region28: #{dgb_forward.8} parent=23 // pred_fallthru
        _
    $region24: #{dgb_forward.8} parent=5 // pred_fallthru
      _
    %p136 = scmp.le.s32.totalorder 1, %s9
    %p137 = scmp.lt.s32.totalorder %s9, 3
    %p138 = pnand %p136, %p137
    %p139 = pneg %p138
    // Predicated region
    $region29: #{dgb_forward.8} parent=5 // pred_check
      _
    $region30: #{dgb_forward.8} parent=5 // pred_check_branch
      %141 = sbr.rel (%p138) target = $region32
    $region31: #{dgb_forward.8} parent=5 // pred_region
      %s142 = ssub.s32 %s9, 1
      %p143 = scmp.lt.s32.totalorder %s14, 1
      %s144 = scalar_select %p143, %s14, 1
      %s145 = smul.addr %s144, 8
      %s146 = smul.addr %s145, 4
      %s147 = scalar_lea.vmem %s0, %s146
      %p148 = pneg %p35
      %p149 = pneg %p32
      %p150 = pneg %p56
      %p151 = pneg %p53
      %p152 = pneg %p77
      %p153 = pneg %p74
      %p154 = pneg %p103
      %p155 = pneg %p100
      %p156 = scmp.lt.s32.totalorder %s14, 1
      %s157 = scalar_select %p156, %s14, 1
      %s158 = smul.addr %s157, 8
      %s159 = smul.addr %s158, 4
      %s160 = scalar_lea.vmem %s3, %s159
      %p161 = scmp.lt.s32.totalorder %s14, 1
      %s162 = scalar_select %p161, %s14, 1
      %s163 = smul.addr %s162, 8
      %s164 = smul.addr %s163, 4
      %s165 = scalar_lea.vmem %s0, %s164
      %p166 = scmp.lt.s32.totalorder %s14, 1
      %s167 = scalar_select %p166, %s14, 1
      %s168 = smul.addr %s167, 8
      %s169 = smul.addr %s168, 4
      %s170 = scalar_lea.vmem %s3, %s169
      %172 = vst [vmem:[#allocation2] sm:$0xff] 0
      %vm173 = vcmask 257024
      %174 = vst.msk [vmem:[#allocation2 + $0x8] sm:$0xf] %vm173, 0
      %175 = vst [vmem:[#allocation2 + $0xc] sm:$0xff] 0
      %176 = vst.msk [vmem:[#allocation2 + $0x14] sm:$0xf] %vm173, 0
      %177 = vst [vmem:[#allocation2 + $0x18] sm:$0xff] 0
      %178 = vst.msk [vmem:[#allocation2 + $0x20] sm:$0xf] %vm173, 0
      %179 = vst [vmem:[#allocation2 + $0x24] sm:$0xff] 0
      %180 = vst.msk [vmem:[#allocation2 + $0x2c] sm:$0xf] %vm173, 0
      %181 = vst [vmem:[#allocation2 + $0x30] sm:$0xff] 0
      %182 = vst.msk [vmem:[#allocation2 + $0x38] sm:$0xf] %vm173, 0
      %183 = vst [vmem:[#allocation2 + $0x3c] sm:$0xff] 0
      %184 = vst.msk [vmem:[#allocation2 + $0x44] sm:$0xf] %vm173, 0
      %185 = vst [vmem:[#allocation2 + $0x48] sm:$0xff] 0
      %186 = vst.msk [vmem:[#allocation2 + $0x50] sm:$0xf] %vm173, 0
      %187 = vst [vmem:[#allocation2 + $0x54] sm:$0xff] 0
      %188 = vst.msk [vmem:[#allocation2 + $0x5c] sm:$0xf] %vm173, 0
      %v189 = vld [vmem:[%s165] sm:$0xf]
      %v190 = vld [vmem:[%s165 + $0x4] sm:$0xf]
      %v191 = vld [vmem:[%s165 + $0x8] sm:$0xf]
      %v192 = vld [vmem:[%s165 + $0xc] sm:$0xf]
      %v193 = vld [vmem:[%s165 + $0x10] sm:$0xf]
      %v194 = vld [vmem:[%s165 + $0x14] sm:$0xf]
      %v195 = vld [vmem:[%s165 + $0x18] sm:$0xf]
      %v196 = vld [vmem:[%s165 + $0x1c] sm:$0xf]
      %v198 = vshrl.u32 %v189, 16
      %v200 = vrot.slane %v198, 7
      %v201 = vshll.u32 %v189, 16
      %v203 = vor.u32 %v200, %v201
      %v205 = vshrl.u32 %v190, 16
      %v207 = vrot.slane %v205, 7
      %v208 = vshll.u32 %v190, 16
      %v210 = vor.u32 %v207, %v208
      %v212 = vshrl.u32 %v191, 16
      %v214 = vrot.slane %v212, 7
      %v215 = vshll.u32 %v191, 16
      %v217 = vor.u32 %v214, %v215
      %v219 = vshrl.u32 %v192, 16
      %v221 = vrot.slane %v219, 7
      %v222 = vshll.u32 %v192, 16
      %v224 = vor.u32 %v221, %v222
      %v226 = vshrl.u32 %v193, 16
      %v228 = vrot.slane %v226, 7
      %v229 = vshll.u32 %v193, 16
      %v231 = vor.u32 %v228, %v229
      %v233 = vshrl.u32 %v194, 16
      %v235 = vrot.slane %v233, 7
      %v236 = vshll.u32 %v194, 16
      %v238 = vor.u32 %v235, %v236
      %v240 = vshrl.u32 %v195, 16
      %v242 = vrot.slane %v240, 7
      %v243 = vshll.u32 %v195, 16
      %v245 = vor.u32 %v242, %v243
      %s253 = scalar_lea.vmem [#allocation2], 12
      %vm254 = vcmask 257024
      %vm255 = vsmask.f32 7938
      %vm256 = vmand %vm254, %vm255
      %v257 = vld [vmem:[%s253] sm:$0xf]
      %v258 = vsel %vm256, %v203, %v257
      %259 = vst [vmem:[%s253] sm:$0xf] %v258
      %v260 = vld [vmem:[%s253 + $0xc] sm:$0xf]
      %v261 = vsel %vm256, %v210, %v260
      %262 = vst [vmem:[%s253 + $0xc] sm:$0xf] %v261
      %v263 = vld [vmem:[%s253 + $0x18] sm:$0xf]
      %v264 = vsel %vm256, %v217, %v263
      %265 = vst [vmem:[%s253 + $0x18] sm:$0xf] %v264
      %v266 = vld [vmem:[%s253 + $0x24] sm:$0xf]
      %v267 = vsel %vm256, %v224, %v266
      %268 = vst [vmem:[%s253 + $0x24] sm:$0xf] %v267
      %v269 = vld [vmem:[%s253 + $0x30] sm:$0xf]
      %v270 = vsel %vm256, %v231, %v269
      %271 = vst [vmem:[%s253 + $0x30] sm:$0xf] %v270
      %v272 = vld [vmem:[%s253 + $0x3c] sm:$0xf]
      %v273 = vsel %vm256, %v238, %v272
      %274 = vst [vmem:[%s253 + $0x3c] sm:$0xf] %v273
      %v275 = vld [vmem:[%s253 + $0x48] sm:$0xf]
      %v276 = vsel %vm256, %v245, %v275
      %277 = vst [vmem:[%s253 + $0x48] sm:$0xf] %v276
      %285 = vrot.lane.b32.xlu0 %v189, 32
      %v286 = vpop.permute.xlu0 %285
      %287 = vrot.lane.b32.xlu0 %v190, 32
      %v288 = vpop.permute.xlu0 %287
      %289 = vrot.lane.b32.xlu0 %v191, 32
      %v290 = vpop.permute.xlu0 %289
      %291 = vrot.lane.b32.xlu0 %v192, 32
      %v292 = vpop.permute.xlu0 %291
      %293 = vrot.lane.b32.xlu0 %v193, 32
      %v294 = vpop.permute.xlu0 %293
      %295 = vrot.lane.b32.xlu0 %v194, 32
      %v296 = vpop.permute.xlu0 %295
      %297 = vrot.lane.b32.xlu0 %v195, 32
      %v298 = vpop.permute.xlu0 %297
      %vm306 = vcmask 519424
      %307 = vst.msk [vmem:[%s253] sm:$0xf] %vm306, %v286
      %308 = vst.msk [vmem:[%s253 + $0xc] sm:$0xf] %vm306, %v288
      %309 = vst.msk [vmem:[%s253 + $0x18] sm:$0xf] %vm306, %v290
      %310 = vst.msk [vmem:[%s253 + $0x24] sm:$0xf] %vm306, %v292
      %311 = vst.msk [vmem:[%s253 + $0x30] sm:$0xf] %vm306, %v294
      %312 = vst.msk [vmem:[%s253 + $0x3c] sm:$0xf] %vm306, %v296
      %313 = vst.msk [vmem:[%s253 + $0x48] sm:$0xf] %vm306, %v298
      %v314 = vrot.slane %v198, 4
      %v315 = vrot.slane %v201, 5
      %v316 = vor.u32 %v314, %v315
      %v317 = vrot.slane %v316, 4
      %v318 = vrot.slane %v205, 4
      %v319 = vrot.slane %v208, 5
      %v320 = vor.u32 %v318, %v319
      %v321 = vrot.slane %v320, 4
      %v322 = vrot.slane %v212, 4
      %v323 = vrot.slane %v215, 5
      %v324 = vor.u32 %v322, %v323
      %v325 = vrot.slane %v324, 4
      %v326 = vrot.slane %v219, 4
      %v327 = vrot.slane %v222, 5
      %v328 = vor.u32 %v326, %v327
      %v329 = vrot.slane %v328, 4
      %v330 = vrot.slane %v226, 4
      %v331 = vrot.slane %v229, 5
      %v332 = vor.u32 %v330, %v331
      %v333 = vrot.slane %v332, 4
      %v334 = vrot.slane %v233, 4
      %v335 = vrot.slane %v236, 5
      %v336 = vor.u32 %v334, %v335
      %v337 = vrot.slane %v336, 4
      %v338 = vrot.slane %v240, 4
      %v339 = vrot.slane %v243, 5
      %v340 = vor.u32 %v338, %v339
      %v341 = vrot.slane %v340, 4
      %342 = vrot.lane.b32.xlu0 %v317, 64
      %v343 = vpop.permute.xlu0 %342
      %344 = vrot.lane.b32.xlu0 %v321, 64
      %v345 = vpop.permute.xlu0 %344
      %346 = vrot.lane.b32.xlu0 %v325, 64
      %v347 = vpop.permute.xlu0 %346
      %348 = vrot.lane.b32.xlu0 %v329, 64
      %v349 = vpop.permute.xlu0 %348
      %350 = vrot.lane.b32.xlu0 %v333, 64
      %v351 = vpop.permute.xlu0 %350
      %352 = vrot.lane.b32.xlu0 %v337, 64
      %v353 = vpop.permute.xlu0 %352
      %354 = vrot.lane.b32.xlu0 %v341, 64
      %v355 = vpop.permute.xlu0 %354
      %vm363 = vcmask 781824
      %vm364 = vsmask.f32 3328
      %vm365 = vmand %vm363, %vm364
      %v366 = vld [vmem:[%s253] sm:$0xf]
      %v367 = vsel %vm365, %v343, %v366
      %368 = vst [vmem:[%s253] sm:$0xf] %v367
      %v369 = vld [vmem:[%s253 + $0xc] sm:$0xf]
      %v370 = vsel %vm365, %v345, %v369
      %371 = vst [vmem:[%s253 + $0xc] sm:$0xf] %v370
      %v372 = vld [vmem:[%s253 + $0x18] sm:$0xf]
      %v373 = vsel %vm365, %v347, %v372
      %374 = vst [vmem:[%s253 + $0x18] sm:$0xf] %v373
      %v375 = vld [vmem:[%s253 + $0x24] sm:$0xf]
      %v376 = vsel %vm365, %v349, %v375
      %377 = vst [vmem:[%s253 + $0x24] sm:$0xf] %v376
      %v378 = vld [vmem:[%s253 + $0x30] sm:$0xf]
      %v379 = vsel %vm365, %v351, %v378
      %380 = vst [vmem:[%s253 + $0x30] sm:$0xf] %v379
      %v381 = vld [vmem:[%s253 + $0x3c] sm:$0xf]
      %v382 = vsel %vm365, %v353, %v381
      %383 = vst [vmem:[%s253 + $0x3c] sm:$0xf] %v382
      %v384 = vld [vmem:[%s253 + $0x48] sm:$0xf]
      %v385 = vsel %vm365, %v355, %v384
      %386 = vst [vmem:[%s253 + $0x48] sm:$0xf] %v385
      %v388 = vshrl.u32 %v196, 16
      %v390 = vrot.slane %v388, 7
      %v391 = vshll.u32 %v196, 16
      %v393 = vor.u32 %v390, %v391
      %394 = vrot.lane.b32.xlu0 %v203, 96
      %v395 = vpop.permute.xlu0 %394
      %396 = vrot.lane.b32.xlu0 %v210, 96
      %v397 = vpop.permute.xlu0 %396
      %398 = vrot.lane.b32.xlu0 %v217, 96
      %v399 = vpop.permute.xlu0 %398
      %400 = vrot.lane.b32.xlu0 %v224, 96
      %v401 = vpop.permute.xlu0 %400
      %402 = vrot.lane.b32.xlu0 %v231, 96
      %v403 = vpop.permute.xlu0 %402
      %404 = vrot.lane.b32.xlu0 %v238, 96
      %v405 = vpop.permute.xlu0 %404
      %406 = vrot.lane.b32.xlu0 %v245, 96
      %v407 = vpop.permute.xlu0 %406
      %408 = vrot.lane.b32.xlu0 %v393, 96
      %v409 = vpop.permute.xlu0 %408
      %vm418 = vcmask 1044224
      %vm419 = vmand %vm418, %vm255
      %v420 = vld [vmem:[#allocation2] sm:$0xf]
      %v421 = vsel %vm419, %v395, %v420
      %422 = vst [vmem:[#allocation2] sm:$0xf] %v421
      %v423 = vld [vmem:[#allocation2 + $0xc] sm:$0xf]
      %v424 = vsel %vm419, %v397, %v423
      %425 = vst [vmem:[#allocation2 + $0xc] sm:$0xf] %v424
      %v426 = vld [vmem:[#allocation2 + $0x18] sm:$0xf]
      %v427 = vsel %vm419, %v399, %v426
      %428 = vst [vmem:[#allocation2 + $0x18] sm:$0xf] %v427
      %v429 = vld [vmem:[#allocation2 + $0x24] sm:$0xf]
      %v430 = vsel %vm419, %v401, %v429
      %431 = vst [vmem:[#allocation2 + $0x24] sm:$0xf] %v430
      %v432 = vld [vmem:[#allocation2 + $0x30] sm:$0xf]
      %v433 = vsel %vm419, %v403, %v432
      %434 = vst [vmem:[#allocation2 + $0x30] sm:$0xf] %v433
      %v435 = vld [vmem:[#allocation2 + $0x3c] sm:$0xf]
      %v436 = vsel %vm419, %v405, %v435
      %437 = vst [vmem:[#allocation2 + $0x3c] sm:$0xf] %v436
      %v438 = vld [vmem:[#allocation2 + $0x48] sm:$0xf]
      %v439 = vsel %vm419, %v407, %v438
      %440 = vst [vmem:[#allocation2 + $0x48] sm:$0xf] %v439
      %v441 = vld [vmem:[#allocation2 + $0x54] sm:$0xf]
      %v442 = vsel %vm419, %v409, %v441
      %443 = vst [vmem:[#allocation2 + $0x54] sm:$0xf] %v442
      %444 = vst.msk [vmem:[#allocation2 + $0x4] sm:$0xf] %vm173, %v189
      %445 = vst.msk [vmem:[#allocation2 + $0x10] sm:$0xf] %vm173, %v190
      %446 = vst.msk [vmem:[#allocation2 + $0x1c] sm:$0xf] %vm173, %v191
      %447 = vst.msk [vmem:[#allocation2 + $0x28] sm:$0xf] %vm173, %v192
      %448 = vst.msk [vmem:[#allocation2 + $0x34] sm:$0xf] %vm173, %v193
      %449 = vst.msk [vmem:[#allocation2 + $0x40] sm:$0xf] %vm173, %v194
      %450 = vst.msk [vmem:[#allocation2 + $0x4c] sm:$0xf] %vm173, %v195
      %451 = vst.msk [vmem:[#allocation2 + $0x58] sm:$0xf] %vm173, %v196
      %v452 = vrot.slane %v388, 4
      %v453 = vrot.slane %v391, 5
      %v454 = vor.u32 %v452, %v453
      %v455 = vrot.slane %v454, 4
      %456 = vrot.lane.b32.xlu0 %v317, 32
      %v457 = vpop.permute.xlu0 %456
      %458 = vrot.lane.b32.xlu0 %v321, 32
      %v459 = vpop.permute.xlu0 %458
      %460 = vrot.lane.b32.xlu0 %v325, 32
      %v461 = vpop.permute.xlu0 %460
      %462 = vrot.lane.b32.xlu0 %v329, 32
      %v463 = vpop.permute.xlu0 %462
      %464 = vrot.lane.b32.xlu0 %v333, 32
      %v465 = vpop.permute.xlu0 %464
      %466 = vrot.lane.b32.xlu0 %v337, 32
      %v467 = vpop.permute.xlu0 %466
      %468 = vrot.lane.b32.xlu0 %v341, 32
      %v469 = vpop.permute.xlu0 %468
      %470 = vrot.lane.b32.xlu0 %v455, 32
      %v471 = vpop.permute.xlu0 %470
      %vm480 = vcmask 519424
      %vm481 = vmand %vm480, %vm364
      %v482 = vld [vmem:[#allocation2 + $0x4] sm:$0xf]
      %v483 = vsel %vm481, %v457, %v482
      %484 = vst [vmem:[#allocation2 + $0x4] sm:$0xf] %v483
      %v485 = vld [vmem:[#allocation2 + $0x10] sm:$0xf]
      %v486 = vsel %vm481, %v459, %v485
      %487 = vst [vmem:[#allocation2 + $0x10] sm:$0xf] %v486
      %v488 = vld [vmem:[#allocation2 + $0x1c] sm:$0xf]
      %v489 = vsel %vm481, %v461, %v488
      %490 = vst [vmem:[#allocation2 + $0x1c] sm:$0xf] %v489
      %v491 = vld [vmem:[#allocation2 + $0x28] sm:$0xf]
      %v492 = vsel %vm481, %v463, %v491
      %493 = vst [vmem:[#allocation2 + $0x28] sm:$0xf] %v492
      %v494 = vld [vmem:[#allocation2 + $0x34] sm:$0xf]
      %v495 = vsel %vm481, %v465, %v494
      %496 = vst [vmem:[#allocation2 + $0x34] sm:$0xf] %v495
      %v497 = vld [vmem:[#allocation2 + $0x40] sm:$0xf]
      %v498 = vsel %vm481, %v467, %v497
      %499 = vst [vmem:[#allocation2 + $0x40] sm:$0xf] %v498
      %v500 = vld [vmem:[#allocation2 + $0x4c] sm:$0xf]
      %v501 = vsel %vm481, %v469, %v500
      %502 = vst [vmem:[#allocation2 + $0x4c] sm:$0xf] %v501
      %v503 = vld [vmem:[#allocation2 + $0x58] sm:$0xf]
      %v504 = vsel %vm481, %v471, %v503
      %505 = vst [vmem:[#allocation2 + $0x58] sm:$0xf] %v504
      %506 = vrot.lane.b32.xlu0 %v210, 64
      %v507 = vpop.permute.xlu0 %506
      %508 = vrot.lane.b32.xlu0 %v217, 64
      %v509 = vpop.permute.xlu0 %508
      %510 = vrot.lane.b32.xlu0 %v224, 64
      %v511 = vpop.permute.xlu0 %510
      %512 = vrot.lane.b32.xlu0 %v231, 64
      %v513 = vpop.permute.xlu0 %512
      %514 = vrot.lane.b32.xlu0 %v238, 64
      %v515 = vpop.permute.xlu0 %514
      %516 = vrot.lane.b32.xlu0 %v245, 64
      %v517 = vpop.permute.xlu0 %516
      %518 = vrot.lane.b32.xlu0 %v393, 64
      %v519 = vpop.permute.xlu0 %518
      %vm527 = vmand %vm363, %vm255
      %v528 = vld [vmem:[#allocation2 + $0x4] sm:$0xf]
      %v529 = vsel %vm527, %v507, %v528
      %530 = vst [vmem:[#allocation2 + $0x4] sm:$0xf] %v529
      %v531 = vld [vmem:[#allocation2 + $0x10] sm:$0xf]
      %v532 = vsel %vm527, %v509, %v531
      %533 = vst [vmem:[#allocation2 + $0x10] sm:$0xf] %v532
      %v534 = vld [vmem:[#allocation2 + $0x1c] sm:$0xf]
      %v535 = vsel %vm527, %v511, %v534
      %536 = vst [vmem:[#allocation2 + $0x1c] sm:$0xf] %v535
      %v537 = vld [vmem:[#allocation2 + $0x28] sm:$0xf]
      %v538 = vsel %vm527, %v513, %v537
      %539 = vst [vmem:[#allocation2 + $0x28] sm:$0xf] %v538
      %v540 = vld [vmem:[#allocation2 + $0x34] sm:$0xf]
      %v541 = vsel %vm527, %v515, %v540
      %542 = vst [vmem:[#allocation2 + $0x34] sm:$0xf] %v541
      %v543 = vld [vmem:[#allocation2 + $0x40] sm:$0xf]
      %v544 = vsel %vm527, %v517, %v543
      %545 = vst [vmem:[#allocation2 + $0x40] sm:$0xf] %v544
      %v546 = vld [vmem:[#allocation2 + $0x4c] sm:$0xf]
      %v547 = vsel %vm527, %v519, %v546
      %548 = vst [vmem:[#allocation2 + $0x4c] sm:$0xf] %v547
      %550 = vrot.lane.b32.xlu0 %v190, 96
      %v551 = vpop.permute.xlu0 %550
      %552 = vrot.lane.b32.xlu0 %v191, 96
      %v553 = vpop.permute.xlu0 %552
      %554 = vrot.lane.b32.xlu0 %v192, 96
      %v555 = vpop.permute.xlu0 %554
      %556 = vrot.lane.b32.xlu0 %v193, 96
      %v557 = vpop.permute.xlu0 %556
      %558 = vrot.lane.b32.xlu0 %v194, 96
      %v559 = vpop.permute.xlu0 %558
      %560 = vrot.lane.b32.xlu0 %v195, 96
      %v561 = vpop.permute.xlu0 %560
      %562 = vrot.lane.b32.xlu0 %v196, 96
      %v563 = vpop.permute.xlu0 %562
      %vm571 = vcmask 1044224
      %572 = vst.msk [vmem:[#allocation2 + $0x4] sm:$0xf] %vm571, %v551
      %573 = vst.msk [vmem:[#allocation2 + $0x10] sm:$0xf] %vm571, %v553
      %574 = vst.msk [vmem:[#allocation2 + $0x1c] sm:$0xf] %vm571, %v555
      %575 = vst.msk [vmem:[#allocation2 + $0x28] sm:$0xf] %vm571, %v557
      %576 = vst.msk [vmem:[#allocation2 + $0x34] sm:$0xf] %vm571, %v559
      %577 = vst.msk [vmem:[#allocation2 + $0x40] sm:$0xf] %vm571, %v561
      %578 = vst.msk [vmem:[#allocation2 + $0x4c] sm:$0xf] %vm571, %v563
      %vm586 = vmand %vm254, %vm364
      %v587 = vld [vmem:[#allocation2 + $0x8] sm:$0xf]
      %v588 = vsel %vm586, %v321, %v587
      %589 = vst [vmem:[#allocation2 + $0x8] sm:$0xf] %v588
      %v590 = vld [vmem:[#allocation2 + $0x14] sm:$0xf]
      %v591 = vsel %vm586, %v325, %v590
      %592 = vst [vmem:[#allocation2 + $0x14] sm:$0xf] %v591
      %v593 = vld [vmem:[#allocation2 + $0x20] sm:$0xf]
      %v594 = vsel %vm586, %v329, %v593
      %595 = vst [vmem:[#allocation2 + $0x20] sm:$0xf] %v594
      %v596 = vld [vmem:[#allocation2 + $0x2c] sm:$0xf]
      %v597 = vsel %vm586, %v333, %v596
      %598 = vst [vmem:[#allocation2 + $0x2c] sm:$0xf] %v597
      %v599 = vld [vmem:[#allocation2 + $0x38] sm:$0xf]
      %v600 = vsel %vm586, %v337, %v599
      %601 = vst [vmem:[#allocation2 + $0x38] sm:$0xf] %v600
      %v602 = vld [vmem:[#allocation2 + $0x44] sm:$0xf]
      %v603 = vsel %vm586, %v341, %v602
      %604 = vst [vmem:[#allocation2 + $0x44] sm:$0xf] %v603
      %v605 = vld [vmem:[#allocation2 + $0x50] sm:$0xf]
      %v606 = vsel %vm586, %v455, %v605
      %607 = vst [vmem:[#allocation2 + $0x50] sm:$0xf] %v606
      %v608 = vld [vmem:[#allocation2] sm:$0xff]
      %v609 = vld [vmem:[#allocation2 + $0x8] sm:$0xf]
      %v610 = vld [vmem:[#allocation2 + $0xc] sm:$0xff]
      %v611 = vld [vmem:[#allocation2 + $0x14] sm:$0xf]
      %v612 = vld [vmem:[#allocation2 + $0x18] sm:$0xff]
      %v613 = vld [vmem:[#allocation2 + $0x20] sm:$0xf]
      %v614 = vld [vmem:[#allocation2 + $0x24] sm:$0xff]
      %v615 = vld [vmem:[#allocation2 + $0x2c] sm:$0xf]
      %v616 = vld [vmem:[#allocation2 + $0x30] sm:$0xff]
      %v617 = vld [vmem:[#allocation2 + $0x38] sm:$0xf]
      %v618 = vld [vmem:[#allocation2 + $0x3c] sm:$0xff]
      %v619 = vld [vmem:[#allocation2 + $0x44] sm:$0xf]
      %v620 = vld [vmem:[#allocation2 + $0x48] sm:$0xff]
      %v621 = vld [vmem:[#allocation2 + $0x50] sm:$0xf]
      %v622 = vld [vmem:[#allocation2 + $0x54] sm:$0xff]
      %v623 = vld [vmem:[#allocation2 + $0x5c] sm:$0xf]
      %v624 = vld [vmem:[%s1] sm:$0xf]
      %v625 = vld [vmem:[%s1 + $0x4] sm:$0xf]
      %v626 = vld [vmem:[%s1 + $0x8] sm:$0xf]
      %v627 = vld [vmem:[%s1 + $0xc] sm:$0xf]
      %v628 = vld [vmem:[%s1 + $0x10] sm:$0xf]
      %v629 = vld [vmem:[%s1 + $0x14] sm:$0xf]
      %v630 = vld [vmem:[%s1 + $0x18] sm:$0xf]
      %v631 = vld [vmem:[%s1 + $0x1c] sm:$0xf]
      %v632 = vld [vmem:[%s1 + $0x20] sm:$0xf]
      %v633 = vld [vmem:[%s1 + $0x24] sm:$0xf]
      %v634 = vld [vmem:[%s1 + $0x28] sm:$0xf]
      %v635 = vld [vmem:[%s1 + $0x2c] sm:$0xf]
      %v636 = vld [vmem:[%s1 + $0x30] sm:$0xf]
      %v637 = vld [vmem:[%s1 + $0x34] sm:$0xf]
      %v638 = vld [vmem:[%s1 + $0x38] sm:$0xf]
      %v639 = vld [vmem:[%s1 + $0x3c] sm:$0xf]
      %v640 = vld [vmem:[%s1 + $0x40] sm:$0xf]
      %v641 = vld [vmem:[%s1 + $0x44] sm:$0xf]
      %v642 = vld [vmem:[%s1 + $0x48] sm:$0xf]
      %v643 = vld [vmem:[%s1 + $0x4c] sm:$0xf]
      %v644 = vld [vmem:[%s1 + $0x50] sm:$0xf]
      %v645 = vld [vmem:[%s1 + $0x54] sm:$0xf]
      %v646 = vld [vmem:[%s1 + $0x58] sm:$0xf]
      %v647 = vld [vmem:[%s1 + $0x5c] sm:$0xf]
      %v648 = vld [vmem:[%s1 + $0x60] sm:$0xf]
      %v649 = vld [vmem:[%s1 + $0x64] sm:$0xf]
      %v650 = vld [vmem:[%s1 + $0x68] sm:$0xf]
      %v651 = vld [vmem:[%s1 + $0x6c] sm:$0xf]
      %v652 = vld [vmem:[%s1 + $0x70] sm:$0xf]
      %v653 = vld [vmem:[%s1 + $0x74] sm:$0xf]
      %v654 = vld [vmem:[%s1 + $0x78] sm:$0xf]
      %v655 = vld [vmem:[%s1 + $0x7c] sm:$0xf]
      %v656 = vld [vmem:[%s1 + $0x80] sm:$0xf]
      %v657 = vld [vmem:[%s1 + $0x84] sm:$0xf]
      %v658 = vld [vmem:[%s1 + $0x88] sm:$0xf]
      %v659 = vld [vmem:[%s1 + $0x8c] sm:$0xf]
      %v660 = vld [vmem:[%s2] sm:$0x1]
      %v662 = vperm.slane %v660, 0
      %v680 = vunpack.c.l.b16 %v608
      %v681 = vunpack.c.h.b16 %v608
      %v682 = vunpack.c.l.b16 %v609
      %v683 = vunpack.c.l.b16 %v610
      %v684 = vunpack.c.h.b16 %v610
      %v685 = vunpack.c.l.b16 %v611
      %v686 = vunpack.c.l.b16 %v612
      %v687 = vunpack.c.h.b16 %v612
      %v688 = vunpack.c.l.b16 %v613
      %v689 = vunpack.c.l.b16 %v614
      %v690 = vunpack.c.h.b16 %v614
      %v691 = vunpack.c.l.b16 %v615
      %v692 = vunpack.c.l.b16 %v616
      %v693 = vunpack.c.h.b16 %v616
      %v694 = vunpack.c.l.b16 %v617
      %v695 = vunpack.c.l.b16 %v618
      %v696 = vunpack.c.h.b16 %v618
      %v697 = vunpack.c.l.b16 %v619
      %v698 = vunpack.c.l.b16 %v620
      %v699 = vunpack.c.h.b16 %v620
      %v700 = vunpack.c.l.b16 %v621
      %v701 = vunpack.c.l.b16 %v622
      %v702 = vunpack.c.h.b16 %v622
      %v703 = vunpack.c.l.b16 %v623
      %v704 = vpack.c.b16 %v683, %v680
      %v705 = vpack.c.b16 %v684, %v681
      %v706 = vpack.c.b16 %v685, %v682
      %v707 = vpack.c.b16 %v689, %v686
      %v708 = vpack.c.b16 %v690, %v687
      %v709 = vpack.c.b16 %v691, %v688
      %v710 = vpack.c.b16 %v695, %v692
      %v711 = vpack.c.b16 %v696, %v693
      %v712 = vpack.c.b16 %v697, %v694
      %v713 = vpack.c.b16 %v701, %v698
      %v714 = vpack.c.b16 %v702, %v699
      %v715 = vpack.c.b16 %v703, %v700
      %v760 = vunpack.c.l.b16 %v624
      %v761 = vunpack.c.l.b16 %v625
      %v762 = vunpack.c.l.b16 %v626
      %v763 = vunpack.c.l.b16 %v627
      %v764 = vunpack.c.l.b16 %v628
      %v765 = vunpack.c.l.b16 %v629
      %v766 = vunpack.c.l.b16 %v630
      %v767 = vunpack.c.l.b16 %v631
      %v768 = vunpack.c.l.b16 %v632
      %v769 = vunpack.c.l.b16 %v633
      %v770 = vunpack.c.l.b16 %v634
      %v771 = vunpack.c.l.b16 %v635
      %v772 = vunpack.c.l.b16 %v636
      %v773 = vunpack.c.l.b16 %v637
      %v774 = vunpack.c.l.b16 %v638
      %v775 = vunpack.c.l.b16 %v639
      %v776 = vunpack.c.l.b16 %v640
      %v777 = vunpack.c.l.b16 %v641
      %v778 = vunpack.c.l.b16 %v642
      %v779 = vunpack.c.l.b16 %v643
      %v780 = vunpack.c.l.b16 %v644
      %v781 = vunpack.c.l.b16 %v645
      %v782 = vunpack.c.l.b16 %v646
      %v783 = vunpack.c.l.b16 %v647
      %v784 = vunpack.c.l.b16 %v648
      %v785 = vunpack.c.l.b16 %v649
      %v786 = vunpack.c.l.b16 %v650
      %v787 = vunpack.c.l.b16 %v651
      %v788 = vunpack.c.l.b16 %v652
      %v789 = vunpack.c.l.b16 %v653
      %v790 = vunpack.c.l.b16 %v654
      %v791 = vunpack.c.l.b16 %v655
      %v792 = vunpack.c.l.b16 %v656
      %v793 = vunpack.c.l.b16 %v657
      %v794 = vunpack.c.l.b16 %v658
      %v795 = vunpack.c.l.b16 %v659
      %v796 = vpack.c.b16 %v761, %v760
      %v797 = vpack.c.b16 %v763, %v762
      %v798 = vpack.c.b16 %v765, %v764
      %v799 = vpack.c.b16 %v767, %v766
      %v800 = vpack.c.b16 %v769, %v768
      %v801 = vpack.c.b16 %v771, %v770
      %v802 = vpack.c.b16 %v773, %v772
      %v803 = vpack.c.b16 %v775, %v774
      %v804 = vpack.c.b16 %v777, %v776
      %v805 = vpack.c.b16 %v779, %v778
      %v806 = vpack.c.b16 %v781, %v780
      %v807 = vpack.c.b16 %v783, %v782
      %v808 = vpack.c.b16 %v785, %v784
      %v809 = vpack.c.b16 %v787, %v786
      %v810 = vpack.c.b16 %v789, %v788
      %v811 = vpack.c.b16 %v791, %v790
      %v812 = vpack.c.b16 %v793, %v792
      %v813 = vpack.c.b16 %v795, %v794
      %vm832 = vcmask 261120
      %v834 = vsel %vm832, %v706, 0
      %v837 = vsel %vm832, %v709, 0
      %v840 = vsel %vm832, %v712, 0
      %v843 = vsel %vm832, %v715, 0
      %845 = vmatpush.bf16.msra.mxu0 %v803
      %846 = vmatpush.bf16.msra.mxu0 %v802
      %847 = vmatpush.bf16.msra.mxu0 %v801
      %848 = vmatpush.bf16.msra.mxu0 %v800
      %849 = vmatpush.bf16.msra.mxu0 %v799
      %850 = vmatpush.bf16.msra.mxu0 %v798
      %851 = vmatpush.bf16.msra.mxu0 %v797
      %852 = vmatpush.bf16.msra.mxu0 %v796
      %853 = vmatmul.bf16.gmra.mxu0 %v704
      %v854 = vpop.f32.mrf.mxu0
      %v855 = vadd.f32 %v662, %v854
      %v856 = vpop.f32.mrf.mxu0
      %v857 = vadd.f32 %v662, %v856
      %858 = vmatmul.bf16.gmra.mxu0 %v707
      %v859 = vpop.f32.mrf.mxu0
      %v860 = vadd.f32 %v662, %v859
      %v861 = vpop.f32.mrf.mxu0
      %v862 = vadd.f32 %v662, %v861
      %863 = vmatmul.bf16.gmra.mxu0 %v710
      %v864 = vpop.f32.mrf.mxu0
      %v865 = vadd.f32 %v662, %v864
      %v866 = vpop.f32.mrf.mxu0
      %v867 = vadd.f32 %v662, %v866
      %868 = vmatmul.bf16.gmra.mxu0 %v713
      %v869 = vpop.f32.mrf.mxu0
      %v870 = vadd.f32 %v662, %v869
      %v871 = vpop.f32.mrf.mxu0
      %v872 = vadd.f32 %v662, %v871
      %873 = vdwg.mxu0
      %874 = vmatpush.bf16.msra.mxu0 %v811
      %875 = vmatpush.bf16.msra.mxu0 %v810
      %876 = vmatpush.bf16.msra.mxu0 %v809
      %877 = vmatpush.bf16.msra.mxu0 %v808
      %878 = vmatpush.bf16.msra.mxu0 %v807
      %879 = vmatpush.bf16.msra.mxu0 %v806
      %880 = vmatpush.bf16.msra.mxu0 %v805
      %881 = vmatpush.bf16.msra.mxu0 %v804
      %882 = vmatmul.bf16.gmra.mxu0 %v705
      %v883 = vpop.f32.mrf.mxu0
      %v884 = vadd.f32 %v855, %v883
      %v885 = vpop.f32.mrf.mxu0
      %v886 = vadd.f32 %v857, %v885
      %887 = vmatmul.bf16.gmra.mxu0 %v708
      %v888 = vpop.f32.mrf.mxu0
      %v889 = vadd.f32 %v860, %v888
      %v890 = vpop.f32.mrf.mxu0
      %v891 = vadd.f32 %v862, %v890
      %892 = vmatmul.bf16.gmra.mxu0 %v711
      %v893 = vpop.f32.mrf.mxu0
      %v894 = vadd.f32 %v865, %v893
      %v895 = vpop.f32.mrf.mxu0
      %v896 = vadd.f32 %v867, %v895
      %897 = vmatmul.bf16.gmra.mxu0 %v714
      %v898 = vpop.f32.mrf.mxu0
      %v899 = vadd.f32 %v870, %v898
      %v900 = vpop.f32.mrf.mxu0
      %v901 = vadd.f32 %v872, %v900
      %902 = vdwg.mxu0
      %903 = vmatpush.bf16.msra.mxu0 0
      %904 = vmatpush.bf16.msra.mxu0 0
      %905 = vmatpush.bf16.msra.mxu0 0
      %906 = vmatpush.bf16.msra.mxu0 0
      %907 = vmatpush.bf16.msra.mxu0 0
      %908 = vmatpush.bf16.msra.mxu0 0
      %909 = vmatpush.bf16.msra.mxu0 %v813
      %910 = vmatpush.bf16.msra.mxu0 %v812
      %911 = vmatmul.bf16.gmra.mxu0 %v834
      %v912 = vpop.f32.mrf.mxu0
      %v913 = vadd.f32 %v884, %v912
      %v914 = vpop.f32.mrf.mxu0
      %v915 = vadd.f32 %v886, %v914
      %916 = vmatmul.bf16.gmra.mxu0 %v837
      %v917 = vpop.f32.mrf.mxu0
      %v918 = vadd.f32 %v889, %v917
      %v919 = vpop.f32.mrf.mxu0
      %v920 = vadd.f32 %v891, %v919
      %921 = vmatmul.bf16.gmra.mxu0 %v840
      %v922 = vpop.f32.mrf.mxu0
      %v923 = vadd.f32 %v894, %v922
      %v924 = vpop.f32.mrf.mxu0
      %v925 = vadd.f32 %v896, %v924
      %926 = vmatmul.bf16.gmra.mxu0 %v843
      %v927 = vpop.f32.mrf.mxu0
      %v928 = vadd.f32 %v899, %v927
      %v929 = vpop.f32.mrf.mxu0
      %v930 = vadd.f32 %v901, %v929
      %931 = vdwg.mxu0
      %vm932 = vcmp.ge.f32.partialorder %v913, 0.0
      %vm933 = vcmp.ge.f32.partialorder %v915, 0.0
      %vm934 = vcmp.ge.f32.partialorder %v918, 0.0
      %vm935 = vcmp.ge.f32.partialorder %v920, 0.0
      %vm936 = vcmp.ge.f32.partialorder %v923, 0.0
      %vm937 = vcmp.ge.f32.partialorder %v925, 0.0
      %vm938 = vcmp.ge.f32.partialorder %v928, 0.0
      %vm939 = vcmp.ge.f32.partialorder %v930, 0.0
      %v940 = vmul.f32 %v913, 0.1
      %v941 = vmul.f32 %v915, 0.1
      %v942 = vmul.f32 %v918, 0.1
      %v943 = vmul.f32 %v920, 0.1
      %v944 = vmul.f32 %v923, 0.1
      %v945 = vmul.f32 %v925, 0.1
      %v946 = vmul.f32 %v928, 0.1
      %v947 = vmul.f32 %v930, 0.1
      %v948 = vsel %vm932, %v913, %v940
      %v949 = vsel %vm933, %v915, %v941
      %v950 = vsel %vm934, %v918, %v942
      %v951 = vsel %vm935, %v920, %v943
      %v952 = vsel %vm936, %v923, %v944
      %v953 = vsel %vm937, %v925, %v945
      %v954 = vsel %vm938, %v928, %v946
      %v955 = vsel %vm939, %v930, %v947
      %v956 = vpack.c.bf16 %v948, %v948
      %v957 = vpack.c.bf16 %v949, %v949
      %v958 = vpack.c.bf16 %v950, %v950
      %v959 = vpack.c.bf16 %v951, %v951
      %v960 = vpack.c.bf16 %v952, %v952
      %v961 = vpack.c.bf16 %v953, %v953
      %v962 = vpack.c.bf16 %v954, %v954
      %v963 = vpack.c.bf16 %v955, %v955
      %964 = vst.msk [vmem:[%s170] sm:$0xf] %vm173, %v956
      %965 = vst.msk [vmem:[%s170 + $0x4] sm:$0xf] %vm173, %v957
      %966 = vst.msk [vmem:[%s170 + $0x8] sm:$0xf] %vm173, %v958
      %967 = vst.msk [vmem:[%s170 + $0xc] sm:$0xf] %vm173, %v959
      %968 = vst.msk [vmem:[%s170 + $0x10] sm:$0xf] %vm173, %v960
      %969 = vst.msk [vmem:[%s170 + $0x14] sm:$0xf] %vm173, %v961
      %970 = vst.msk [vmem:[%s170 + $0x18] sm:$0xf] %vm173, %v962
      %971 = vst.msk [vmem:[%s170 + $0x1c] sm:$0xf] %vm173, %v963
      %p972 = scmp.lt.s32.totalorder %s14, 1
      %s973 = scalar_select %p972, %s14, 1
      %s974 = smul.addr %s973, 8
      %s975 = smul.addr %s974, 4
      %s976 = scalar_lea.vmem %s3, %s975
      // Predicated region
      $region33: #{dgb_forward.8} parent=31 // pred_check
        %p977 = pneg %p100
      $region34: #{dgb_forward.8} parent=31 // pred_check_branch
        %979 = sbr.rel (%p977) target = $region36
      $region35: #{dgb_forward.8} parent=31 // pred_region
        _
      $region36: #{dgb_forward.8} parent=31 // pred_fallthru
        _
    $region32: #{dgb_forward.8} parent=5 // pred_fallthru
      _
    %p980 = scmp.le.s32.totalorder 2, %s9
    // Predicated region
    $region37: #{dgb_forward.8} parent=5 // pred_check
      %p981 = pneg %p980
    $region38: #{dgb_forward.8} parent=5 // pred_check_branch
      %983 = sbr.rel (%p981) target = $region40
    $region39: #{dgb_forward.8} parent=5 // pred_region
      %s984 = ssub.s32 %s9, 2
      // Predicated region
      $region41: #{dgb_forward.8} parent=39 // pred_check
        %p985 = pneg %p106
      $region42: #{dgb_forward.8} parent=39 // pred_check_branch
        %987 = sbr.rel (%p985) target = $region44
      $region43: #{dgb_forward.8} parent=39 // pred_region
        %p988 = scmp.lt.s32.totalorder %s15, 1
        %s989 = scalar_select %p988, %s15, 1
        %s990 = smul.addr %s989, 8
        %s991 = smul.addr %s990, 4
        %s992 = scalar_lea.vmem %s3, %s991
      $region44: #{dgb_forward.8} parent=39 // pred_fallthru
        _
    $region40: #{dgb_forward.8} parent=5 // pred_fallthru
      _
  $region6: #{dgb_forward.8} parent=0 // loop_footer
    %s13 = sadd.s32 1, %s9
  $region7: #{dgb_forward.8} parent=0 // loop_footer_branch
    %8 = sbr.rel target = $region3
  $region8: #{dgb_forward.8} parent=0 // loop_exit
    _

// kernel: dgb_forward.7
$region0: #{dgb_forward.7}
  #allocation0 [shape = 'u32[]', space=smem, size = 0x4, offset = 0x4, fixed_abs, tag = 'smem constant byte address 0x4 - core index']
  #allocation1 [shape = 'u32[72,128]{1,0:T(1,128)}', space=vmem, size = 0x9000, scoped, tag = 'internal scratch']
  %s0 = inlined_call_operand.vmem [shape: bf16[2,64,32], index: 0, kind: input, shape index: {}]
  %s1 = inlined_call_operand.vmem [shape: bf16[2,64,32], index: 1, kind: input, shape index: {}]
  %s2 = inlined_call_operand.vmem [shape: bf16[2,64,288], index: 2, kind: input, shape index: {}]
  %s3 = inlined_call_operand.vmem [shape: bf16[2,1,512], index: 3, kind: input, shape index: {}]
  %s4 = inlined_call_operand.vmem [shape: bf16[288,32], index: 4, kind: input, shape index: {}]
  %s5 = inlined_call_operand.vmem [shape: bf16[32,64], index: 5, kind: input, shape index: {}]
  %s6 = inlined_call_operand.vmem [shape: bf16[64,64], index: 6, kind: input, shape index: {}]
  %s7 = inlined_call_operand.vmem [shape: bf16[512,32], index: 7, kind: input, shape index: {}]
  %s8 = inlined_call_operand.vmem [shape: f32[1,32], index: 8, kind: input, shape index: {}]
  %s9 = inlined_call_operand.vmem [shape: bf16[32,32], index: 9, kind: input, shape index: {}]
  %s10 = inlined_call_operand.vmem [shape: f32[1,32], index: 10, kind: input, shape index: {}]
  %s11 = inlined_call_operand.vmem [shape: bf16[32,32], index: 11, kind: input, shape index: {}]
  %s12 = inlined_call_operand.vmem [shape: f32[1,32], index: 12, kind: input, shape index: {}]
  %s13 = inlined_call_operand.vmem [shape: bf16[32,64], index: 13, kind: input, shape index: {}]
  %s14 = inlined_call_operand.vmem [shape: f32[1,64], index: 14, kind: input, shape index: {}]
  %s15 = inlined_call_operand.vmem [shape: bf16[32,32], index: 15, kind: input, shape index: {}]
  %s16 = inlined_call_operand.vmem [shape: f32[1,32], index: 16, kind: input, shape index: {}]
  %s17 = inlined_call_operand.vmem [shape: bf16[32,8], index: 17, kind: input, shape index: {}]
  %s18 = inlined_call_operand.vmem [shape: f32[8,32], index: 18, kind: input, shape index: {}]
  %s19 = inlined_call_operand.vmem [shape: bf16[2,64,32], index: 19, kind: output, shape index: {}]
  %s20 = sld [smem:[#allocation0]]
  $region109: #{dgb_forward.7} parent=0
    _
  %s22 = ssub.s32 1, %s20
  %s23 = scalar_select 0, %s22, %s20
  loop: start=0, step=1, limit=4
  $region2: #{dgb_forward.7} parent=0 // loop_pre_header
    _
  $region3: #{dgb_forward.7} parent=0 // loop_header
    %s25 = sphi 0, %s29
    %p26 = scmp.ge.s32.totalorder %s25, 4
    %s35 = sphi 0, %s37
    %s38 = sphi 0, %s35
    %s39 = sphi 0, %s38
    %s55 = sphi 0, %s39
    %s61 = sphi 0, %s63
    %s64 = sphi 0, %s61
    %s65 = sphi 0, %s64
    %s81 = sphi 0, %s65
    %s87 = sphi 0, %s89
    %s90 = sphi 0, %s87
    %s91 = sphi 0, %s90
    %s107 = sphi 0, %s91
    %s113 = sphi 0, %s115
    %s116 = sphi 0, %s113
    %s117 = sphi 0, %s116
    %s133 = sphi 0, %s117
    %s137 = sphi 0, %s137
    %s139 = sphi 0, %s137
    %s140 = sphi 0, %s139
    %s154 = sphi 0, %s140
    %s158 = sphi 0, %s158
    %s160 = sphi 0, %s158
    %s161 = sphi 0, %s160
    %s175 = sphi 0, %s161
    %s179 = sphi 0, %s179
    %s181 = sphi 0, %s179
    %s182 = sphi 0, %s181
    %s196 = sphi 0, %s182
    %s200 = sphi 0, %s200
    %s202 = sphi 0, %s200
    %s203 = sphi 0, %s202
    %s217 = sphi 0, %s203
    %s221 = sphi 0, %s221
    %s223 = sphi 0, %s221
    %s224 = sphi 0, %s223
    %s238 = sphi 0, %s224
    %s242 = sphi 0, %s242
    %s244 = sphi 0, %s242
    %s245 = sphi 0, %s244
    %s259 = sphi 0, %s245
    %s263 = sphi 0, %s263
    %s265 = sphi 0, %s263
    %s266 = sphi 0, %s265
    %s280 = sphi 0, %s266
    %s284 = sphi 0, %s284
    %s286 = sphi 0, %s284
    %s287 = sphi 0, %s286
    %s301 = sphi 0, %s287
    %s305 = sphi 0, %s305
    %s307 = sphi 0, %s305
    %s308 = sphi 0, %s307
    %s322 = sphi 0, %s308
    %s326 = sphi 0, %s326
    %s328 = sphi 0, %s326
    %s329 = sphi 0, %s328
    %s343 = sphi 0, %s329
    %s347 = sphi 0, %s347
    %s349 = sphi 0, %s347
    %s350 = sphi 0, %s349
    %s364 = sphi 0, %s350
    %s368 = sphi 0, %s368
    %s370 = sphi 0, %s368
    %s371 = sphi 0, %s370
    %s385 = sphi 0, %s371
    %s389 = sphi 0, %s389
    %s391 = sphi 0, %s389
    %s392 = sphi 0, %s391
    %s406 = sphi 0, %s392
    %s410 = sphi 0, %s410
    %s412 = sphi 0, %s410
    %s413 = sphi 0, %s412
    %s427 = sphi 0, %s413
    %s431 = sphi 0, %s431
    %s433 = sphi 0, %s431
    %s434 = sphi 0, %s433
    %s448 = sphi 0, %s434
    %s454 = sphi 0, %s456
    %s457 = sphi 0, %s454
    %s458 = sphi 0, %s457
    %s474 = sphi 0, %s458
  $region4: #{dgb_forward.7} parent=0 // loop_header_branch
    %28 = sbr.rel (%p26) target = $region8
  $region5: #{dgb_forward.7} parent=0 // loop_body
    %s30 = ssub.s32 %s25, 1
    %s31 = ssub.s32 %s25, 2
    %s32 = sadd.s32 %s25, 1
    %s33 = ssub.s32 %s25, %s32
    %p34 = scmp.eq.s32.totalorder %s33, 0
    %s36 = sadd.s32 %s35, 1
    %s37 = scalar_select %p34, %s35, %s36
    %p40 = pneg %p34
    %p41 = scmp.eq.s32.totalorder %s25, 1
    %p42 = por %p40, %p41
    %p43 = scmp.ne.s32.totalorder %s35, %s38
    %p44 = scmp.eq.s32.totalorder %s25, 0
    %p45 = por %p43, %p44
    %p46 = scmp.ne.s32.totalorder %s35, %s38
    %p47 = scmp.eq.s32.totalorder %s30, 1
    %p48 = por %p46, %p47
    %p49 = scmp.ne.s32.totalorder %s38, %s39
    %p50 = scmp.eq.s32.totalorder %s30, 0
    %p51 = por %p49, %p50
    %p52 = scmp.ne.s32.totalorder %s38, %s39
    %p53 = scmp.eq.s32.totalorder %s31, 1
    %p54 = por %p52, %p53
    %p56 = scmp.ne.s32.totalorder %s39, %s55
    %p57 = scmp.eq.s32.totalorder %s31, 0
    %p58 = por %p56, %p57
    %s59 = ssub.s32 %s25, %s32
    %p60 = scmp.eq.s32.totalorder %s59, 0
    %s62 = sadd.s32 %s61, 1
    %s63 = scalar_select %p60, %s61, %s62
    %p66 = pneg %p60
    %p67 = scmp.eq.s32.totalorder %s25, 1
    %p68 = por %p66, %p67
    %p69 = scmp.ne.s32.totalorder %s61, %s64
    %p70 = scmp.eq.s32.totalorder %s25, 0
    %p71 = por %p69, %p70
    %p72 = scmp.ne.s32.totalorder %s61, %s64
    %p73 = scmp.eq.s32.totalorder %s30, 1
    %p74 = por %p72, %p73
    %p75 = scmp.ne.s32.totalorder %s64, %s65
    %p76 = scmp.eq.s32.totalorder %s30, 0
    %p77 = por %p75, %p76
    %p78 = scmp.ne.s32.totalorder %s64, %s65
    %p79 = scmp.eq.s32.totalorder %s31, 1
    %p80 = por %p78, %p79
    %p82 = scmp.ne.s32.totalorder %s65, %s81
    %p83 = scmp.eq.s32.totalorder %s31, 0
    %p84 = por %p82, %p83
    %s85 = ssub.s32 %s25, %s32
    %p86 = scmp.eq.s32.totalorder %s85, 0
    %s88 = sadd.s32 %s87, 1
    %s89 = scalar_select %p86, %s87, %s88
    %p92 = pneg %p86
    %p93 = scmp.eq.s32.totalorder %s25, 1
    %p94 = por %p92, %p93
    %p95 = scmp.ne.s32.totalorder %s87, %s90
    %p96 = scmp.eq.s32.totalorder %s25, 0
    %p97 = por %p95, %p96
    %p98 = scmp.ne.s32.totalorder %s87, %s90
    %p99 = scmp.eq.s32.totalorder %s30, 1
    %p100 = por %p98, %p99
    %p101 = scmp.ne.s32.totalorder %s90, %s91
    %p102 = scmp.eq.s32.totalorder %s30, 0
    %p103 = por %p101, %p102
    %p104 = scmp.ne.s32.totalorder %s90, %s91
    %p105 = scmp.eq.s32.totalorder %s31, 1
    %p106 = por %p104, %p105
    %p108 = scmp.ne.s32.totalorder %s91, %s107
    %p109 = scmp.eq.s32.totalorder %s31, 0
    %p110 = por %p108, %p109
    %s111 = ssub.s32 %s25, %s32
    %p112 = scmp.eq.s32.totalorder %s111, 0
    %s114 = sadd.s32 %s113, 1
    %s115 = scalar_select %p112, %s113, %s114
    %p118 = pneg %p112
    %p119 = scmp.eq.s32.totalorder %s25, 1
    %p120 = por %p118, %p119
    %p121 = scmp.ne.s32.totalorder %s113, %s116
    %p122 = scmp.eq.s32.totalorder %s25, 0
    %p123 = por %p121, %p122
    %p124 = scmp.ne.s32.totalorder %s113, %s116
    %p125 = scmp.eq.s32.totalorder %s30, 1
    %p126 = por %p124, %p125
    %p127 = scmp.ne.s32.totalorder %s116, %s117
    %p128 = scmp.eq.s32.totalorder %s30, 0
    %p129 = por %p127, %p128
    %p130 = scmp.ne.s32.totalorder %s116, %s117
    %p131 = scmp.eq.s32.totalorder %s31, 1
    %p132 = por %p130, %p131
    %p134 = scmp.ne.s32.totalorder %s117, %s133
    %p135 = scmp.eq.s32.totalorder %s31, 0
    %p136 = por %p134, %p135
    %s138 = sadd.s32 %s137, 1
    %p141 = scmp.eq.s32.totalorder %s25, 1
    %p142 = scmp.ne.s32.totalorder %s137, %s139
    %p143 = scmp.eq.s32.totalorder %s25, 0
    %p144 = por %p142, %p143
    %p145 = scmp.ne.s32.totalorder %s137, %s139
    %p146 = scmp.eq.s32.totalorder %s30, 1
    %p147 = por %p145, %p146
    %p148 = scmp.ne.s32.totalorder %s139, %s140
    %p149 = scmp.eq.s32.totalorder %s30, 0
    %p150 = por %p148, %p149
    %p151 = scmp.ne.s32.totalorder %s139, %s140
    %p152 = scmp.eq.s32.totalorder %s31, 1
    %p153 = por %p151, %p152
    %p155 = scmp.ne.s32.totalorder %s140, %s154
    %p156 = scmp.eq.s32.totalorder %s31, 0
    %p157 = por %p155, %p156
    %s159 = sadd.s32 %s158, 1
    %p162 = scmp.eq.s32.totalorder %s25, 1
    %p163 = scmp.ne.s32.totalorder %s158, %s160
    %p164 = scmp.eq.s32.totalorder %s25, 0
    %p165 = por %p163, %p164
    %p166 = scmp.ne.s32.totalorder %s158, %s160
    %p167 = scmp.eq.s32.totalorder %s30, 1
    %p168 = por %p166, %p167
    %p169 = scmp.ne.s32.totalorder %s160, %s161
    %p170 = scmp.eq.s32.totalorder %s30, 0
    %p171 = por %p169, %p170
    %p172 = scmp.ne.s32.totalorder %s160, %s161
    %p173 = scmp.eq.s32.totalorder %s31, 1
    %p174 = por %p172, %p173
    %p176 = scmp.ne.s32.totalorder %s161, %s175
    %p177 = scmp.eq.s32.totalorder %s31, 0
    %p178 = por %p176, %p177
    %s180 = sadd.s32 %s179, 1
    %p183 = scmp.eq.s32.totalorder %s25, 1
    %p184 = scmp.ne.s32.totalorder %s179, %s181
    %p185 = scmp.eq.s32.totalorder %s25, 0
    %p186 = por %p184, %p185
    %p187 = scmp.ne.s32.totalorder %s179, %s181
    %p188 = scmp.eq.s32.totalorder %s30, 1
    %p189 = por %p187, %p188
    %p190 = scmp.ne.s32.totalorder %s181, %s182
    %p191 = scmp.eq.s32.totalorder %s30, 0
    %p192 = por %p190, %p191
    %p193 = scmp.ne.s32.totalorder %s181, %s182
    %p194 = scmp.eq.s32.totalorder %s31, 1
    %p195 = por %p193, %p194
    %p197 = scmp.ne.s32.totalorder %s182, %s196
    %p198 = scmp.eq.s32.totalorder %s31, 0
    %p199 = por %p197, %p198
    %s201 = sadd.s32 %s200, 1
    %p204 = scmp.eq.s32.totalorder %s25, 1
    %p205 = scmp.ne.s32.totalorder %s200, %s202
    %p206 = scmp.eq.s32.totalorder %s25, 0
    %p207 = por %p205, %p206
    %p208 = scmp.ne.s32.totalorder %s200, %s202
    %p209 = scmp.eq.s32.totalorder %s30, 1
    %p210 = por %p208, %p209
    %p211 = scmp.ne.s32.totalorder %s202, %s203
    %p212 = scmp.eq.s32.totalorder %s30, 0
    %p213 = por %p211, %p212
    %p214 = scmp.ne.s32.totalorder %s202, %s203
    %p215 = scmp.eq.s32.totalorder %s31, 1
    %p216 = por %p214, %p215
    %p218 = scmp.ne.s32.totalorder %s203, %s217
    %p219 = scmp.eq.s32.totalorder %s31, 0
    %p220 = por %p218, %p219
    %s222 = sadd.s32 %s221, 1
    %p225 = scmp.eq.s32.totalorder %s25, 1
    %p226 = scmp.ne.s32.totalorder %s221, %s223
    %p227 = scmp.eq.s32.totalorder %s25, 0
    %p228 = por %p226, %p227
    %p229 = scmp.ne.s32.totalorder %s221, %s223
    %p230 = scmp.eq.s32.totalorder %s30, 1
    %p231 = por %p229, %p230
    %p232 = scmp.ne.s32.totalorder %s223, %s224
    %p233 = scmp.eq.s32.totalorder %s30, 0
    %p234 = por %p232, %p233
    %p235 = scmp.ne.s32.totalorder %s223, %s224
    %p236 = scmp.eq.s32.totalorder %s31, 1
    %p237 = por %p235, %p236
    %p239 = scmp.ne.s32.totalorder %s224, %s238
    %p240 = scmp.eq.s32.totalorder %s31, 0
    %p241 = por %p239, %p240
    %s243 = sadd.s32 %s242, 1
    %p246 = scmp.eq.s32.totalorder %s25, 1
    %p247 = scmp.ne.s32.totalorder %s242, %s244
    %p248 = scmp.eq.s32.totalorder %s25, 0
    %p249 = por %p247, %p248
    %p250 = scmp.ne.s32.totalorder %s242, %s244
    %p251 = scmp.eq.s32.totalorder %s30, 1
    %p252 = por %p250, %p251
    %p253 = scmp.ne.s32.totalorder %s244, %s245
    %p254 = scmp.eq.s32.totalorder %s30, 0
    %p255 = por %p253, %p254
    %p256 = scmp.ne.s32.totalorder %s244, %s245
    %p257 = scmp.eq.s32.totalorder %s31, 1
    %p258 = por %p256, %p257
    %p260 = scmp.ne.s32.totalorder %s245, %s259
    %p261 = scmp.eq.s32.totalorder %s31, 0
    %p262 = por %p260, %p261
    %s264 = sadd.s32 %s263, 1
    %p267 = scmp.eq.s32.totalorder %s25, 1
    %p268 = scmp.ne.s32.totalorder %s263, %s265
    %p269 = scmp.eq.s32.totalorder %s25, 0
    %p270 = por %p268, %p269
    %p271 = scmp.ne.s32.totalorder %s263, %s265
    %p272 = scmp.eq.s32.totalorder %s30, 1
    %p273 = por %p271, %p272
    %p274 = scmp.ne.s32.totalorder %s265, %s266
    %p275 = scmp.eq.s32.totalorder %s30, 0
    %p276 = por %p274, %p275
    %p277 = scmp.ne.s32.totalorder %s265, %s266
    %p278 = scmp.eq.s32.totalorder %s31, 1
    %p279 = por %p277, %p278
    %p281 = scmp.ne.s32.totalorder %s266, %s280
    %p282 = scmp.eq.s32.totalorder %s31, 0
    %p283 = por %p281, %p282
    %s285 = sadd.s32 %s284, 1
    %p288 = scmp.eq.s32.totalorder %s25, 1
    %p289 = scmp.ne.s32.totalorder %s284, %s286
    %p290 = scmp.eq.s32.totalorder %s25, 0
    %p291 = por %p289, %p290
    %p292 = scmp.ne.s32.totalorder %s284, %s286
    %p293 = scmp.eq.s32.totalorder %s30, 1
    %p294 = por %p292, %p293
    %p295 = scmp.ne.s32.totalorder %s286, %s287
    %p296 = scmp.eq.s32.totalorder %s30, 0
    %p297 = por %p295, %p296
    %p298 = scmp.ne.s32.totalorder %s286, %s287
    %p299 = scmp.eq.s32.totalorder %s31, 1
    %p300 = por %p298, %p299
    %p302 = scmp.ne.s32.totalorder %s287, %s301
    %p303 = scmp.eq.s32.totalorder %s31, 0
    %p304 = por %p302, %p303
    %s306 = sadd.s32 %s305, 1
    %p309 = scmp.eq.s32.totalorder %s25, 1
    %p310 = scmp.ne.s32.totalorder %s305, %s307
    %p311 = scmp.eq.s32.totalorder %s25, 0
    %p312 = por %p310, %p311
    %p313 = scmp.ne.s32.totalorder %s305, %s307
    %p314 = scmp.eq.s32.totalorder %s30, 1
    %p315 = por %p313, %p314
    %p316 = scmp.ne.s32.totalorder %s307, %s308
    %p317 = scmp.eq.s32.totalorder %s30, 0
    %p318 = por %p316, %p317
    %p319 = scmp.ne.s32.totalorder %s307, %s308
    %p320 = scmp.eq.s32.totalorder %s31, 1
    %p321 = por %p319, %p320
    %p323 = scmp.ne.s32.totalorder %s308, %s322
    %p324 = scmp.eq.s32.totalorder %s31, 0
    %p325 = por %p323, %p324
    %s327 = sadd.s32 %s326, 1
    %p330 = scmp.eq.s32.totalorder %s25, 1
    %p331 = scmp.ne.s32.totalorder %s326, %s328
    %p332 = scmp.eq.s32.totalorder %s25, 0
    %p333 = por %p331, %p332
    %p334 = scmp.ne.s32.totalorder %s326, %s328
    %p335 = scmp.eq.s32.totalorder %s30, 1
    %p336 = por %p334, %p335
    %p337 = scmp.ne.s32.totalorder %s328, %s329
    %p338 = scmp.eq.s32.totalorder %s30, 0
    %p339 = por %p337, %p338
    %p340 = scmp.ne.s32.totalorder %s328, %s329
    %p341 = scmp.eq.s32.totalorder %s31, 1
    %p342 = por %p340, %p341
    %p344 = scmp.ne.s32.totalorder %s329, %s343
    %p345 = scmp.eq.s32.totalorder %s31, 0
    %p346 = por %p344, %p345
    %s348 = sadd.s32 %s347, 1
    %p351 = scmp.eq.s32.totalorder %s25, 1
    %p352 = scmp.ne.s32.totalorder %s347, %s349
    %p353 = scmp.eq.s32.totalorder %s25, 0
    %p354 = por %p352, %p353
    %p355 = scmp.ne.s32.totalorder %s347, %s349
    %p356 = scmp.eq.s32.totalorder %s30, 1
    %p357 = por %p355, %p356
    %p358 = scmp.ne.s32.totalorder %s349, %s350
    %p359 = scmp.eq.s32.totalorder %s30, 0
    %p360 = por %p358, %p359
    %p361 = scmp.ne.s32.totalorder %s349, %s350
    %p362 = scmp.eq.s32.totalorder %s31, 1
    %p363 = por %p361, %p362
    %p365 = scmp.ne.s32.totalorder %s350, %s364
    %p366 = scmp.eq.s32.totalorder %s31, 0
    %p367 = por %p365, %p366
    %s369 = sadd.s32 %s368, 1
    %p372 = scmp.eq.s32.totalorder %s25, 1
    %p373 = scmp.ne.s32.totalorder %s368, %s370
    %p374 = scmp.eq.s32.totalorder %s25, 0
    %p375 = por %p373, %p374
    %p376 = scmp.ne.s32.totalorder %s368, %s370
    %p377 = scmp.eq.s32.totalorder %s30, 1
    %p378 = por %p376, %p377
    %p379 = scmp.ne.s32.totalorder %s370, %s371
    %p380 = scmp.eq.s32.totalorder %s30, 0
    %p381 = por %p379, %p380
    %p382 = scmp.ne.s32.totalorder %s370, %s371
    %p383 = scmp.eq.s32.totalorder %s31, 1
    %p384 = por %p382, %p383
    %p386 = scmp.ne.s32.totalorder %s371, %s385
    %p387 = scmp.eq.s32.totalorder %s31, 0
    %p388 = por %p386, %p387
    %s390 = sadd.s32 %s389, 1
    %p393 = scmp.eq.s32.totalorder %s25, 1
    %p394 = scmp.ne.s32.totalorder %s389, %s391
    %p395 = scmp.eq.s32.totalorder %s25, 0
    %p396 = por %p394, %p395
    %p397 = scmp.ne.s32.totalorder %s389, %s391
    %p398 = scmp.eq.s32.totalorder %s30, 1
    %p399 = por %p397, %p398
    %p400 = scmp.ne.s32.totalorder %s391, %s392
    %p401 = scmp.eq.s32.totalorder %s30, 0
    %p402 = por %p400, %p401
    %p403 = scmp.ne.s32.totalorder %s391, %s392
    %p404 = scmp.eq.s32.totalorder %s31, 1
    %p405 = por %p403, %p404
    %p407 = scmp.ne.s32.totalorder %s392, %s406
    %p408 = scmp.eq.s32.totalorder %s31, 0
    %p409 = por %p407, %p408
    %s411 = sadd.s32 %s410, 1
    %p414 = scmp.eq.s32.totalorder %s25, 1
    %p415 = scmp.ne.s32.totalorder %s410, %s412
    %p416 = scmp.eq.s32.totalorder %s25, 0
    %p417 = por %p415, %p416
    %p418 = scmp.ne.s32.totalorder %s410, %s412
    %p419 = scmp.eq.s32.totalorder %s30, 1
    %p420 = por %p418, %p419
    %p421 = scmp.ne.s32.totalorder %s412, %s413
    %p422 = scmp.eq.s32.totalorder %s30, 0
    %p423 = por %p421, %p422
    %p424 = scmp.ne.s32.totalorder %s412, %s413
    %p425 = scmp.eq.s32.totalorder %s31, 1
    %p426 = por %p424, %p425
    %p428 = scmp.ne.s32.totalorder %s413, %s427
    %p429 = scmp.eq.s32.totalorder %s31, 0
    %p430 = por %p428, %p429
    %s432 = sadd.s32 %s431, 1
    %p435 = scmp.eq.s32.totalorder %s25, 1
    %p436 = scmp.ne.s32.totalorder %s431, %s433
    %p437 = scmp.eq.s32.totalorder %s25, 0
    %p438 = por %p436, %p437
    %p439 = scmp.ne.s32.totalorder %s431, %s433
    %p440 = scmp.eq.s32.totalorder %s30, 1
    %p441 = por %p439, %p440
    %p442 = scmp.ne.s32.totalorder %s433, %s434
    %p443 = scmp.eq.s32.totalorder %s30, 0
    %p444 = por %p442, %p443
    %p445 = scmp.ne.s32.totalorder %s433, %s434
    %p446 = scmp.eq.s32.totalorder %s31, 1
    %p447 = por %p445, %p446
    %p449 = scmp.ne.s32.totalorder %s434, %s448
    %p450 = scmp.eq.s32.totalorder %s31, 0
    %p451 = por %p449, %p450
    %s452 = ssub.s32 %s25, %s32
    %p453 = scmp.eq.s32.totalorder %s452, 0
    %s455 = sadd.s32 %s454, 1
    %s456 = scalar_select %p453, %s454, %s455
    %p459 = pneg %p453
    %p460 = scmp.eq.s32.totalorder %s25, 1
    %p461 = por %p459, %p460
    %p462 = scmp.ne.s32.totalorder %s454, %s457
    %p463 = scmp.eq.s32.totalorder %s25, 0
    %p464 = por %p462, %p463
    %p465 = scmp.ne.s32.totalorder %s454, %s457
    %p466 = scmp.eq.s32.totalorder %s30, 1
    %p467 = por %p465, %p466
    %p468 = scmp.ne.s32.totalorder %s457, %s458
    %p469 = scmp.eq.s32.totalorder %s30, 0
    %p470 = por %p468, %p469
    %p471 = scmp.ne.s32.totalorder %s457, %s458
    %p472 = scmp.eq.s32.totalorder %s31, 1
    %p473 = por %p471, %p472
    %p475 = scmp.ne.s32.totalorder %s458, %s474
    %p476 = scmp.eq.s32.totalorder %s31, 0
    %p477 = por %p475, %p476
    %p478 = scmp.le.s32.totalorder 1, %s25
    %p479 = scmp.lt.s32.totalorder %s25, 3
    %p480 = pnand %p478, %p479
    %p481 = pneg %p480
    // Predicated region
    $region9: #{dgb_forward.7} parent=5 // pred_check
      _
    $region10: #{dgb_forward.7} parent=5 // pred_check_branch
      %483 = sbr.rel (%p480) target = $region12
    $region11: #{dgb_forward.7} parent=5 // pred_region
      %s484 = ssub.s32 %s25, 1
      // Predicated region
      $region13: #{dgb_forward.7} parent=11 // pred_check
        %p485 = pneg %p150
      $region14: #{dgb_forward.7} parent=11 // pred_check_branch
        %487 = sbr.rel (%p485) target = $region16
      $region15: #{dgb_forward.7} parent=11 // pred_region
        _
      $region16: #{dgb_forward.7} parent=11 // pred_fallthru
        _
      // Predicated region
      $region17: #{dgb_forward.7} parent=11 // pred_check
        %p488 = pneg %p171
      $region18: #{dgb_forward.7} parent=11 // pred_check_branch
        %490 = sbr.rel (%p488) target = $region20
      $region19: #{dgb_forward.7} parent=11 // pred_region
        _
      $region20: #{dgb_forward.7} parent=11 // pred_fallthru
        _
      // Predicated region
      $region21: #{dgb_forward.7} parent=11 // pred_check
        %p491 = pneg %p192
      $region22: #{dgb_forward.7} parent=11 // pred_check_branch
        %493 = sbr.rel (%p491) target = $region24
      $region23: #{dgb_forward.7} parent=11 // pred_region
        _
      $region24: #{dgb_forward.7} parent=11 // pred_fallthru
        _
      // Predicated region
      $region25: #{dgb_forward.7} parent=11 // pred_check
        %p494 = pneg %p213
      $region26: #{dgb_forward.7} parent=11 // pred_check_branch
        %496 = sbr.rel (%p494) target = $region28
      $region27: #{dgb_forward.7} parent=11 // pred_region
        _
      $region28: #{dgb_forward.7} parent=11 // pred_fallthru
        _
      // Predicated region
      $region29: #{dgb_forward.7} parent=11 // pred_check
        %p497 = pneg %p234
      $region30: #{dgb_forward.7} parent=11 // pred_check_branch
        %499 = sbr.rel (%p497) target = $region32
      $region31: #{dgb_forward.7} parent=11 // pred_region
        _
      $region32: #{dgb_forward.7} parent=11 // pred_fallthru
        _
      // Predicated region
      $region33: #{dgb_forward.7} parent=11 // pred_check
        %p500 = pneg %p255
      $region34: #{dgb_forward.7} parent=11 // pred_check_branch
        %502 = sbr.rel (%p500) target = $region36
      $region35: #{dgb_forward.7} parent=11 // pred_region
        _
      $region36: #{dgb_forward.7} parent=11 // pred_fallthru
        _
      // Predicated region
      $region37: #{dgb_forward.7} parent=11 // pred_check
        %p503 = pneg %p276
      $region38: #{dgb_forward.7} parent=11 // pred_check_branch
        %505 = sbr.rel (%p503) target = $region40
      $region39: #{dgb_forward.7} parent=11 // pred_region
        _
      $region40: #{dgb_forward.7} parent=11 // pred_fallthru
        _
      // Predicated region
      $region41: #{dgb_forward.7} parent=11 // pred_check
        %p506 = pneg %p297
      $region42: #{dgb_forward.7} parent=11 // pred_check_branch
        %508 = sbr.rel (%p506) target = $region44
      $region43: #{dgb_forward.7} parent=11 // pred_region
        _
      $region44: #{dgb_forward.7} parent=11 // pred_fallthru
        _
      // Predicated region
      $region45: #{dgb_forward.7} parent=11 // pred_check
        %p509 = pneg %p318
      $region46: #{dgb_forward.7} parent=11 // pred_check_branch
        %511 = sbr.rel (%p509) target = $region48
      $region47: #{dgb_forward.7} parent=11 // pred_region
        _
      $region48: #{dgb_forward.7} parent=11 // pred_fallthru
        _
      // Predicated region
      $region49: #{dgb_forward.7} parent=11 // pred_check
        %p512 = pneg %p339
      $region50: #{dgb_forward.7} parent=11 // pred_check_branch
        %514 = sbr.rel (%p512) target = $region52
      $region51: #{dgb_forward.7} parent=11 // pred_region
        _
      $region52: #{dgb_forward.7} parent=11 // pred_fallthru
        _
      // Predicated region
      $region53: #{dgb_forward.7} parent=11 // pred_check
        %p515 = pneg %p360
      $region54: #{dgb_forward.7} parent=11 // pred_check_branch
        %517 = sbr.rel (%p515) target = $region56
      $region55: #{dgb_forward.7} parent=11 // pred_region
        _
      $region56: #{dgb_forward.7} parent=11 // pred_fallthru
        _
      // Predicated region
      $region57: #{dgb_forward.7} parent=11 // pred_check
        %p518 = pneg %p381
      $region58: #{dgb_forward.7} parent=11 // pred_check_branch
        %520 = sbr.rel (%p518) target = $region60
      $region59: #{dgb_forward.7} parent=11 // pred_region
        _
      $region60: #{dgb_forward.7} parent=11 // pred_fallthru
        _
      // Predicated region
      $region61: #{dgb_forward.7} parent=11 // pred_check
        %p521 = pneg %p402
      $region62: #{dgb_forward.7} parent=11 // pred_check_branch
        %523 = sbr.rel (%p521) target = $region64
      $region63: #{dgb_forward.7} parent=11 // pred_region
        _
      $region64: #{dgb_forward.7} parent=11 // pred_fallthru
        _
      // Predicated region
      $region65: #{dgb_forward.7} parent=11 // pred_check
        %p524 = pneg %p423
      $region66: #{dgb_forward.7} parent=11 // pred_check_branch
        %526 = sbr.rel (%p524) target = $region68
      $region67: #{dgb_forward.7} parent=11 // pred_region
        _
      $region68: #{dgb_forward.7} parent=11 // pred_fallthru
        _
      // Predicated region
      $region69: #{dgb_forward.7} parent=11 // pred_check
        %p527 = pneg %p444
      $region70: #{dgb_forward.7} parent=11 // pred_check_branch
        %529 = sbr.rel (%p527) target = $region72
      $region71: #{dgb_forward.7} parent=11 // pred_region
        _
      $region72: #{dgb_forward.7} parent=11 // pred_fallthru
        _
    $region12: #{dgb_forward.7} parent=5 // pred_fallthru
      _
    %p530 = scmp.lt.s32.totalorder %s25, 2
    // Predicated region
    $region73: #{dgb_forward.7} parent=5 // pred_check
      %p531 = pneg %p530
    $region74: #{dgb_forward.7} parent=5 // pred_check_branch
      %533 = sbr.rel (%p531) target = $region76
    $region75: #{dgb_forward.7} parent=5 // pred_region
      // Predicated region
      $region77: #{dgb_forward.7} parent=75 // pred_check
        %p534 = pneg %p45
      $region78: #{dgb_forward.7} parent=75 // pred_check_branch
        %536 = sbr.rel (%p534) target = $region80
      $region79: #{dgb_forward.7} parent=75 // pred_region
        %p537 = scmp.lt.s32.totalorder %s25, 1
        %s538 = scalar_select %p537, %s25, 1
        %s539 = smul.addr %s538, 8
        %s540 = smul.addr %s539, 4
        %s541 = scalar_lea.vmem %s0, %s540
      $region80: #{dgb_forward.7} parent=75 // pred_fallthru
        _
      // Predicated region
      $region81: #{dgb_forward.7} parent=75 // pred_check
        %p542 = pneg %p71
      $region82: #{dgb_forward.7} parent=75 // pred_check_branch
        %544 = sbr.rel (%p542) target = $region84
      $region83: #{dgb_forward.7} parent=75 // pred_region
        %p545 = scmp.lt.s32.totalorder %s25, 1
        %s546 = scalar_select %p545, %s25, 1
        %s547 = smul.addr %s546, 8
        %s548 = smul.addr %s547, 4
        %s549 = scalar_lea.vmem %s1, %s548
      $region84: #{dgb_forward.7} parent=75 // pred_fallthru
        _
      // Predicated region
      $region85: #{dgb_forward.7} parent=75 // pred_check
        %p550 = pneg %p97
      $region86: #{dgb_forward.7} parent=75 // pred_check_branch
        %552 = sbr.rel (%p550) target = $region88
      $region87: #{dgb_forward.7} parent=75 // pred_region
        %p553 = scmp.lt.s32.totalorder %s25, 1
        %s554 = scalar_select %p553, %s25, 1
        %s555 = smul.addr %s554, 24
        %s556 = smul.addr %s555, 4
        %s557 = scalar_lea.vmem %s2, %s556
      $region88: #{dgb_forward.7} parent=75 // pred_fallthru
        _
      // Predicated region
      $region89: #{dgb_forward.7} parent=75 // pred_check
        %p558 = pneg %p123
      $region90: #{dgb_forward.7} parent=75 // pred_check_branch
        %560 = sbr.rel (%p558) target = $region92
      $region91: #{dgb_forward.7} parent=75 // pred_region
        %p561 = scmp.lt.s32.totalorder %s25, 1
        %s562 = scalar_select %p561, %s25, 1
        %s563 = smul.addr %s562, 4
        %s564 = scalar_lea.vmem %s3, %s563
      $region92: #{dgb_forward.7} parent=75 // pred_fallthru
        _
    $region76: #{dgb_forward.7} parent=5 // pred_fallthru
      _
    %p565 = scmp.le.s32.totalorder 1, %s25
    %p566 = scmp.lt.s32.totalorder %s25, 3
    %p567 = pnand %p565, %p566
    %p568 = pneg %p567
    // Predicated region
    $region93: #{dgb_forward.7} parent=5 // pred_check
      _
    $region94: #{dgb_forward.7} parent=5 // pred_check_branch
      %570 = sbr.rel (%p567) target = $region96
    $region95: #{dgb_forward.7} parent=5 // pred_region
      %s571 = ssub.s32 %s25, 1
      %p572 = scmp.lt.s32.totalorder %s30, 1
      %s573 = scalar_select %p572, %s30, 1
      %s574 = smul.addr %s573, 8
      %s575 = smul.addr %s574, 4
      %s576 = scalar_lea.vmem %s0, %s575
      %p577 = pneg %p51
      %p578 = pneg %p48
      %p579 = scmp.lt.s32.totalorder %s30, 1
      %s580 = scalar_select %p579, %s30, 1
      %s581 = smul.addr %s580, 8
      %s582 = smul.addr %s581, 4
      %s583 = scalar_lea.vmem %s1, %s582
      %p584 = pneg %p77
      %p585 = pneg %p74
      %p586 = scmp.lt.s32.totalorder %s30, 1
      %s587 = scalar_select %p586, %s30, 1
      %s588 = smul.addr %s587, 24
      %s589 = smul.addr %s588, 4
      %s590 = scalar_lea.vmem %s2, %s589
      %p591 = pneg %p103
      %p592 = pneg %p100
      %p593 = scmp.lt.s32.totalorder %s30, 1
      %s594 = scalar_select %p593, %s30, 1
      %s595 = smul.addr %s594, 4
      %s596 = scalar_lea.vmem %s3, %s595
      %p597 = pneg %p129
      %p598 = pneg %p126
      %p599 = pneg %p150
      %p600 = pneg %p147
      %p601 = pneg %p171
      %p602 = pneg %p168
      %p603 = pneg %p192
      %p604 = pneg %p189
      %p605 = pneg %p213
      %p606 = pneg %p210
      %p607 = pneg %p234
      %p608 = pneg %p231
      %p609 = pneg %p255
      %p610 = pneg %p252
      %p611 = pneg %p276
      %p612 = pneg %p273
      %p613 = pneg %p297
      %p614 = pneg %p294
      %p615 = pneg %p318
      %p616 = pneg %p315
      %p617 = pneg %p339
      %p618 = pneg %p336
      %p619 = pneg %p360
      %p620 = pneg %p357
      %p621 = pneg %p381
      %p622 = pneg %p378
      %p623 = pneg %p402
      %p624 = pneg %p399
      %p625 = pneg %p423
      %p626 = pneg %p420
      %p627 = pneg %p444
      %p628 = pneg %p441
      %p629 = pneg %p470
      %p630 = pneg %p467
      %p631 = scmp.lt.s32.totalorder %s30, 1
      %s632 = scalar_select %p631, %s30, 1
      %s633 = smul.addr %s632, 8
      %s634 = smul.addr %s633, 4
      %s635 = scalar_lea.vmem %s19, %s634
      %p636 = scmp.lt.s32.totalorder %s30, 1
      %s637 = scalar_select %p636, %s30, 1
      %s638 = smul.addr %s637, 8
      %s639 = smul.addr %s638, 4
      %s640 = scalar_lea.vmem %s0, %s639
      %p641 = scmp.lt.s32.totalorder %s30, 1
      %s642 = scalar_select %p641, %s30, 1
      %s643 = smul.addr %s642, 8
      %s644 = smul.addr %s643, 4
      %s645 = scalar_lea.vmem %s1, %s644
      %p646 = scmp.lt.s32.totalorder %s30, 1
      %s647 = scalar_select %p646, %s30, 1
      %s648 = smul.addr %s647, 24
      %s649 = smul.addr %s648, 4
      %s650 = scalar_lea.vmem %s2, %s649
      %p651 = scmp.lt.s32.totalorder %s30, 1
      %s652 = scalar_select %p651, %s30, 1
      %s653 = smul.addr %s652, 4
      %s654 = scalar_lea.vmem %s3, %s653
      %p655 = scmp.lt.s32.totalorder %s30, 1
      %s656 = scalar_select %p655, %s30, 1
      %s657 = smul.addr %s656, 8
      %s658 = smul.addr %s657, 4
      %s659 = scalar_lea.vmem %s19, %s658
      %v661 = vld [vmem:[%s640] sm:$0xf]
      %v662 = vld [vmem:[%s640 + $0x4] sm:$0xf]
      %v663 = vld [vmem:[%s640 + $0x8] sm:$0xf]
      %v664 = vld [vmem:[%s640 + $0xc] sm:$0xf]
      %v665 = vld [vmem:[%s640 + $0x10] sm:$0xf]
      %v666 = vld [vmem:[%s640 + $0x14] sm:$0xf]
      %v667 = vld [vmem:[%s640 + $0x18] sm:$0xf]
      %v668 = vld [vmem:[%s640 + $0x1c] sm:$0xf]
      %v669 = vld [vmem:[%s645] sm:$0xf]
      %v670 = vld [vmem:[%s645 + $0x4] sm:$0xf]
      %v671 = vld [vmem:[%s645 + $0x8] sm:$0xf]
      %v672 = vld [vmem:[%s645 + $0xc] sm:$0xf]
      %v673 = vld [vmem:[%s645 + $0x10] sm:$0xf]
      %v674 = vld [vmem:[%s645 + $0x14] sm:$0xf]
      %v675 = vld [vmem:[%s645 + $0x18] sm:$0xf]
      %v676 = vld [vmem:[%s645 + $0x1c] sm:$0xf]
      %v677 = vld [vmem:[%s650] sm:$0xff]
      %v678 = vld [vmem:[%s650 + $0x8] sm:$0xf]
      %v679 = vld [vmem:[%s650 + $0xc] sm:$0xff]
      %v680 = vld [vmem:[%s650 + $0x14] sm:$0xf]
      %v681 = vld [vmem:[%s650 + $0x18] sm:$0xff]
      %v682 = vld [vmem:[%s650 + $0x20] sm:$0xf]
      %v683 = vld [vmem:[%s650 + $0x24] sm:$0xff]
      %v684 = vld [vmem:[%s650 + $0x2c] sm:$0xf]
      %v685 = vld [vmem:[%s650 + $0x30] sm:$0xff]
      %v686 = vld [vmem:[%s650 + $0x38] sm:$0xf]
      %v687 = vld [vmem:[%s650 + $0x3c] sm:$0xff]
      %v688 = vld [vmem:[%s650 + $0x44] sm:$0xf]
      %v689 = vld [vmem:[%s650 + $0x48] sm:$0xff]
      %v690 = vld [vmem:[%s650 + $0x50] sm:$0xf]
      %v691 = vld [vmem:[%s650 + $0x54] sm:$0xff]
      %v692 = vld [vmem:[%s650 + $0x5c] sm:$0xf]
      %v693 = vld [vmem:[%s4] sm:$0xf]
      %v694 = vld [vmem:[%s4 + $0x4] sm:$0xf]
      %v695 = vld [vmem:[%s4 + $0x8] sm:$0xf]
      %v696 = vld [vmem:[%s4 + $0xc] sm:$0xf]
      %v697 = vld [vmem:[%s4 + $0x10] sm:$0xf]
      %v698 = vld [vmem:[%s4 + $0x14] sm:$0xf]
      %v699 = vld [vmem:[%s4 + $0x18] sm:$0xf]
      %v700 = vld [vmem:[%s4 + $0x1c] sm:$0xf]
      %v701 = vld [vmem:[%s4 + $0x20] sm:$0xf]
      %v702 = vld [vmem:[%s4 + $0x24] sm:$0xf]
      %v703 = vld [vmem:[%s4 + $0x28] sm:$0xf]
      %v704 = vld [vmem:[%s4 + $0x2c] sm:$0xf]
      %v705 = vld [vmem:[%s4 + $0x30] sm:$0xf]
      %v706 = vld [vmem:[%s4 + $0x34] sm:$0xf]
      %v707 = vld [vmem:[%s4 + $0x38] sm:$0xf]
      %v708 = vld [vmem:[%s4 + $0x3c] sm:$0xf]
      %v709 = vld [vmem:[%s4 + $0x40] sm:$0xf]
      %v710 = vld [vmem:[%s4 + $0x44] sm:$0xf]
      %v711 = vld [vmem:[%s4 + $0x48] sm:$0xf]
      %v712 = vld [vmem:[%s4 + $0x4c] sm:$0xf]
      %v713 = vld [vmem:[%s4 + $0x50] sm:$0xf]
      %v714 = vld [vmem:[%s4 + $0x54] sm:$0xf]
      %v715 = vld [vmem:[%s4 + $0x58] sm:$0xf]
      %v716 = vld [vmem:[%s4 + $0x5c] sm:$0xf]
      %v717 = vld [vmem:[%s4 + $0x60] sm:$0xf]
      %v718 = vld [vmem:[%s4 + $0x64] sm:$0xf]
      %v719 = vld [vmem:[%s4 + $0x68] sm:$0xf]
      %v720 = vld [vmem:[%s4 + $0x6c] sm:$0xf]
      %v721 = vld [vmem:[%s4 + $0x70] sm:$0xf]
      %v722 = vld [vmem:[%s4 + $0x74] sm:$0xf]
      %v723 = vld [vmem:[%s4 + $0x78] sm:$0xf]
      %v724 = vld [vmem:[%s4 + $0x7c] sm:$0xf]
      %v725 = vld [vmem:[%s4 + $0x80] sm:$0xf]
      %v726 = vld [vmem:[%s4 + $0x84] sm:$0xf]
      %v727 = vld [vmem:[%s4 + $0x88] sm:$0xf]
      %v728 = vld [vmem:[%s4 + $0x8c] sm:$0xf]
      %v745 = vunpack.c.l.b16 %v677
      %v746 = vunpack.c.h.b16 %v677
      %v747 = vunpack.c.l.b16 %v678
      %v748 = vunpack.c.l.b16 %v679
      %v749 = vunpack.c.h.b16 %v679
      %v750 = vunpack.c.l.b16 %v680
      %v751 = vunpack.c.l.b16 %v681
      %v752 = vunpack.c.h.b16 %v681
      %v753 = vunpack.c.l.b16 %v682
      %v754 = vunpack.c.l.b16 %v683
      %v755 = vunpack.c.h.b16 %v683
      %v756 = vunpack.c.l.b16 %v684
      %v757 = vunpack.c.l.b16 %v685
      %v758 = vunpack.c.h.b16 %v685
      %v759 = vunpack.c.l.b16 %v686
      %v760 = vunpack.c.l.b16 %v687
      %v761 = vunpack.c.h.b16 %v687
      %v762 = vunpack.c.l.b16 %v688
      %v763 = vunpack.c.l.b16 %v689
      %v764 = vunpack.c.h.b16 %v689
      %v765 = vunpack.c.l.b16 %v690
      %v766 = vunpack.c.l.b16 %v691
      %v767 = vunpack.c.h.b16 %v691
      %v768 = vunpack.c.l.b16 %v692
      %v769 = vpack.c.b16 %v748, %v745
      %v770 = vpack.c.b16 %v749, %v746
      %v771 = vpack.c.b16 %v750, %v747
      %v772 = vpack.c.b16 %v754, %v751
      %v773 = vpack.c.b16 %v755, %v752
      %v774 = vpack.c.b16 %v756, %v753
      %v775 = vpack.c.b16 %v760, %v757
      %v776 = vpack.c.b16 %v761, %v758
      %v777 = vpack.c.b16 %v762, %v759
      %v778 = vpack.c.b16 %v766, %v763
      %v779 = vpack.c.b16 %v767, %v764
      %v780 = vpack.c.b16 %v768, %v765
      %v825 = vunpack.c.l.b16 %v693
      %v826 = vunpack.c.l.b16 %v694
      %v827 = vunpack.c.l.b16 %v695
      %v828 = vunpack.c.l.b16 %v696
      %v829 = vunpack.c.l.b16 %v697
      %v830 = vunpack.c.l.b16 %v698
      %v831 = vunpack.c.l.b16 %v699
      %v832 = vunpack.c.l.b16 %v700
      %v833 = vunpack.c.l.b16 %v701
      %v834 = vunpack.c.l.b16 %v702
      %v835 = vunpack.c.l.b16 %v703
      %v836 = vunpack.c.l.b16 %v704
      %v837 = vunpack.c.l.b16 %v705
      %v838 = vunpack.c.l.b16 %v706
      %v839 = vunpack.c.l.b16 %v707
      %v840 = vunpack.c.l.b16 %v708
      %v841 = vunpack.c.l.b16 %v709
      %v842 = vunpack.c.l.b16 %v710
      %v843 = vunpack.c.l.b16 %v711
      %v844 = vunpack.c.l.b16 %v712
      %v845 = vunpack.c.l.b16 %v713
      %v846 = vunpack.c.l.b16 %v714
      %v847 = vunpack.c.l.b16 %v715
      %v848 = vunpack.c.l.b16 %v716
      %v849 = vunpack.c.l.b16 %v717
      %v850 = vunpack.c.l.b16 %v718
      %v851 = vunpack.c.l.b16 %v719
      %v852 = vunpack.c.l.b16 %v720
      %v853 = vunpack.c.l.b16 %v721
      %v854 = vunpack.c.l.b16 %v722
      %v855 = vunpack.c.l.b16 %v723
      %v856 = vunpack.c.l.b16 %v724
      %v857 = vunpack.c.l.b16 %v725
      %v858 = vunpack.c.l.b16 %v726
      %v859 = vunpack.c.l.b16 %v727
      %v860 = vunpack.c.l.b16 %v728
      %v861 = vpack.c.b16 %v826, %v825
      %v862 = vpack.c.b16 %v828, %v827
      %v863 = vpack.c.b16 %v830, %v829
      %v864 = vpack.c.b16 %v832, %v831
      %v865 = vpack.c.b16 %v834, %v833
      %v866 = vpack.c.b16 %v836, %v835
      %v867 = vpack.c.b16 %v838, %v837
      %v868 = vpack.c.b16 %v840, %v839
      %v869 = vpack.c.b16 %v842, %v841
      %v870 = vpack.c.b16 %v844, %v843
      %v871 = vpack.c.b16 %v846, %v845
      %v872 = vpack.c.b16 %v848, %v847
      %v873 = vpack.c.b16 %v850, %v849
      %v874 = vpack.c.b16 %v852, %v851
      %v875 = vpack.c.b16 %v854, %v853
      %v876 = vpack.c.b16 %v856, %v855
      %v877 = vpack.c.b16 %v858, %v857
      %v878 = vpack.c.b16 %v860, %v859
      %vm897 = vcmask 261120
      %v899 = vsel %vm897, %v771, 0
      %v902 = vsel %vm897, %v774, 0
      %v905 = vsel %vm897, %v777, 0
      %v908 = vsel %vm897, %v780, 0
      %910 = vmatpush.bf16.msra.mxu0 %v868
      %911 = vmatpush.bf16.msra.mxu0 %v867
      %912 = vmatpush.bf16.msra.mxu0 %v866
      %913 = vmatpush.bf16.msra.mxu0 %v865
      %914 = vmatpush.bf16.msra.mxu0 %v864
      %915 = vmatpush.bf16.msra.mxu0 %v863
      %916 = vmatpush.bf16.msra.mxu0 %v862
      %917 = vmatpush.bf16.msra.mxu0 %v861
      %918 = vmatmul.bf16.gmra.mxu0 %v769
      %v919 = vpop.f32.mrf.mxu0
      %v920 = vadd.f32 0.0, %v919
      %v921 = vpop.f32.mrf.mxu0
      %v922 = vadd.f32 0.0, %v921
      %923 = vmatmul.bf16.gmra.mxu0 %v772
      %v924 = vpop.f32.mrf.mxu0
      %v925 = vadd.f32 0.0, %v924
      %v926 = vpop.f32.mrf.mxu0
      %v927 = vadd.f32 0.0, %v926
      %928 = vmatmul.bf16.gmra.mxu0 %v775
      %v929 = vpop.f32.mrf.mxu0
      %v930 = vadd.f32 0.0, %v929
      %v931 = vpop.f32.mrf.mxu0
      %v932 = vadd.f32 0.0, %v931
      %933 = vmatmul.bf16.gmra.mxu0 %v778
      %v934 = vpop.f32.mrf.mxu0
      %v935 = vadd.f32 0.0, %v934
      %v936 = vpop.f32.mrf.mxu0
      %v937 = vadd.f32 0.0, %v936
      %938 = vdwg.mxu0
      %939 = vmatpush.bf16.msra.mxu0 %v876
      %940 = vmatpush.bf16.msra.mxu0 %v875
      %941 = vmatpush.bf16.msra.mxu0 %v874
      %942 = vmatpush.bf16.msra.mxu0 %v873
      %943 = vmatpush.bf16.msra.mxu0 %v872
      %944 = vmatpush.bf16.msra.mxu0 %v871
      %945 = vmatpush.bf16.msra.mxu0 %v870
      %946 = vmatpush.bf16.msra.mxu0 %v869
      %947 = vmatmul.bf16.gmra.mxu0 %v770
      %v948 = vpop.f32.mrf.mxu0
      %v949 = vadd.f32 %v920, %v948
      %v950 = vpop.f32.mrf.mxu0
      %v951 = vadd.f32 %v922, %v950
      %952 = vmatmul.bf16.gmra.mxu0 %v773
      %v953 = vpop.f32.mrf.mxu0
      %v954 = vadd.f32 %v925, %v953
      %v955 = vpop.f32.mrf.mxu0
      %v956 = vadd.f32 %v927, %v955
      %957 = vmatmul.bf16.gmra.mxu0 %v776
      %v958 = vpop.f32.mrf.mxu0
      %v959 = vadd.f32 %v930, %v958
      %v960 = vpop.f32.mrf.mxu0
      %v961 = vadd.f32 %v932, %v960
      %962 = vmatmul.bf16.gmra.mxu0 %v779
      %v963 = vpop.f32.mrf.mxu0
      %v964 = vadd.f32 %v935, %v963
      %v965 = vpop.f32.mrf.mxu0
      %v966 = vadd.f32 %v937, %v965
      %967 = vdwg.mxu0
      %968 = vmatpush.bf16.msra.mxu0 0
      %969 = vmatpush.bf16.msra.mxu0 0
      %970 = vmatpush.bf16.msra.mxu0 0
      %971 = vmatpush.bf16.msra.mxu0 0
      %972 = vmatpush.bf16.msra.mxu0 0
      %973 = vmatpush.bf16.msra.mxu0 0
      %974 = vmatpush.bf16.msra.mxu0 %v878
      %975 = vmatpush.bf16.msra.mxu0 %v877
      %976 = vmatmul.bf16.gmra.mxu0 %v899
      %v977 = vpop.f32.mrf.mxu0
      %v978 = vadd.f32 %v949, %v977
      %v979 = vpop.f32.mrf.mxu0
      %v980 = vadd.f32 %v951, %v979
      %981 = vmatmul.bf16.gmra.mxu0 %v902
      %v982 = vpop.f32.mrf.mxu0
      %v983 = vadd.f32 %v954, %v982
      %v984 = vpop.f32.mrf.mxu0
      %v985 = vadd.f32 %v956, %v984
      %986 = vmatmul.bf16.gmra.mxu0 %v905
      %v987 = vpop.f32.mrf.mxu0
      %v988 = vadd.f32 %v959, %v987
      %v989 = vpop.f32.mrf.mxu0
      %v990 = vadd.f32 %v961, %v989
      %991 = vmatmul.bf16.gmra.mxu0 %v908
      %v992 = vpop.f32.mrf.mxu0
      %v993 = vadd.f32 %v964, %v992
      %v994 = vpop.f32.mrf.mxu0
      %v995 = vadd.f32 %v966, %v994
      %996 = vdwg.mxu0
      %v997 = vld [vmem:[%s5] sm:$0xf]
      %v998 = vld [vmem:[%s5 + $0x4] sm:$0xf]
      %v999 = vld [vmem:[%s5 + $0x8] sm:$0xf]
      %v1000 = vld [vmem:[%s5 + $0xc] sm:$0xf]
      %v1009 = vunpack.c.l.b16 %v669
      %v1010 = vunpack.c.l.b16 %v670
      %v1011 = vunpack.c.l.b16 %v671
      %v1012 = vunpack.c.l.b16 %v672
      %v1013 = vunpack.c.l.b16 %v673
      %v1014 = vunpack.c.l.b16 %v674
      %v1015 = vunpack.c.l.b16 %v675
      %v1016 = vunpack.c.l.b16 %v676
      %v1017 = vpack.c.b16 %v1010, %v1009
      %v1018 = vpack.c.b16 %v1012, %v1011
      %v1019 = vpack.c.b16 %v1014, %v1013
      %v1020 = vpack.c.b16 %v1016, %v1015
      %v1025 = vunpack.c.l.b16 %v997
      %v1026 = vunpack.c.l.b16 %v998
      %v1027 = vunpack.c.l.b16 %v999
      %v1028 = vunpack.c.l.b16 %v1000
      %v1029 = vpack.c.b16 %v1026, %v1025
      %v1030 = vpack.c.b16 %v1028, %v1027
      %v1034 = vsel %vm897, %v1017, 0
      %v1037 = vsel %vm897, %v1018, 0
      %v1040 = vsel %vm897, %v1019, 0
      %v1043 = vsel %vm897, %v1020, 0
      %1045 = vmatpush.bf16.msra.mxu0 0
      %1046 = vmatpush.bf16.msra.mxu0 0
      %1047 = vmatpush.bf16.msra.mxu0 0
      %1048 = vmatpush.bf16.msra.mxu0 0
      %1049 = vmatpush.bf16.msra.mxu0 0
      %1050 = vmatpush.bf16.msra.mxu0 0
      %1051 = vmatpush.bf16.msra.mxu0 %v1030
      %1052 = vmatpush.bf16.msra.mxu0 %v1029
      %1053 = vmatmul.bf16.gmra.mxu0 %v1034
      %v1054 = vpop.f32.mrf.mxu0
      %v1055 = vadd.f32 0.0, %v1054
      %v1056 = vpop.f32.mrf.mxu0
      %v1057 = vadd.f32 0.0, %v1056
      %1058 = vmatmul.bf16.gmra.mxu0 %v1037
      %v1059 = vpop.f32.mrf.mxu0
      %v1060 = vadd.f32 0.0, %v1059
      %v1061 = vpop.f32.mrf.mxu0
      %v1062 = vadd.f32 0.0, %v1061
      %1063 = vmatmul.bf16.gmra.mxu0 %v1040
      %v1064 = vpop.f32.mrf.mxu0
      %v1065 = vadd.f32 0.0, %v1064
      %v1066 = vpop.f32.mrf.mxu0
      %v1067 = vadd.f32 0.0, %v1066
      %1068 = vmatmul.bf16.gmra.mxu0 %v1043
      %v1069 = vpop.f32.mrf.mxu0
      %v1070 = vadd.f32 0.0, %v1069
      %v1071 = vpop.f32.mrf.mxu0
      %v1072 = vadd.f32 0.0, %v1071
      %1073 = vdwg.mxu0
      %vm1074 = vcmp.ge.f32.partialorder %v1055, 0.0
      %vm1075 = vcmp.ge.f32.partialorder %v1057, 0.0
      %vm1076 = vcmp.ge.f32.partialorder %v1060, 0.0
      %vm1077 = vcmp.ge.f32.partialorder %v1062, 0.0
      %vm1078 = vcmp.ge.f32.partialorder %v1065, 0.0
      %vm1079 = vcmp.ge.f32.partialorder %v1067, 0.0
      %vm1080 = vcmp.ge.f32.partialorder %v1070, 0.0
      %vm1081 = vcmp.ge.f32.partialorder %v1072, 0.0
      %v1082 = vmul.f32 %v1055, 0.1
      %v1083 = vmul.f32 %v1057, 0.1
      %v1084 = vmul.f32 %v1060, 0.1
      %v1085 = vmul.f32 %v1062, 0.1
      %v1086 = vmul.f32 %v1065, 0.1
      %v1087 = vmul.f32 %v1067, 0.1
      %v1088 = vmul.f32 %v1070, 0.1
      %v1089 = vmul.f32 %v1072, 0.1
      %v1090 = vsel %vm1074, %v1055, %v1082
      %v1091 = vsel %vm1075, %v1057, %v1083
      %v1092 = vsel %vm1076, %v1060, %v1084
      %v1093 = vsel %vm1077, %v1062, %v1085
      %v1094 = vsel %vm1078, %v1065, %v1086
      %v1095 = vsel %vm1079, %v1067, %v1087
      %v1096 = vsel %vm1080, %v1070, %v1088
      %v1097 = vsel %vm1081, %v1072, %v1089
      %v1098 = vpack.c.bf16 %v1091, %v1090
      %v1099 = vpack.c.bf16 %v1093, %v1092
      %v1100 = vpack.c.bf16 %v1095, %v1094
      %v1101 = vpack.c.bf16 %v1097, %v1096
      %v1102 = vld [vmem:[%s6] sm:$0xf]
      %v1103 = vld [vmem:[%s6 + $0x4] sm:$0xf]
      %v1104 = vld [vmem:[%s6 + $0x8] sm:$0xf]
      %v1105 = vld [vmem:[%s6 + $0xc] sm:$0xf]
      %v1106 = vld [vmem:[%s6 + $0x10] sm:$0xf]
      %v1107 = vld [vmem:[%s6 + $0x14] sm:$0xf]
      %v1108 = vld [vmem:[%s6 + $0x18] sm:$0xf]
      %v1109 = vld [vmem:[%s6 + $0x1c] sm:$0xf]
      %v1118 = vunpack.c.l.b16 %v1102
      %v1119 = vunpack.c.l.b16 %v1103
      %v1120 = vunpack.c.l.b16 %v1104
      %v1121 = vunpack.c.l.b16 %v1105
      %v1122 = vunpack.c.l.b16 %v1106
      %v1123 = vunpack.c.l.b16 %v1107
      %v1124 = vunpack.c.l.b16 %v1108
      %v1125 = vunpack.c.l.b16 %v1109
      %v1126 = vpack.c.b16 %v1119, %v1118
      %v1127 = vpack.c.b16 %v1121, %v1120
      %v1128 = vpack.c.b16 %v1123, %v1122
      %v1129 = vpack.c.b16 %v1125, %v1124
      %vm1134 = vcmask 523264
      %v1136 = vsel %vm1134, %v1098, 0
      %v1139 = vsel %vm1134, %v1099, 0
      %v1142 = vsel %vm1134, %v1100, 0
      %v1145 = vsel %vm1134, %v1101, 0
      %1147 = vmatpush.bf16.msra.mxu0 0
      %1148 = vmatpush.bf16.msra.mxu0 0
      %1149 = vmatpush.bf16.msra.mxu0 0
      %1150 = vmatpush.bf16.msra.mxu0 0
      %1151 = vmatpush.bf16.msra.mxu0 %v1129
      %1152 = vmatpush.bf16.msra.mxu0 %v1128
      %1153 = vmatpush.bf16.msra.mxu0 %v1127
      %1154 = vmatpush.bf16.msra.mxu0 %v1126
      %1155 = vmatmul.bf16.gmra.mxu0 %v1136
      %v1156 = vpop.f32.mrf.mxu0
      %v1157 = vadd.f32 0.0, %v1156
      %v1158 = vpop.f32.mrf.mxu0
      %v1159 = vadd.f32 0.0, %v1158
      %1160 = vmatmul.bf16.gmra.mxu0 %v1139
      %v1161 = vpop.f32.mrf.mxu0
      %v1162 = vadd.f32 0.0, %v1161
      %v1163 = vpop.f32.mrf.mxu0
      %v1164 = vadd.f32 0.0, %v1163
      %1165 = vmatmul.bf16.gmra.mxu0 %v1142
      %v1166 = vpop.f32.mrf.mxu0
      %v1167 = vadd.f32 0.0, %v1166
      %v1168 = vpop.f32.mrf.mxu0
      %v1169 = vadd.f32 0.0, %v1168
      %1170 = vmatmul.bf16.gmra.mxu0 %v1145
      %v1171 = vpop.f32.mrf.mxu0
      %v1172 = vadd.f32 0.0, %v1171
      %v1173 = vpop.f32.mrf.mxu0
      %v1174 = vadd.f32 0.0, %v1173
      %1175 = vdwg.mxu0
      %v1176 = vld [vmem:[%s654] sm:$0xf]
      %v1177 = vld [vmem:[%s7] sm:$0xf]
      %v1178 = vld [vmem:[%s7 + $0x4] sm:$0xf]
      %v1179 = vld [vmem:[%s7 + $0x8] sm:$0xf]
      %v1180 = vld [vmem:[%s7 + $0xc] sm:$0xf]
      %v1181 = vld [vmem:[%s7 + $0x10] sm:$0xf]
      %v1182 = vld [vmem:[%s7 + $0x14] sm:$0xf]
      %v1183 = vld [vmem:[%s7 + $0x18] sm:$0xf]
      %v1184 = vld [vmem:[%s7 + $0x1c] sm:$0xf]
      %v1185 = vld [vmem:[%s7 + $0x20] sm:$0xf]
      %v1186 = vld [vmem:[%s7 + $0x24] sm:$0xf]
      %v1187 = vld [vmem:[%s7 + $0x28] sm:$0xf]
      %v1188 = vld [vmem:[%s7 + $0x2c] sm:$0xf]
      %v1189 = vld [vmem:[%s7 + $0x30] sm:$0xf]
      %v1190 = vld [vmem:[%s7 + $0x34] sm:$0xf]
      %v1191 = vld [vmem:[%s7 + $0x38] sm:$0xf]
      %v1192 = vld [vmem:[%s7 + $0x3c] sm:$0xf]
      %v1193 = vld [vmem:[%s7 + $0x40] sm:$0xf]
      %v1194 = vld [vmem:[%s7 + $0x44] sm:$0xf]
      %v1195 = vld [vmem:[%s7 + $0x48] sm:$0xf]
      %v1196 = vld [vmem:[%s7 + $0x4c] sm:$0xf]
      %v1197 = vld [vmem:[%s7 + $0x50] sm:$0xf]
      %v1198 = vld [vmem:[%s7 + $0x54] sm:$0xf]
      %v1199 = vld [vmem:[%s7 + $0x58] sm:$0xf]
      %v1200 = vld [vmem:[%s7 + $0x5c] sm:$0xf]
      %v1201 = vld [vmem:[%s7 + $0x60] sm:$0xf]
      %v1202 = vld [vmem:[%s7 + $0x64] sm:$0xf]
      %v1203 = vld [vmem:[%s7 + $0x68] sm:$0xf]
      %v1204 = vld [vmem:[%s7 + $0x6c] sm:$0xf]
      %v1205 = vld [vmem:[%s7 + $0x70] sm:$0xf]
      %v1206 = vld [vmem:[%s7 + $0x74] sm:$0xf]
      %v1207 = vld [vmem:[%s7 + $0x78] sm:$0xf]
      %v1208 = vld [vmem:[%s7 + $0x7c] sm:$0xf]
      %v1209 = vld [vmem:[%s7 + $0x80] sm:$0xf]
      %v1210 = vld [vmem:[%s7 + $0x84] sm:$0xf]
      %v1211 = vld [vmem:[%s7 + $0x88] sm:$0xf]
      %v1212 = vld [vmem:[%s7 + $0x8c] sm:$0xf]
      %v1213 = vld [vmem:[%s7 + $0x90] sm:$0xf]
      %v1214 = vld [vmem:[%s7 + $0x94] sm:$0xf]
      %v1215 = vld [vmem:[%s7 + $0x98] sm:$0xf]
      %v1216 = vld [vmem:[%s7 + $0x9c] sm:$0xf]
      %v1217 = vld [vmem:[%s7 + $0xa0] sm:$0xf]
      %v1218 = vld [vmem:[%s7 + $0xa4] sm:$0xf]
      %v1219 = vld [vmem:[%s7 + $0xa8] sm:$0xf]
      %v1220 = vld [vmem:[%s7 + $0xac] sm:$0xf]
      %v1221 = vld [vmem:[%s7 + $0xb0] sm:$0xf]
      %v1222 = vld [vmem:[%s7 + $0xb4] sm:$0xf]
      %v1223 = vld [vmem:[%s7 + $0xb8] sm:$0xf]
      %v1224 = vld [vmem:[%s7 + $0xbc] sm:$0xf]
      %v1225 = vld [vmem:[%s7 + $0xc0] sm:$0xf]
      %v1226 = vld [vmem:[%s7 + $0xc4] sm:$0xf]
      %v1227 = vld [vmem:[%s7 + $0xc8] sm:$0xf]
      %v1228 = vld [vmem:[%s7 + $0xcc] sm:$0xf]
      %v1229 = vld [vmem:[%s7 + $0xd0] sm:$0xf]
      %v1230 = vld [vmem:[%s7 + $0xd4] sm:$0xf]
      %v1231 = vld [vmem:[%s7 + $0xd8] sm:$0xf]
      %v1232 = vld [vmem:[%s7 + $0xdc] sm:$0xf]
      %v1233 = vld [vmem:[%s7 + $0xe0] sm:$0xf]
      %v1234 = vld [vmem:[%s7 + $0xe4] sm:$0xf]
      %v1235 = vld [vmem:[%s7 + $0xe8] sm:$0xf]
      %v1236 = vld [vmem:[%s7 + $0xec] sm:$0xf]
      %v1237 = vld [vmem:[%s7 + $0xf0] sm:$0xf]
      %v1238 = vld [vmem:[%s7 + $0xf4] sm:$0xf]
      %v1239 = vld [vmem:[%s7 + $0xf8] sm:$0xf]
      %v1240 = vld [vmem:[%s7 + $0xfc] sm:$0xf]
      %v1241 = vld [vmem:[%s8] sm:$0x1]
      %1243 = vst [vmem:[#allocation1] ss:$9 sm:$0xff] %v1176
      %v1244 = vld [vmem:[#allocation1] sm:$0xff]
      %v1245 = vld [vmem:[#allocation1 + $0x9] sm:$0xff]
      %v1246 = vld [vmem:[#allocation1 + $0x12] sm:$0xff]
      %v1247 = vld [vmem:[#allocation1 + $0x1b] sm:$0xff]
      %v1316 = vunpack.c.l.b16 %v1177
      %v1317 = vunpack.c.l.b16 %v1178
      %v1318 = vunpack.c.l.b16 %v1179
      %v1319 = vunpack.c.l.b16 %v1180
      %v1320 = vunpack.c.l.b16 %v1181
      %v1321 = vunpack.c.l.b16 %v1182
      %v1322 = vunpack.c.l.b16 %v1183
      %v1323 = vunpack.c.l.b16 %v1184
      %v1324 = vunpack.c.l.b16 %v1185
      %v1325 = vunpack.c.l.b16 %v1186
      %v1326 = vunpack.c.l.b16 %v1187
      %v1327 = vunpack.c.l.b16 %v1188
      %v1328 = vunpack.c.l.b16 %v1189
      %v1329 = vunpack.c.l.b16 %v1190
      %v1330 = vunpack.c.l.b16 %v1191
      %v1331 = vunpack.c.l.b16 %v1192
      %v1332 = vunpack.c.l.b16 %v1193
      %v1333 = vunpack.c.l.b16 %v1194
      %v1334 = vunpack.c.l.b16 %v1195
      %v1335 = vunpack.c.l.b16 %v1196
      %v1336 = vunpack.c.l.b16 %v1197
      %v1337 = vunpack.c.l.b16 %v1198
      %v1338 = vunpack.c.l.b16 %v1199
      %v1339 = vunpack.c.l.b16 %v1200
      %v1340 = vunpack.c.l.b16 %v1201
      %v1341 = vunpack.c.l.b16 %v1202
      %v1342 = vunpack.c.l.b16 %v1203
      %v1343 = vunpack.c.l.b16 %v1204
      %v1344 = vunpack.c.l.b16 %v1205
      %v1345 = vunpack.c.l.b16 %v1206
      %v1346 = vunpack.c.l.b16 %v1207
      %v1347 = vunpack.c.l.b16 %v1208
      %v1348 = vunpack.c.l.b16 %v1209
      %v1349 = vunpack.c.l.b16 %v1210
      %v1350 = vunpack.c.l.b16 %v1211
      %v1351 = vunpack.c.l.b16 %v1212
      %v1352 = vunpack.c.l.b16 %v1213
      %v1353 = vunpack.c.l.b16 %v1214
      %v1354 = vunpack.c.l.b16 %v1215
      %v1355 = vunpack.c.l.b16 %v1216
      %v1356 = vunpack.c.l.b16 %v1217
      %v1357 = vunpack.c.l.b16 %v1218
      %v1358 = vunpack.c.l.b16 %v1219
      %v1359 = vunpack.c.l.b16 %v1220
      %v1360 = vunpack.c.l.b16 %v1221
      %v1361 = vunpack.c.l.b16 %v1222
      %v1362 = vunpack.c.l.b16 %v1223
      %v1363 = vunpack.c.l.b16 %v1224
      %v1364 = vunpack.c.l.b16 %v1225
      %v1365 = vunpack.c.l.b16 %v1226
      %v1366 = vunpack.c.l.b16 %v1227
      %v1367 = vunpack.c.l.b16 %v1228
      %v1368 = vunpack.c.l.b16 %v1229
      %v1369 = vunpack.c.l.b16 %v1230
      %v1370 = vunpack.c.l.b16 %v1231
      %v1371 = vunpack.c.l.b16 %v1232
      %v1372 = vunpack.c.l.b16 %v1233
      %v1373 = vunpack.c.l.b16 %v1234
      %v1374 = vunpack.c.l.b16 %v1235
      %v1375 = vunpack.c.l.b16 %v1236
      %v1376 = vunpack.c.l.b16 %v1237
      %v1377 = vunpack.c.l.b16 %v1238
      %v1378 = vunpack.c.l.b16 %v1239
      %v1379 = vunpack.c.l.b16 %v1240
      %v1380 = vpack.c.b16 %v1317, %v1316
      %v1381 = vpack.c.b16 %v1319, %v1318
      %v1382 = vpack.c.b16 %v1321, %v1320
      %v1383 = vpack.c.b16 %v1323, %v1322
      %v1384 = vpack.c.b16 %v1325, %v1324
      %v1385 = vpack.c.b16 %v1327, %v1326
      %v1386 = vpack.c.b16 %v1329, %v1328
      %v1387 = vpack.c.b16 %v1331, %v1330
      %v1388 = vpack.c.b16 %v1333, %v1332
      %v1389 = vpack.c.b16 %v1335, %v1334
      %v1390 = vpack.c.b16 %v1337, %v1336
      %v1391 = vpack.c.b16 %v1339, %v1338
      %v1392 = vpack.c.b16 %v1341, %v1340
      %v1393 = vpack.c.b16 %v1343, %v1342
      %v1394 = vpack.c.b16 %v1345, %v1344
      %v1395 = vpack.c.b16 %v1347, %v1346
      %v1396 = vpack.c.b16 %v1349, %v1348
      %v1397 = vpack.c.b16 %v1351, %v1350
      %v1398 = vpack.c.b16 %v1353, %v1352
      %v1399 = vpack.c.b16 %v1355, %v1354
      %v1400 = vpack.c.b16 %v1357, %v1356
      %v1401 = vpack.c.b16 %v1359, %v1358
      %v1402 = vpack.c.b16 %v1361, %v1360
      %v1403 = vpack.c.b16 %v1363, %v1362
      %v1404 = vpack.c.b16 %v1365, %v1364
      %v1405 = vpack.c.b16 %v1367, %v1366
      %v1406 = vpack.c.b16 %v1369, %v1368
      %v1407 = vpack.c.b16 %v1371, %v1370
      %v1408 = vpack.c.b16 %v1373, %v1372
      %v1409 = vpack.c.b16 %v1375, %v1374
      %v1410 = vpack.c.b16 %v1377, %v1376
      %v1411 = vpack.c.b16 %v1379, %v1378
      %1444 = vmatpush.bf16.msra.mxu0 %v1387
      %1445 = vmatpush.bf16.msra.mxu0 %v1386
      %1446 = vmatpush.bf16.msra.mxu0 %v1385
      %1447 = vmatpush.bf16.msra.mxu0 %v1384
      %1448 = vmatpush.bf16.msra.mxu0 %v1383
      %1449 = vmatpush.bf16.msra.mxu0 %v1382
      %1450 = vmatpush.bf16.msra.mxu0 %v1381
      %1451 = vmatpush.bf16.msra.mxu0 %v1380
      %1452 = vmatmul.bf16.gmra.mxu0 %v1244
      %v1453 = vpop.f32.mrf.mxu0
      %v1454 = vadd.f32 %v1241, %v1453
      %v1455 = vpop.f32.mrf.mxu0
      %1456 = vdwg.mxu0
      %1457 = vmatpush.bf16.msra.mxu0 %v1395
      %1458 = vmatpush.bf16.msra.mxu0 %v1394
      %1459 = vmatpush.bf16.msra.mxu0 %v1393
      %1460 = vmatpush.bf16.msra.mxu0 %v1392
      %1461 = vmatpush.bf16.msra.mxu0 %v1391
      %1462 = vmatpush.bf16.msra.mxu0 %v1390
      %1463 = vmatpush.bf16.msra.mxu0 %v1389
      %1464 = vmatpush.bf16.msra.mxu0 %v1388
      %1465 = vmatmul.bf16.gmra.mxu0 %v1245
      %v1466 = vpop.f32.mrf.mxu0
      %v1467 = vadd.f32 %v1454, %v1466
      %v1468 = vpop.f32.mrf.mxu0
      %1469 = vdwg.mxu0
      %1470 = vmatpush.bf16.msra.mxu0 %v1403
      %1471 = vmatpush.bf16.msra.mxu0 %v1402
      %1472 = vmatpush.bf16.msra.mxu0 %v1401
      %1473 = vmatpush.bf16.msra.mxu0 %v1400
      %1474 = vmatpush.bf16.msra.mxu0 %v1399
      %1475 = vmatpush.bf16.msra.mxu0 %v1398
      %1476 = vmatpush.bf16.msra.mxu0 %v1397
      %1477 = vmatpush.bf16.msra.mxu0 %v1396
      %1478 = vmatmul.bf16.gmra.mxu0 %v1246
      %v1479 = vpop.f32.mrf.mxu0
      %v1480 = vadd.f32 %v1467, %v1479
      %v1481 = vpop.f32.mrf.mxu0
      %1482 = vdwg.mxu0
      %1483 = vmatpush.bf16.msra.mxu0 %v1411
      %1484 = vmatpush.bf16.msra.mxu0 %v1410
      %1485 = vmatpush.bf16.msra.mxu0 %v1409
      %1486 = vmatpush.bf16.msra.mxu0 %v1408
      %1487 = vmatpush.bf16.msra.mxu0 %v1407
      %1488 = vmatpush.bf16.msra.mxu0 %v1406
      %1489 = vmatpush.bf16.msra.mxu0 %v1405
      %1490 = vmatpush.bf16.msra.mxu0 %v1404
      %1491 = vmatmul.bf16.gmra.mxu0 %v1247
      %v1492 = vpop.f32.mrf.mxu0
      %v1493 = vadd.f32 %v1480, %v1492
      %v1494 = vpop.f32.mrf.mxu0
      %1495 = vdwg.mxu0
      %v1496 = vmax.f32 %v1493, 0.0
      %v1497 = vpack.c.bf16 %v1496, %v1496
      %v1498 = vld [vmem:[%s9] sm:$0xf]
      %v1499 = vld [vmem:[%s9 + $0x4] sm:$0xf]
      %v1500 = vld [vmem:[%s9 + $0x8] sm:$0xf]
      %v1501 = vld [vmem:[%s9 + $0xc] sm:$0xf]
      %v1502 = vld [vmem:[%s10] sm:$0x1]
      %v1507 = vunpack.c.l.b16 %v1498
      %v1508 = vunpack.c.l.b16 %v1499
      %v1509 = vunpack.c.l.b16 %v1500
      %v1510 = vunpack.c.l.b16 %v1501
      %v1511 = vpack.c.b16 %v1508, %v1507
      %v1512 = vpack.c.b16 %v1510, %v1509
      %v1516 = vsel %vm897, %v1497, 0
      %1518 = vmatpush.bf16.msra.mxu0 0
      %1519 = vmatpush.bf16.msra.mxu0 0
      %1520 = vmatpush.bf16.msra.mxu0 0
      %1521 = vmatpush.bf16.msra.mxu0 0
      %1522 = vmatpush.bf16.msra.mxu0 0
      %1523 = vmatpush.bf16.msra.mxu0 0
      %1524 = vmatpush.bf16.msra.mxu0 %v1512
      %1525 = vmatpush.bf16.msra.mxu0 %v1511
      %1526 = vmatmul.bf16.gmra.mxu0 %v1516
      %v1527 = vpop.f32.mrf.mxu0
      %v1528 = vadd.f32 %v1502, %v1527
      %v1529 = vpop.f32.mrf.mxu0
      %1530 = vdwg.mxu0
      %v1531 = vpack.c.bf16 %v1528, %v1528
      %v1532 = vld [vmem:[%s11] sm:$0xf]
      %v1533 = vld [vmem:[%s11 + $0x4] sm:$0xf]
      %v1534 = vld [vmem:[%s11 + $0x8] sm:$0xf]
      %v1535 = vld [vmem:[%s11 + $0xc] sm:$0xf]
      %v1536 = vld [vmem:[%s12] sm:$0x1]
      %v1541 = vunpack.c.l.b16 %v1532
      %v1542 = vunpack.c.l.b16 %v1533
      %v1543 = vunpack.c.l.b16 %v1534
      %v1544 = vunpack.c.l.b16 %v1535
      %v1545 = vpack.c.b16 %v1542, %v1541
      %v1546 = vpack.c.b16 %v1544, %v1543
      %v1550 = vsel %vm897, %v1531, 0
      %1552 = vmatpush.bf16.msra.mxu0 0
      %1553 = vmatpush.bf16.msra.mxu0 0
      %1554 = vmatpush.bf16.msra.mxu0 0
      %1555 = vmatpush.bf16.msra.mxu0 0
      %1556 = vmatpush.bf16.msra.mxu0 0
      %1557 = vmatpush.bf16.msra.mxu0 0
      %1558 = vmatpush.bf16.msra.mxu0 %v1546
      %1559 = vmatpush.bf16.msra.mxu0 %v1545
      %1560 = vmatmul.bf16.gmra.mxu0 %v1550
      %v1561 = vpop.f32.mrf.mxu0
      %v1562 = vadd.f32 %v1536, %v1561
      %v1563 = vpop.f32.mrf.mxu0
      %1564 = vdwg.mxu0
      %v1565 = vld [vmem:[%s13] sm:$0xf]
      %v1566 = vld [vmem:[%s13 + $0x4] sm:$0xf]
      %v1567 = vld [vmem:[%s13 + $0x8] sm:$0xf]
      %v1568 = vld [vmem:[%s13 + $0xc] sm:$0xf]
      %v1569 = vld [vmem:[%s14] sm:$0x1]
      %v1571 = vperm.slane %v1569, 0
      %v1577 = vunpack.c.l.b16 %v1565
      %v1578 = vunpack.c.l.b16 %v1566
      %v1579 = vunpack.c.l.b16 %v1567
      %v1580 = vunpack.c.l.b16 %v1568
      %v1581 = vpack.c.b16 %v1578, %v1577
      %v1582 = vpack.c.b16 %v1580, %v1579
      %1585 = vmatpush.bf16.msra.mxu0 0
      %1586 = vmatpush.bf16.msra.mxu0 0
      %1587 = vmatpush.bf16.msra.mxu0 0
      %1588 = vmatpush.bf16.msra.mxu0 0
      %1589 = vmatpush.bf16.msra.mxu0 0
      %1590 = vmatpush.bf16.msra.mxu0 0
      %1591 = vmatpush.bf16.msra.mxu0 %v1582
      %1592 = vmatpush.bf16.msra.mxu0 %v1581
      %1593 = vmatmul.bf16.gmra.mxu0 %v1034
      %v1594 = vpop.f32.mrf.mxu0
      %v1595 = vadd.f32 %v1571, %v1594
      %v1596 = vpop.f32.mrf.mxu0
      %v1597 = vadd.f32 %v1571, %v1596
      %1598 = vmatmul.bf16.gmra.mxu0 %v1037
      %v1599 = vpop.f32.mrf.mxu0
      %v1600 = vadd.f32 %v1571, %v1599
      %v1601 = vpop.f32.mrf.mxu0
      %v1602 = vadd.f32 %v1571, %v1601
      %1603 = vmatmul.bf16.gmra.mxu0 %v1040
      %v1604 = vpop.f32.mrf.mxu0
      %v1605 = vadd.f32 %v1571, %v1604
      %v1606 = vpop.f32.mrf.mxu0
      %v1607 = vadd.f32 %v1571, %v1606
      %1608 = vmatmul.bf16.gmra.mxu0 %v1043
      %v1609 = vpop.f32.mrf.mxu0
      %v1610 = vadd.f32 %v1571, %v1609
      %v1611 = vpop.f32.mrf.mxu0
      %v1612 = vadd.f32 %v1571, %v1611
      %1613 = vdwg.mxu0
      %v1614 = vperm.slane %v1562, 0
      %v1615 = vmul.f32 %v1595, %v1614
      %v1616 = vmul.f32 %v1597, %v1614
      %v1617 = vmul.f32 %v1600, %v1614
      %v1618 = vmul.f32 %v1602, %v1614
      %v1619 = vmul.f32 %v1605, %v1614
      %v1620 = vmul.f32 %v1607, %v1614
      %v1621 = vmul.f32 %v1610, %v1614
      %v1622 = vmul.f32 %v1612, %v1614
      %v1623 = vpack.c.bf16 %v1616, %v1615
      %v1624 = vpack.c.bf16 %v1618, %v1617
      %v1625 = vpack.c.bf16 %v1620, %v1619
      %v1626 = vpack.c.bf16 %v1622, %v1621
      %v1627 = vld [vmem:[%s17] sm:$0xf]
      %v1628 = vld [vmem:[%s17 + $0x4] sm:$0xf]
      %v1629 = vld [vmem:[%s17 + $0x8] sm:$0xf]
      %v1630 = vld [vmem:[%s17 + $0xc] sm:$0xf]
      %v1635 = vunpack.c.l.b16 %v1627
      %v1636 = vunpack.c.l.b16 %v1628
      %v1637 = vunpack.c.l.b16 %v1629
      %v1638 = vunpack.c.l.b16 %v1630
      %v1639 = vpack.c.b16 %v1636, %v1635
      %v1640 = vpack.c.b16 %v1638, %v1637
      %v1644 = vsel %vm897, %v1623, 0
      %v1647 = vsel %vm897, %v1624, 0
      %v1650 = vsel %vm897, %v1625, 0
      %v1653 = vsel %vm897, %v1626, 0
      %1655 = vmatpush.bf16.msra.mxu0 0
      %1656 = vmatpush.bf16.msra.mxu0 0
      %1657 = vmatpush.bf16.msra.mxu0 0
      %1658 = vmatpush.bf16.msra.mxu0 0
      %1659 = vmatpush.bf16.msra.mxu0 0
      %1660 = vmatpush.bf16.msra.mxu0 0
      %1661 = vmatpush.bf16.msra.mxu0 %v1640
      %1662 = vmatpush.bf16.msra.mxu0 %v1639
      %1663 = vmatmul.bf16.gmra.mxu0 %v1644
      %v1664 = vpop.f32.mrf.mxu0
      %v1665 = vadd.f32 0.0, %v1664
      %v1666 = vpop.f32.mrf.mxu0
      %v1667 = vadd.f32 0.0, %v1666
      %1668 = vmatmul.bf16.gmra.mxu0 %v1647
      %v1669 = vpop.f32.mrf.mxu0
      %v1670 = vadd.f32 0.0, %v1669
      %v1671 = vpop.f32.mrf.mxu0
      %v1672 = vadd.f32 0.0, %v1671
      %1673 = vmatmul.bf16.gmra.mxu0 %v1650
      %v1674 = vpop.f32.mrf.mxu0
      %v1675 = vadd.f32 0.0, %v1674
      %v1676 = vpop.f32.mrf.mxu0
      %v1677 = vadd.f32 0.0, %v1676
      %1678 = vmatmul.bf16.gmra.mxu0 %v1653
      %v1679 = vpop.f32.mrf.mxu0
      %v1680 = vadd.f32 0.0, %v1679
      %v1681 = vpop.f32.mrf.mxu0
      %v1682 = vadd.f32 0.0, %v1681
      %1683 = vdwg.mxu0
      %vm1684 = vcmask 64512
      %v1685 = vsel %vm1684, %v1665, -inf
      %v1686 = vsel %vm1684, %v1667, -inf
      %v1687 = vsel %vm1684, %v1670, -inf
      %v1688 = vsel %vm1684, %v1672, -inf
      %v1689 = vsel %vm1684, %v1675, -inf
      %v1690 = vmax.f32 %v1685, %v1689
      %v1691 = vsel %vm1684, %v1677, -inf
      %v1692 = vmax.f32 %v1686, %v1691
      %v1693 = vsel %vm1684, %v1680, -inf
      %v1694 = vmax.f32 %v1687, %v1693
      %v1695 = vsel %vm1684, %v1682, -inf
      %v1696 = vmax.f32 %v1688, %v1695
      %v1697 = vmax.f32 %v1690, %v1692
      %v1698 = vmax.f32 %v1694, %v1696
      %v1699 = vmax.f32 %v1697, %v1698
      %v1700 = vrot.slane %v1699, 4
      %v1701 = vmax.f32 %v1699, %v1700
      %v1702 = vrot.slane %v1701, 2
      %v1703 = vmax.f32 %v1701, %v1702
      %v1704 = vrot.slane %v1703, 1
      %v1705 = vmax.f32 %v1703, %v1704
      %v1706 = vsub.f32 %v1665, %v1705
      %v1707 = vsub.f32 %v1667, %v1705
      %v1708 = vsub.f32 %v1670, %v1705
      %v1709 = vsub.f32 %v1672, %v1705
      %v1710 = vsub.f32 %v1675, %v1705
      %v1711 = vsub.f32 %v1677, %v1705
      %v1712 = vsub.f32 %v1680, %v1705
      %v1713 = vsub.f32 %v1682, %v1705
      %v1714 = vmul.f32 %v1706, 1.442695
      %v1715 = vpow.pop %v1714
      %v1716 = vmul.f32 %v1707, 1.442695
      %v1717 = vpow.pop %v1716
      %v1718 = vmul.f32 %v1708, 1.442695
      %v1719 = vpow.pop %v1718
      %v1720 = vmul.f32 %v1709, 1.442695
      %v1721 = vpow.pop %v1720
      %v1722 = vmul.f32 %v1710, 1.442695
      %v1723 = vpow.pop %v1722
      %v1724 = vmul.f32 %v1711, 1.442695
      %v1725 = vpow.pop %v1724
      %v1726 = vmul.f32 %v1712, 1.442695
      %v1727 = vpow.pop %v1726
      %v1728 = vmul.f32 %v1713, 1.442695
      %v1729 = vpow.pop %v1728
      %v1730 = vsel %vm1684, %v1715, 0.0
      %v1731 = vsel %vm1684, %v1717, 0.0
      %v1732 = vadd.f32 %v1730, %v1731
      %v1733 = vsel %vm1684, %v1719, 0.0
      %v1734 = vadd.f32 %v1732, %v1733
      %v1735 = vsel %vm1684, %v1721, 0.0
      %v1736 = vadd.f32 %v1734, %v1735
      %v1737 = vsel %vm1684, %v1723, 0.0
      %v1738 = vadd.f32 %v1736, %v1737
      %v1739 = vsel %vm1684, %v1725, 0.0
      %v1740 = vadd.f32 %v1738, %v1739
      %v1741 = vsel %vm1684, %v1727, 0.0
      %v1742 = vadd.f32 %v1740, %v1741
      %v1743 = vsel %vm1684, %v1729, 0.0
      %v1744 = vadd.f32 %v1742, %v1743
      %v1745 = vrot.slane %v1744, 4
      %v1746 = vadd.f32 %v1744, %v1745
      %v1747 = vrot.slane %v1746, 2
      %v1748 = vadd.f32 %v1746, %v1747
      %v1749 = vrot.slane %v1748, 1
      %v1750 = vadd.f32 %v1748, %v1749
      %v1751 = vrcp.pop %v1750
      %v1752 = vmul.f32 %v1715, %v1751
      %v1753 = vmul.f32 %v1717, %v1751
      %v1754 = vmul.f32 %v1719, %v1751
      %v1755 = vmul.f32 %v1721, %v1751
      %v1756 = vmul.f32 %v1723, %v1751
      %v1757 = vmul.f32 %v1725, %v1751
      %v1758 = vmul.f32 %v1727, %v1751
      %v1759 = vmul.f32 %v1729, %v1751
      %v1760 = vpack.c.bf16 %v1753, %v1752
      %v1761 = vpack.c.bf16 %v1755, %v1754
      %v1762 = vpack.c.bf16 %v1757, %v1756
      %v1763 = vpack.c.bf16 %v1759, %v1758
      %v1764 = vpack.c.bf16 %v1597, %v1595
      %v1765 = vpack.c.bf16 %v1602, %v1600
      %v1766 = vpack.c.bf16 %v1607, %v1605
      %v1767 = vpack.c.bf16 %v1612, %v1610
      %1768 = vxpose.xlu0.c.b16.start [1/8] %v1760, 128
      %1769 = vxpose.xlu0.c.b16.cont [2/8] %v1761, 128
      %1770 = vxpose.xlu0.c.b16.cont [3/8] %v1762, 128
      %1771 = vxpose.xlu0.c.b16.cont [4/8] %v1763, 128
      %1772 = vxpose.xlu0.c.b16.cont [5/8] 0, 128
      %1773 = vxpose.xlu0.c.b16.cont [6/8] 0, 128
      %1774 = vxpose.xlu0.c.b16.cont [7/8] 0, 128
      %1775 = vxpose.xlu0.c.b16.end [8/8] 0, 128
      %v1776 = vpop.trf.xlu0
      %v1777 = vpop.trf.xlu0
      %v1778 = vpop.trf.xlu0
      %v1779 = vpop.trf.xlu0
      %v1780 = vpop.trf.xlu0
      %v1781 = vpop.trf.xlu0
      %v1782 = vpop.trf.xlu0
      %v1783 = vpop.trf.xlu0
      %1788 = vrot.lane.b32.xlu0 %v1764, 96
      %v1789 = vpop.permute.xlu0 %1788
      %1790 = vrot.lane.b32.xlu0 %v1765, 96
      %v1791 = vpop.permute.xlu0 %1790
      %1792 = vrot.lane.b32.xlu0 %v1766, 96
      %v1793 = vpop.permute.xlu0 %1792
      %1794 = vrot.lane.b32.xlu0 %v1767, 96
      %v1795 = vpop.permute.xlu0 %1794
      %v1801 = vsel %vm1134, %v1776, 0
      %1803 = vmatpush.bf16.msra.mxu0 0
      %1804 = vmatpush.bf16.msra.mxu0 0
      %1805 = vmatpush.bf16.msra.mxu0 0
      %1806 = vmatpush.bf16.msra.mxu0 0
      %1807 = vmatpush.bf16.msra.mxu0 %v1795
      %1808 = vmatpush.bf16.msra.mxu0 %v1793
      %1809 = vmatpush.bf16.msra.mxu0 %v1791
      %1810 = vmatpush.bf16.msra.mxu0 %v1789
      %1811 = vmatmul.bf16.gmra.mxu0 %v1801
      %v1812 = vpop.f32.mrf.mxu0
      %v1813 = vadd.f32 0.0, %v1812
      %v1814 = vpop.f32.mrf.mxu0
      %1815 = vdwg.mxu0
      %v1816 = vld [vmem:[%s18] sm:$0xff]
      %v1817 = vmul.f32 %v1813, %v1816
      %v1818 = vsel %vm897, %v1817, 0.0
      %v1819 = vrot.slane %v1818, 4
      %v1820 = vadd.f32 %v1818, %v1819
      %v1821 = vrot.slane %v1820, 2
      %v1822 = vadd.f32 %v1820, %v1821
      %v1823 = vrot.slane %v1822, 1
      %v1824 = vadd.f32 %v1822, %v1823
      %v1825 = vpack.c.bf16 %v1824, %v1824
      %v1826 = vld [vmem:[%s15] sm:$0xf]
      %v1827 = vld [vmem:[%s15 + $0x4] sm:$0xf]
      %v1828 = vld [vmem:[%s15 + $0x8] sm:$0xf]
      %v1829 = vld [vmem:[%s15 + $0xc] sm:$0xf]
      %v1830 = vld [vmem:[%s16] sm:$0x1]
      %v1835 = vunpack.c.l.b16 %v1826
      %v1836 = vunpack.c.l.b16 %v1827
      %v1837 = vunpack.c.l.b16 %v1828
      %v1838 = vunpack.c.l.b16 %v1829
      %v1839 = vpack.c.b16 %v1836, %v1835
      %v1840 = vpack.c.b16 %v1838, %v1837
      %v1844 = vsel %vm897, %v1825, 0
      %1846 = vmatpush.bf16.msra.mxu0 0
      %1847 = vmatpush.bf16.msra.mxu0 0
      %1848 = vmatpush.bf16.msra.mxu0 0
      %1849 = vmatpush.bf16.msra.mxu0 0
      %1850 = vmatpush.bf16.msra.mxu0 0
      %1851 = vmatpush.bf16.msra.mxu0 0
      %1852 = vmatpush.bf16.msra.mxu0 %v1840
      %1853 = vmatpush.bf16.msra.mxu0 %v1839
      %1854 = vmatmul.bf16.gmra.mxu0 %v1844
      %v1855 = vpop.f32.mrf.mxu0
      %v1856 = vadd.f32 %v1830, %v1855
      %v1857 = vpop.f32.mrf.mxu0
      %1858 = vdwg.mxu0
      %v1859 = vunpack.c.l.bf16 %v661
      %v1860 = vunpack.c.l.bf16 %v662
      %v1861 = vunpack.c.l.bf16 %v663
      %v1862 = vunpack.c.l.bf16 %v664
      %v1863 = vunpack.c.l.bf16 %v665
      %v1864 = vunpack.c.l.bf16 %v666
      %v1865 = vunpack.c.l.bf16 %v667
      %v1866 = vunpack.c.l.bf16 %v668
      %v1867 = vadd.f32 %v1859, %v978
      %v1868 = vadd.f32 %v1860, %v980
      %v1869 = vadd.f32 %v1861, %v983
      %v1870 = vadd.f32 %v1862, %v985
      %v1871 = vadd.f32 %v1863, %v988
      %v1872 = vadd.f32 %v1864, %v990
      %v1873 = vadd.f32 %v1865, %v993
      %v1874 = vadd.f32 %v1866, %v995
      %v1875 = vperm.slane %v1856, 0
      %v1876 = vadd.f32 %v1157, %v1875
      %v1877 = vadd.f32 %v1159, %v1875
      %v1878 = vadd.f32 %v1162, %v1875
      %v1879 = vadd.f32 %v1164, %v1875
      %v1880 = vadd.f32 %v1167, %v1875
      %v1881 = vadd.f32 %v1169, %v1875
      %v1882 = vadd.f32 %v1172, %v1875
      %v1883 = vadd.f32 %v1174, %v1875
      %v1884 = vmul.f32 %v1859, %v1876
      %v1885 = vmul.f32 %v1860, %v1877
      %v1886 = vmul.f32 %v1861, %v1878
      %v1887 = vmul.f32 %v1862, %v1879
      %v1888 = vmul.f32 %v1863, %v1880
      %v1889 = vmul.f32 %v1864, %v1881
      %v1890 = vmul.f32 %v1865, %v1882
      %v1891 = vmul.f32 %v1866, %v1883
      %v1892 = vadd.f32 %v1867, %v1884
      %v1893 = vadd.f32 %v1868, %v1885
      %v1894 = vadd.f32 %v1869, %v1886
      %v1895 = vadd.f32 %v1870, %v1887
      %v1896 = vadd.f32 %v1871, %v1888
      %v1897 = vadd.f32 %v1872, %v1889
      %v1898 = vadd.f32 %v1873, %v1890
      %v1899 = vadd.f32 %v1874, %v1891
      %1901 = vrot.lane.b32.xlu0 %v1875, 32
      %v1902 = vpop.permute.xlu0 %1901
      %v1904 = vadd.f32 %v1157, %v1902
      %v1905 = vadd.f32 %v1159, %v1902
      %v1906 = vadd.f32 %v1162, %v1902
      %v1907 = vadd.f32 %v1164, %v1902
      %v1908 = vadd.f32 %v1167, %v1902
      %v1909 = vadd.f32 %v1169, %v1902
      %v1910 = vadd.f32 %v1172, %v1902
      %v1911 = vadd.f32 %v1174, %v1902
      %1920 = vrot.lane.b32.xlu0 %v1904, 96
      %v1921 = vpop.permute.xlu0 %1920
      %1922 = vrot.lane.b32.xlu0 %v1905, 96
      %v1923 = vpop.permute.xlu0 %1922
      %1924 = vrot.lane.b32.xlu0 %v1906, 96
      %v1925 = vpop.permute.xlu0 %1924
      %1926 = vrot.lane.b32.xlu0 %v1907, 96
      %v1927 = vpop.permute.xlu0 %1926
      %1928 = vrot.lane.b32.xlu0 %v1908, 96
      %v1929 = vpop.permute.xlu0 %1928
      %1930 = vrot.lane.b32.xlu0 %v1909, 96
      %v1931 = vpop.permute.xlu0 %1930
      %1932 = vrot.lane.b32.xlu0 %v1910, 96
      %v1933 = vpop.permute.xlu0 %1932
      %1934 = vrot.lane.b32.xlu0 %v1911, 96
      %v1935 = vpop.permute.xlu0 %1934
      %v1944 = vadd.f32 %v1892, %v1921
      %v1945 = vadd.f32 %v1893, %v1923
      %v1946 = vadd.f32 %v1894, %v1925
      %v1947 = vadd.f32 %v1895, %v1927
      %v1948 = vadd.f32 %v1896, %v1929
      %v1949 = vadd.f32 %v1897, %v1931
      %v1950 = vadd.f32 %v1898, %v1933
      %v1951 = vadd.f32 %v1899, %v1935
      %vm1952 = vcmp.ge.f32.partialorder %v1944, 0.0
      %vm1953 = vcmp.ge.f32.partialorder %v1945, 0.0
      %vm1954 = vcmp.ge.f32.partialorder %v1946, 0.0
      %vm1955 = vcmp.ge.f32.partialorder %v1947, 0.0
      %vm1956 = vcmp.ge.f32.partialorder %v1948, 0.0
      %vm1957 = vcmp.ge.f32.partialorder %v1949, 0.0
      %vm1958 = vcmp.ge.f32.partialorder %v1950, 0.0
      %vm1959 = vcmp.ge.f32.partialorder %v1951, 0.0
      %v1960 = vmul.f32 %v1944, 0.1
      %v1961 = vmul.f32 %v1945, 0.1
      %v1962 = vmul.f32 %v1946, 0.1
      %v1963 = vmul.f32 %v1947, 0.1
      %v1964 = vmul.f32 %v1948, 0.1
      %v1965 = vmul.f32 %v1949, 0.1
      %v1966 = vmul.f32 %v1950, 0.1
      %v1967 = vmul.f32 %v1951, 0.1
      %v1968 = vsel %vm1952, %v1944, %v1960
      %v1969 = vsel %vm1953, %v1945, %v1961
      %v1970 = vsel %vm1954, %v1946, %v1962
      %v1971 = vsel %vm1955, %v1947, %v1963
      %v1972 = vsel %vm1956, %v1948, %v1964
      %v1973 = vsel %vm1957, %v1949, %v1965
      %v1974 = vsel %vm1958, %v1950, %v1966
      %v1975 = vsel %vm1959, %v1951, %v1967
      %v1976 = vpack.c.bf16 %v1968, %v1968
      %v1977 = vpack.c.bf16 %v1969, %v1969
      %v1978 = vpack.c.bf16 %v1970, %v1970
      %v1979 = vpack.c.bf16 %v1971, %v1971
      %v1980 = vpack.c.bf16 %v1972, %v1972
      %v1981 = vpack.c.bf16 %v1973, %v1973
      %v1982 = vpack.c.bf16 %v1974, %v1974
      %v1983 = vpack.c.bf16 %v1975, %v1975
      %vm1984 = vcmask 257024
      %1985 = vst.msk [vmem:[%s659] sm:$0xf] %vm1984, %v1976
      %1986 = vst.msk [vmem:[%s659 + $0x4] sm:$0xf] %vm1984, %v1977
      %1987 = vst.msk [vmem:[%s659 + $0x8] sm:$0xf] %vm1984, %v1978
      %1988 = vst.msk [vmem:[%s659 + $0xc] sm:$0xf] %vm1984, %v1979
      %1989 = vst.msk [vmem:[%s659 + $0x10] sm:$0xf] %vm1984, %v1980
      %1990 = vst.msk [vmem:[%s659 + $0x14] sm:$0xf] %vm1984, %v1981
      %1991 = vst.msk [vmem:[%s659 + $0x18] sm:$0xf] %vm1984, %v1982
      %1992 = vst.msk [vmem:[%s659 + $0x1c] sm:$0xf] %vm1984, %v1983
      %p1993 = scmp.lt.s32.totalorder %s30, 1
      %s1994 = scalar_select %p1993, %s30, 1
      %s1995 = smul.addr %s1994, 8
      %s1996 = smul.addr %s1995, 4
      %s1997 = scalar_lea.vmem %s19, %s1996
      // Predicated region
      $region97: #{dgb_forward.7} parent=95 // pred_check
        %p1998 = pneg %p467
      $region98: #{dgb_forward.7} parent=95 // pred_check_branch
        %2000 = sbr.rel (%p1998) target = $region100
      $region99: #{dgb_forward.7} parent=95 // pred_region
        _
      $region100: #{dgb_forward.7} parent=95 // pred_fallthru
        _
    $region96: #{dgb_forward.7} parent=5 // pred_fallthru
      _
    %p2001 = scmp.le.s32.totalorder 2, %s25
    // Predicated region
    $region101: #{dgb_forward.7} parent=5 // pred_check
      %p2002 = pneg %p2001
    $region102: #{dgb_forward.7} parent=5 // pred_check_branch
      %2004 = sbr.rel (%p2002) target = $region104
    $region103: #{dgb_forward.7} parent=5 // pred_region
      %s2005 = ssub.s32 %s25, 2
      // Predicated region
      $region105: #{dgb_forward.7} parent=103 // pred_check
        %p2006 = pneg %p473
      $region106: #{dgb_forward.7} parent=103 // pred_check_branch
        %2008 = sbr.rel (%p2006) target = $region108
      $region107: #{dgb_forward.7} parent=103 // pred_region
        %p2009 = scmp.lt.s32.totalorder %s31, 1
        %s2010 = scalar_select %p2009, %s31, 1
        %s2011 = smul.addr %s2010, 8
        %s2012 = smul.addr %s2011, 4
        %s2013 = scalar_lea.vmem %s19, %s2012
      $region108: #{dgb_forward.7} parent=103 // pred_fallthru
        _
    $region104: #{dgb_forward.7} parent=5 // pred_fallthru
      _
  $region6: #{dgb_forward.7} parent=0 // loop_footer
    %s29 = sadd.s32 1, %s25
  $region7: #{dgb_forward.7} parent=0 // loop_footer_branch
    %24 = sbr.rel target = $region3
  $region8: #{dgb_forward.7} parent=0 // loop_exit
    _

// kernel: dgb_forward.11
$region0: #{dgb_forward.11}
  #allocation0 [shape = 'u32[]', space=smem, size = 0x4, offset = 0x4, fixed_abs, tag = 'smem constant byte address 0x4 - core index']
  #allocation1 [shape = 'u32[72,128]{1,0:T(1,128)}', space=vmem, size = 0x9000, scoped, tag = 'internal scratch']
  #allocation2 [shape = 'bf16[8,8,288]{2,1,0:T(8,128)(2,1)}', space=vmem, size = 0xc000, scoped, tag = 'scratch operand']
  %s0 = inlined_call_operand.vmem [shape: bf16[2,8,8,32], index: 0, kind: input, shape index: {}]
  %s1 = inlined_call_operand.vmem [shape: bf16[288,32], index: 1, kind: input, shape index: {}]
  %s2 = inlined_call_operand.vmem [shape: f32[1,32], index: 2, kind: input, shape index: {}]
  %s3 = inlined_call_operand.vmem [shape: f32[2,64,32], index: 3, kind: input, shape index: {}]
  %s4 = inlined_call_operand.hbm [shape: f32[2,64,32], index: 4, kind: output, shape index: {}]
  %s5 = sld [smem:[#allocation0]]
  $region49: #{dgb_forward.11} parent=0
    _
  %s7 = ssub.s32 1, %s5
  %s8 = scalar_select 0, %s7, %s5
  $region1: #{dgb_forward.11} parent=0
    #allocation3 [shape = 'u8[65536]{0}', space=vmem, size = 0x10000, scoped, tag = 'output window, operand 0']
    #allocation4 [shape = 's32[2]{0}', space=sflag, size = 0x8, scoped, tag = 'scoped memory for dgb_forward.11']
    %9 = vsyncpa [#allocation4], 0
    %s10 = scalar_lea.sflag [#allocation4], 1
    %11 = vsyncpa %s10, 0
    loop: start=0, step=1, limit=4
    $region2: #{dgb_forward.11} parent=1 // loop_pre_header
      _
    $region3: #{dgb_forward.11} parent=1 // loop_header
      %s13 = sphi 0, %s17
      %p14 = scmp.ge.s32.totalorder %s13, 4
      %s23 = sphi 0, %s25
      %s26 = sphi 0, %s23
      %s27 = sphi 0, %s26
      %s43 = sphi 0, %s27
      %s47 = sphi 0, %s47
      %s49 = sphi 0, %s47
      %s50 = sphi 0, %s49
      %s64 = sphi 0, %s50
      %s68 = sphi 0, %s68
      %s70 = sphi 0, %s68
      %s71 = sphi 0, %s70
      %s85 = sphi 0, %s71
      %s91 = sphi 0, %s93
      %s94 = sphi 0, %s91
      %s95 = sphi 0, %s94
      %s111 = sphi 0, %s95
      %s117 = sphi 0, %s119
      %s120 = sphi 0, %s117
      %s121 = sphi 0, %s120
      %s137 = sphi 0, %s121
    $region4: #{dgb_forward.11} parent=1 // loop_header_branch
      %16 = sbr.rel (%p14) target = $region8
    $region5: #{dgb_forward.11} parent=1 // loop_body
      %s18 = ssub.s32 %s13, 1
      %s19 = ssub.s32 %s13, 2
      %s20 = sadd.s32 %s13, 1
      %s21 = ssub.s32 %s13, %s20
      %p22 = scmp.eq.s32.totalorder %s21, 0
      %s24 = sadd.s32 %s23, 1
      %s25 = scalar_select %p22, %s23, %s24
      %p28 = pneg %p22
      %p29 = scmp.eq.s32.totalorder %s13, 1
      %p30 = por %p28, %p29
      %p31 = scmp.ne.s32.totalorder %s23, %s26
      %p32 = scmp.eq.s32.totalorder %s13, 0
      %p33 = por %p31, %p32
      %p34 = scmp.ne.s32.totalorder %s23, %s26
      %p35 = scmp.eq.s32.totalorder %s18, 1
      %p36 = por %p34, %p35
      %p37 = scmp.ne.s32.totalorder %s26, %s27
      %p38 = scmp.eq.s32.totalorder %s18, 0
      %p39 = por %p37, %p38
      %p40 = scmp.ne.s32.totalorder %s26, %s27
      %p41 = scmp.eq.s32.totalorder %s19, 1
      %p42 = por %p40, %p41
      %p44 = scmp.ne.s32.totalorder %s27, %s43
      %p45 = scmp.eq.s32.totalorder %s19, 0
      %p46 = por %p44, %p45
      %s48 = sadd.s32 %s47, 1
      %p51 = scmp.eq.s32.totalorder %s13, 1
      %p52 = scmp.ne.s32.totalorder %s47, %s49
      %p53 = scmp.eq.s32.totalorder %s13, 0
      %p54 = por %p52, %p53
      %p55 = scmp.ne.s32.totalorder %s47, %s49
      %p56 = scmp.eq.s32.totalorder %s18, 1
      %p57 = por %p55, %p56
      %p58 = scmp.ne.s32.totalorder %s49, %s50
      %p59 = scmp.eq.s32.totalorder %s18, 0
      %p60 = por %p58, %p59
      %p61 = scmp.ne.s32.totalorder %s49, %s50
      %p62 = scmp.eq.s32.totalorder %s19, 1
      %p63 = por %p61, %p62
      %p65 = scmp.ne.s32.totalorder %s50, %s64
      %p66 = scmp.eq.s32.totalorder %s19, 0
      %p67 = por %p65, %p66
      %s69 = sadd.s32 %s68, 1
      %p72 = scmp.eq.s32.totalorder %s13, 1
      %p73 = scmp.ne.s32.totalorder %s68, %s70
      %p74 = scmp.eq.s32.totalorder %s13, 0
      %p75 = por %p73, %p74
      %p76 = scmp.ne.s32.totalorder %s68, %s70
      %p77 = scmp.eq.s32.totalorder %s18, 1
      %p78 = por %p76, %p77
      %p79 = scmp.ne.s32.totalorder %s70, %s71
      %p80 = scmp.eq.s32.totalorder %s18, 0
      %p81 = por %p79, %p80
      %p82 = scmp.ne.s32.totalorder %s70, %s71
      %p83 = scmp.eq.s32.totalorder %s19, 1
      %p84 = por %p82, %p83
      %p86 = scmp.ne.s32.totalorder %s71, %s85
      %p87 = scmp.eq.s32.totalorder %s19, 0
      %p88 = por %p86, %p87
      %s89 = ssub.s32 %s13, %s20
      %p90 = scmp.eq.s32.totalorder %s89, 0
      %s92 = sadd.s32 %s91, 1
      %s93 = scalar_select %p90, %s91, %s92
      %p96 = pneg %p90
      %p97 = scmp.eq.s32.totalorder %s13, 1
      %p98 = por %p96, %p97
      %p99 = scmp.ne.s32.totalorder %s91, %s94
      %p100 = scmp.eq.s32.totalorder %s13, 0
      %p101 = por %p99, %p100
      %p102 = scmp.ne.s32.totalorder %s91, %s94
      %p103 = scmp.eq.s32.totalorder %s18, 1
      %p104 = por %p102, %p103
      %p105 = scmp.ne.s32.totalorder %s94, %s95
      %p106 = scmp.eq.s32.totalorder %s18, 0
      %p107 = por %p105, %p106
      %p108 = scmp.ne.s32.totalorder %s94, %s95
      %p109 = scmp.eq.s32.totalorder %s19, 1
      %p110 = por %p108, %p109
      %p112 = scmp.ne.s32.totalorder %s95, %s111
      %p113 = scmp.eq.s32.totalorder %s19, 0
      %p114 = por %p112, %p113
      %s115 = ssub.s32 %s13, %s20
      %p116 = scmp.eq.s32.totalorder %s115, 0
      %s118 = sadd.s32 %s117, 1
      %s119 = scalar_select %p116, %s117, %s118
      %p122 = pneg %p116
      %p123 = scmp.eq.s32.totalorder %s13, 1
      %p124 = por %p122, %p123
      %p125 = scmp.ne.s32.totalorder %s117, %s120
      %p126 = scmp.eq.s32.totalorder %s13, 0
      %p127 = por %p125, %p126
      %p128 = scmp.ne.s32.totalorder %s117, %s120
      %p129 = scmp.eq.s32.totalorder %s18, 1
      %p130 = por %p128, %p129
      %p131 = scmp.ne.s32.totalorder %s120, %s121
      %p132 = scmp.eq.s32.totalorder %s18, 0
      %p133 = por %p131, %p132
      %p134 = scmp.ne.s32.totalorder %s120, %s121
      %p135 = scmp.eq.s32.totalorder %s19, 1
      %p136 = por %p134, %p135
      %p138 = scmp.ne.s32.totalorder %s121, %s137
      %p139 = scmp.eq.s32.totalorder %s19, 0
      %p140 = por %p138, %p139
      %p141 = scmp.le.s32.totalorder 1, %s13
      %p142 = scmp.lt.s32.totalorder %s13, 3
      %p143 = pnand %p141, %p142
      %p144 = pneg %p143
      // Predicated region
      $region9: #{dgb_forward.11} parent=5 // pred_check
        _
      $region10: #{dgb_forward.11} parent=5 // pred_check_branch
        %146 = sbr.rel (%p143) target = $region12
      $region11: #{dgb_forward.11} parent=5 // pred_region
        %s147 = ssub.s32 %s13, 1
        // Predicated region
        $region13: #{dgb_forward.11} parent=11 // pred_check
          %p148 = pneg %p60
        $region14: #{dgb_forward.11} parent=11 // pred_check_branch
          %150 = sbr.rel (%p148) target = $region16
        $region15: #{dgb_forward.11} parent=11 // pred_region
          _
        $region16: #{dgb_forward.11} parent=11 // pred_fallthru
          _
        // Predicated region
        $region17: #{dgb_forward.11} parent=11 // pred_check
          %p151 = pneg %p81
        $region18: #{dgb_forward.11} parent=11 // pred_check_branch
          %153 = sbr.rel (%p151) target = $region20
        $region19: #{dgb_forward.11} parent=11 // pred_region
          _
        $region20: #{dgb_forward.11} parent=11 // pred_fallthru
          _
      $region12: #{dgb_forward.11} parent=5 // pred_fallthru
        _
      %p154 = scmp.lt.s32.totalorder %s13, 2
      // Predicated region
      $region21: #{dgb_forward.11} parent=5 // pred_check
        %p155 = pneg %p154
      $region22: #{dgb_forward.11} parent=5 // pred_check_branch
        %157 = sbr.rel (%p155) target = $region24
      $region23: #{dgb_forward.11} parent=5 // pred_region
        // Predicated region
        $region25: #{dgb_forward.11} parent=23 // pred_check
          %p158 = pneg %p33
        $region26: #{dgb_forward.11} parent=23 // pred_check_branch
          %160 = sbr.rel (%p158) target = $region28
        $region27: #{dgb_forward.11} parent=23 // pred_region
          %p161 = scmp.lt.s32.totalorder %s13, 1
          %s162 = scalar_select %p161, %s13, 1
          %s163 = smul.addr %s162, 8
          %s164 = smul.addr %s163, 4
          %s165 = scalar_lea.vmem %s0, %s164
        $region28: #{dgb_forward.11} parent=23 // pred_fallthru
          _
        // Predicated region
        $region29: #{dgb_forward.11} parent=23 // pred_check
          %p166 = pneg %p101
        $region30: #{dgb_forward.11} parent=23 // pred_check_branch
          %168 = sbr.rel (%p166) target = $region32
        $region31: #{dgb_forward.11} parent=23 // pred_region
          %p169 = scmp.lt.s32.totalorder %s13, 1
          %s170 = scalar_select %p169, %s13, 1
          %s171 = smul.addr %s170, 8
          %s172 = smul.addr %s171, 8
          %s173 = scalar_lea.vmem %s3, %s172
        $region32: #{dgb_forward.11} parent=23 // pred_fallthru
          _
      $region24: #{dgb_forward.11} parent=5 // pred_fallthru
        _
      %p174 = scmp.le.s32.totalorder 1, %s13
      %p175 = scmp.lt.s32.totalorder %s13, 3
      %p176 = pnand %p174, %p175
      %p177 = pneg %p176
      // Predicated region
      $region33: #{dgb_forward.11} parent=5 // pred_check
        _
      $region34: #{dgb_forward.11} parent=5 // pred_check_branch
        %179 = sbr.rel (%p176) target = $region36
      $region35: #{dgb_forward.11} parent=5 // pred_region
        %s180 = ssub.s32 %s13, 1
        %p181 = scmp.lt.s32.totalorder %s18, 1
        %s182 = scalar_select %p181, %s18, 1
        %s183 = smul.addr %s182, 8
        %s184 = smul.addr %s183, 4
        %s185 = scalar_lea.vmem %s0, %s184
        %p186 = pneg %p39
        %p187 = pneg %p36
        %p188 = pneg %p60
        %p189 = pneg %p57
        %p190 = pneg %p81
        %p191 = pneg %p78
        %p192 = scmp.lt.s32.totalorder %s18, 1
        %s193 = scalar_select %p192, %s18, 1
        %s194 = smul.addr %s193, 8
        %s195 = smul.addr %s194, 8
        %s196 = scalar_lea.vmem %s3, %s195
        %p197 = pneg %p107
        %p198 = pneg %p104
        %p199 = pneg %p133
        %p200 = pneg %p130
        %s201 = sand.u32 %s120, 1
        %s202 = scalar_lea.sflag [#allocation4], %s201
        %s203 = sand.u32 %s120, 1
        %s204 = smul.addr %s203, 64
        %s205 = scalar_lea.vmem [#allocation3], %s204
        %p206 = scmp.lt.s32.totalorder %s18, 1
        %s207 = scalar_select %p206, %s18, 1
        %s208 = smul.addr %s207, 8
        %s209 = smul.addr %s208, 4
        %s210 = scalar_lea.vmem %s0, %s209
        %p211 = scmp.lt.s32.totalorder %s18, 1
        %s212 = scalar_select %p211, %s18, 1
        %s213 = smul.addr %s212, 8
        %s214 = smul.addr %s213, 8
        %s215 = scalar_lea.vmem %s3, %s214
        %217 = vst [vmem:[#allocation2] sm:$0xff] 0
        %vm218 = vcmask 257024
        %219 = vst.msk [vmem:[#allocation2 + $0x8] sm:$0xf] %vm218, 0
        %220 = vst [vmem:[#allocation2 + $0xc] sm:$0xff] 0
        %221 = vst.msk [vmem:[#allocation2 + $0x14] sm:$0xf] %vm218, 0
        %222 = vst [vmem:[#allocation2 + $0x18] sm:$0xff] 0
        %223 = vst.msk [vmem:[#allocation2 + $0x20] sm:$0xf] %vm218, 0
        %224 = vst [vmem:[#allocation2 + $0x24] sm:$0xff] 0
        %225 = vst.msk [vmem:[#allocation2 + $0x2c] sm:$0xf] %vm218, 0
        %226 = vst [vmem:[#allocation2 + $0x30] sm:$0xff] 0
        %227 = vst.msk [vmem:[#allocation2 + $0x38] sm:$0xf] %vm218, 0
        %228 = vst [vmem:[#allocation2 + $0x3c] sm:$0xff] 0
        %229 = vst.msk [vmem:[#allocation2 + $0x44] sm:$0xf] %vm218, 0
        %230 = vst [vmem:[#allocation2 + $0x48] sm:$0xff] 0
        %231 = vst.msk [vmem:[#allocation2 + $0x50] sm:$0xf] %vm218, 0
        %232 = vst [vmem:[#allocation2 + $0x54] sm:$0xff] 0
        %233 = vst.msk [vmem:[#allocation2 + $0x5c] sm:$0xf] %vm218, 0
        %v234 = vld [vmem:[%s210] sm:$0xf]
        %v235 = vld [vmem:[%s210 + $0x4] sm:$0xf]
        %v236 = vld [vmem:[%s210 + $0x8] sm:$0xf]
        %v237 = vld [vmem:[%s210 + $0xc] sm:$0xf]
        %v238 = vld [vmem:[%s210 + $0x10] sm:$0xf]
        %v239 = vld [vmem:[%s210 + $0x14] sm:$0xf]
        %v240 = vld [vmem:[%s210 + $0x18] sm:$0xf]
        %v241 = vld [vmem:[%s210 + $0x1c] sm:$0xf]
        %v243 = vshrl.u32 %v234, 16
        %v245 = vrot.slane %v243, 7
        %v246 = vshll.u32 %v234, 16
        %v248 = vor.u32 %v245, %v246
        %v250 = vshrl.u32 %v235, 16
        %v252 = vrot.slane %v250, 7
        %v253 = vshll.u32 %v235, 16
        %v255 = vor.u32 %v252, %v253
        %v257 = vshrl.u32 %v236, 16
        %v259 = vrot.slane %v257, 7
        %v260 = vshll.u32 %v236, 16
        %v262 = vor.u32 %v259, %v260
        %v264 = vshrl.u32 %v237, 16
        %v266 = vrot.slane %v264, 7
        %v267 = vshll.u32 %v237, 16
        %v269 = vor.u32 %v266, %v267
        %v271 = vshrl.u32 %v238, 16
        %v273 = vrot.slane %v271, 7
        %v274 = vshll.u32 %v238, 16
        %v276 = vor.u32 %v273, %v274
        %v278 = vshrl.u32 %v239, 16
        %v280 = vrot.slane %v278, 7
        %v281 = vshll.u32 %v239, 16
        %v283 = vor.u32 %v280, %v281
        %v285 = vshrl.u32 %v240, 16
        %v287 = vrot.slane %v285, 7
        %v288 = vshll.u32 %v240, 16
        %v290 = vor.u32 %v287, %v288
        %s298 = scalar_lea.vmem [#allocation2], 12
        %vm299 = vcmask 257024
        %vm300 = vsmask.f32 7938
        %vm301 = vmand %vm299, %vm300
        %v302 = vld [vmem:[%s298] sm:$0xf]
        %v303 = vsel %vm301, %v248, %v302
        %304 = vst [vmem:[%s298] sm:$0xf] %v303
        %v305 = vld [vmem:[%s298 + $0xc] sm:$0xf]
        %v306 = vsel %vm301, %v255, %v305
        %307 = vst [vmem:[%s298 + $0xc] sm:$0xf] %v306
        %v308 = vld [vmem:[%s298 + $0x18] sm:$0xf]
        %v309 = vsel %vm301, %v262, %v308
        %310 = vst [vmem:[%s298 + $0x18] sm:$0xf] %v309
        %v311 = vld [vmem:[%s298 + $0x24] sm:$0xf]
        %v312 = vsel %vm301, %v269, %v311
        %313 = vst [vmem:[%s298 + $0x24] sm:$0xf] %v312
        %v314 = vld [vmem:[%s298 + $0x30] sm:$0xf]
        %v315 = vsel %vm301, %v276, %v314
        %316 = vst [vmem:[%s298 + $0x30] sm:$0xf] %v315
        %v317 = vld [vmem:[%s298 + $0x3c] sm:$0xf]
        %v318 = vsel %vm301, %v283, %v317
        %319 = vst [vmem:[%s298 + $0x3c] sm:$0xf] %v318
        %v320 = vld [vmem:[%s298 + $0x48] sm:$0xf]
        %v321 = vsel %vm301, %v290, %v320
        %322 = vst [vmem:[%s298 + $0x48] sm:$0xf] %v321
        %330 = vrot.lane.b32.xlu0 %v234, 32
        %v331 = vpop.permute.xlu0 %330
        %332 = vrot.lane.b32.xlu0 %v235, 32
        %v333 = vpop.permute.xlu0 %332
        %334 = vrot.lane.b32.xlu0 %v236, 32
        %v335 = vpop.permute.xlu0 %334
        %336 = vrot.lane.b32.xlu0 %v237, 32
        %v337 = vpop.permute.xlu0 %336
        %338 = vrot.lane.b32.xlu0 %v238, 32
        %v339 = vpop.permute.xlu0 %338
        %340 = vrot.lane.b32.xlu0 %v239, 32
        %v341 = vpop.permute.xlu0 %340
        %342 = vrot.lane.b32.xlu0 %v240, 32
        %v343 = vpop.permute.xlu0 %342
        %vm351 = vcmask 519424
        %352 = vst.msk [vmem:[%s298] sm:$0xf] %vm351, %v331
        %353 = vst.msk [vmem:[%s298 + $0xc] sm:$0xf] %vm351, %v333
        %354 = vst.msk [vmem:[%s298 + $0x18] sm:$0xf] %vm351, %v335
        %355 = vst.msk [vmem:[%s298 + $0x24] sm:$0xf] %vm351, %v337
        %356 = vst.msk [vmem:[%s298 + $0x30] sm:$0xf] %vm351, %v339
        %357 = vst.msk [vmem:[%s298 + $0x3c] sm:$0xf] %vm351, %v341
        %358 = vst.msk [vmem:[%s298 + $0x48] sm:$0xf] %vm351, %v343
        %v359 = vrot.slane %v243, 4
        %v360 = vrot.slane %v246, 5
        %v361 = vor.u32 %v359, %v360
        %v362 = vrot.slane %v361, 4
        %v363 = vrot.slane %v250, 4
        %v364 = vrot.slane %v253, 5
        %v365 = vor.u32 %v363, %v364
        %v366 = vrot.slane %v365, 4
        %v367 = vrot.slane %v257, 4
        %v368 = vrot.slane %v260, 5
        %v369 = vor.u32 %v367, %v368
        %v370 = vrot.slane %v369, 4
        %v371 = vrot.slane %v264, 4
        %v372 = vrot.slane %v267, 5
        %v373 = vor.u32 %v371, %v372
        %v374 = vrot.slane %v373, 4
        %v375 = vrot.slane %v271, 4
        %v376 = vrot.slane %v274, 5
        %v377 = vor.u32 %v375, %v376
        %v378 = vrot.slane %v377, 4
        %v379 = vrot.slane %v278, 4
        %v380 = vrot.slane %v281, 5
        %v381 = vor.u32 %v379, %v380
        %v382 = vrot.slane %v381, 4
        %v383 = vrot.slane %v285, 4
        %v384 = vrot.slane %v288, 5
        %v385 = vor.u32 %v383, %v384
        %v386 = vrot.slane %v385, 4
        %387 = vrot.lane.b32.xlu0 %v362, 64
        %v388 = vpop.permute.xlu0 %387
        %389 = vrot.lane.b32.xlu0 %v366, 64
        %v390 = vpop.permute.xlu0 %389
        %391 = vrot.lane.b32.xlu0 %v370, 64
        %v392 = vpop.permute.xlu0 %391
        %393 = vrot.lane.b32.xlu0 %v374, 64
        %v394 = vpop.permute.xlu0 %393
        %395 = vrot.lane.b32.xlu0 %v378, 64
        %v396 = vpop.permute.xlu0 %395
        %397 = vrot.lane.b32.xlu0 %v382, 64
        %v398 = vpop.permute.xlu0 %397
        %399 = vrot.lane.b32.xlu0 %v386, 64
        %v400 = vpop.permute.xlu0 %399
        %vm408 = vcmask 781824
        %vm409 = vsmask.f32 3328
        %vm410 = vmand %vm408, %vm409
        %v411 = vld [vmem:[%s298] sm:$0xf]
        %v412 = vsel %vm410, %v388, %v411
        %413 = vst [vmem:[%s298] sm:$0xf] %v412
        %v414 = vld [vmem:[%s298 + $0xc] sm:$0xf]
        %v415 = vsel %vm410, %v390, %v414
        %416 = vst [vmem:[%s298 + $0xc] sm:$0xf] %v415
        %v417 = vld [vmem:[%s298 + $0x18] sm:$0xf]
        %v418 = vsel %vm410, %v392, %v417
        %419 = vst [vmem:[%s298 + $0x18] sm:$0xf] %v418
        %v420 = vld [vmem:[%s298 + $0x24] sm:$0xf]
        %v421 = vsel %vm410, %v394, %v420
        %422 = vst [vmem:[%s298 + $0x24] sm:$0xf] %v421
        %v423 = vld [vmem:[%s298 + $0x30] sm:$0xf]
        %v424 = vsel %vm410, %v396, %v423
        %425 = vst [vmem:[%s298 + $0x30] sm:$0xf] %v424
        %v426 = vld [vmem:[%s298 + $0x3c] sm:$0xf]
        %v427 = vsel %vm410, %v398, %v426
        %428 = vst [vmem:[%s298 + $0x3c] sm:$0xf] %v427
        %v429 = vld [vmem:[%s298 + $0x48] sm:$0xf]
        %v430 = vsel %vm410, %v400, %v429
        %431 = vst [vmem:[%s298 + $0x48] sm:$0xf] %v430
        %v433 = vshrl.u32 %v241, 16
        %v435 = vrot.slane %v433, 7
        %v436 = vshll.u32 %v241, 16
        %v438 = vor.u32 %v435, %v436
        %439 = vrot.lane.b32.xlu0 %v248, 96
        %v440 = vpop.permute.xlu0 %439
        %441 = vrot.lane.b32.xlu0 %v255, 96
        %v442 = vpop.permute.xlu0 %441
        %443 = vrot.lane.b32.xlu0 %v262, 96
        %v444 = vpop.permute.xlu0 %443
        %445 = vrot.lane.b32.xlu0 %v269, 96
        %v446 = vpop.permute.xlu0 %445
        %447 = vrot.lane.b32.xlu0 %v276, 96
        %v448 = vpop.permute.xlu0 %447
        %449 = vrot.lane.b32.xlu0 %v283, 96
        %v450 = vpop.permute.xlu0 %449
        %451 = vrot.lane.b32.xlu0 %v290, 96
        %v452 = vpop.permute.xlu0 %451
        %453 = vrot.lane.b32.xlu0 %v438, 96
        %v454 = vpop.permute.xlu0 %453
        %vm463 = vcmask 1044224
        %vm464 = vmand %vm463, %vm300
        %v465 = vld [vmem:[#allocation2] sm:$0xf]
        %v466 = vsel %vm464, %v440, %v465
        %467 = vst [vmem:[#allocation2] sm:$0xf] %v466
        %v468 = vld [vmem:[#allocation2 + $0xc] sm:$0xf]
        %v469 = vsel %vm464, %v442, %v468
        %470 = vst [vmem:[#allocation2 + $0xc] sm:$0xf] %v469
        %v471 = vld [vmem:[#allocation2 + $0x18] sm:$0xf]
        %v472 = vsel %vm464, %v444, %v471
        %473 = vst [vmem:[#allocation2 + $0x18] sm:$0xf] %v472
        %v474 = vld [vmem:[#allocation2 + $0x24] sm:$0xf]
        %v475 = vsel %vm464, %v446, %v474
        %476 = vst [vmem:[#allocation2 + $0x24] sm:$0xf] %v475
        %v477 = vld [vmem:[#allocation2 + $0x30] sm:$0xf]
        %v478 = vsel %vm464, %v448, %v477
        %479 = vst [vmem:[#allocation2 + $0x30] sm:$0xf] %v478
        %v480 = vld [vmem:[#allocation2 + $0x3c] sm:$0xf]
        %v481 = vsel %vm464, %v450, %v480
        %482 = vst [vmem:[#allocation2 + $0x3c] sm:$0xf] %v481
        %v483 = vld [vmem:[#allocation2 + $0x48] sm:$0xf]
        %v484 = vsel %vm464, %v452, %v483
        %485 = vst [vmem:[#allocation2 + $0x48] sm:$0xf] %v484
        %v486 = vld [vmem:[#allocation2 + $0x54] sm:$0xf]
        %v487 = vsel %vm464, %v454, %v486
        %488 = vst [vmem:[#allocation2 + $0x54] sm:$0xf] %v487
        %489 = vst.msk [vmem:[#allocation2 + $0x4] sm:$0xf] %vm218, %v234
        %490 = vst.msk [vmem:[#allocation2 + $0x10] sm:$0xf] %vm218, %v235
        %491 = vst.msk [vmem:[#allocation2 + $0x1c] sm:$0xf] %vm218, %v236
        %492 = vst.msk [vmem:[#allocation2 + $0x28] sm:$0xf] %vm218, %v237
        %493 = vst.msk [vmem:[#allocation2 + $0x34] sm:$0xf] %vm218, %v238
        %494 = vst.msk [vmem:[#allocation2 + $0x40] sm:$0xf] %vm218, %v239
        %495 = vst.msk [vmem:[#allocation2 + $0x4c] sm:$0xf] %vm218, %v240
        %496 = vst.msk [vmem:[#allocation2 + $0x58] sm:$0xf] %vm218, %v241
        %v497 = vrot.slane %v433, 4
        %v498 = vrot.slane %v436, 5
        %v499 = vor.u32 %v497, %v498
        %v500 = vrot.slane %v499, 4
        %501 = vrot.lane.b32.xlu0 %v362, 32
        %v502 = vpop.permute.xlu0 %501
        %503 = vrot.lane.b32.xlu0 %v366, 32
        %v504 = vpop.permute.xlu0 %503
        %505 = vrot.lane.b32.xlu0 %v370, 32
        %v506 = vpop.permute.xlu0 %505
        %507 = vrot.lane.b32.xlu0 %v374, 32
        %v508 = vpop.permute.xlu0 %507
        %509 = vrot.lane.b32.xlu0 %v378, 32
        %v510 = vpop.permute.xlu0 %509
        %511 = vrot.lane.b32.xlu0 %v382, 32
        %v512 = vpop.permute.xlu0 %511
        %513 = vrot.lane.b32.xlu0 %v386, 32
        %v514 = vpop.permute.xlu0 %513
        %515 = vrot.lane.b32.xlu0 %v500, 32
        %v516 = vpop.permute.xlu0 %515
        %vm525 = vcmask 519424
        %vm526 = vmand %vm525, %vm409
        %v527 = vld [vmem:[#allocation2 + $0x4] sm:$0xf]
        %v528 = vsel %vm526, %v502, %v527
        %529 = vst [vmem:[#allocation2 + $0x4] sm:$0xf] %v528
        %v530 = vld [vmem:[#allocation2 + $0x10] sm:$0xf]
        %v531 = vsel %vm526, %v504, %v530
        %532 = vst [vmem:[#allocation2 + $0x10] sm:$0xf] %v531
        %v533 = vld [vmem:[#allocation2 + $0x1c] sm:$0xf]
        %v534 = vsel %vm526, %v506, %v533
        %535 = vst [vmem:[#allocation2 + $0x1c] sm:$0xf] %v534
        %v536 = vld [vmem:[#allocation2 + $0x28] sm:$0xf]
        %v537 = vsel %vm526, %v508, %v536
        %538 = vst [vmem:[#allocation2 + $0x28] sm:$0xf] %v537
        %v539 = vld [vmem:[#allocation2 + $0x34] sm:$0xf]
        %v540 = vsel %vm526, %v510, %v539
        %541 = vst [vmem:[#allocation2 + $0x34] sm:$0xf] %v540
        %v542 = vld [vmem:[#allocation2 + $0x40] sm:$0xf]
        %v543 = vsel %vm526, %v512, %v542
        %544 = vst [vmem:[#allocation2 + $0x40] sm:$0xf] %v543
        %v545 = vld [vmem:[#allocation2 + $0x4c] sm:$0xf]
        %v546 = vsel %vm526, %v514, %v545
        %547 = vst [vmem:[#allocation2 + $0x4c] sm:$0xf] %v546
        %v548 = vld [vmem:[#allocation2 + $0x58] sm:$0xf]
        %v549 = vsel %vm526, %v516, %v548
        %550 = vst [vmem:[#allocation2 + $0x58] sm:$0xf] %v549
        %551 = vrot.lane.b32.xlu0 %v255, 64
        %v552 = vpop.permute.xlu0 %551
        %553 = vrot.lane.b32.xlu0 %v262, 64
        %v554 = vpop.permute.xlu0 %553
        %555 = vrot.lane.b32.xlu0 %v269, 64
        %v556 = vpop.permute.xlu0 %555
        %557 = vrot.lane.b32.xlu0 %v276, 64
        %v558 = vpop.permute.xlu0 %557
        %559 = vrot.lane.b32.xlu0 %v283, 64
        %v560 = vpop.permute.xlu0 %559
        %561 = vrot.lane.b32.xlu0 %v290, 64
        %v562 = vpop.permute.xlu0 %561
        %563 = vrot.lane.b32.xlu0 %v438, 64
        %v564 = vpop.permute.xlu0 %563
        %vm572 = vmand %vm408, %vm300
        %v573 = vld [vmem:[#allocation2 + $0x4] sm:$0xf]
        %v574 = vsel %vm572, %v552, %v573
        %575 = vst [vmem:[#allocation2 + $0x4] sm:$0xf] %v574
        %v576 = vld [vmem:[#allocation2 + $0x10] sm:$0xf]
        %v577 = vsel %vm572, %v554, %v576
        %578 = vst [vmem:[#allocation2 + $0x10] sm:$0xf] %v577
        %v579 = vld [vmem:[#allocation2 + $0x1c] sm:$0xf]
        %v580 = vsel %vm572, %v556, %v579
        %581 = vst [vmem:[#allocation2 + $0x1c] sm:$0xf] %v580
        %v582 = vld [vmem:[#allocation2 + $0x28] sm:$0xf]
        %v583 = vsel %vm572, %v558, %v582
        %584 = vst [vmem:[#allocation2 + $0x28] sm:$0xf] %v583
        %v585 = vld [vmem:[#allocation2 + $0x34] sm:$0xf]
        %v586 = vsel %vm572, %v560, %v585
        %587 = vst [vmem:[#allocation2 + $0x34] sm:$0xf] %v586
        %v588 = vld [vmem:[#allocation2 + $0x40] sm:$0xf]
        %v589 = vsel %vm572, %v562, %v588
        %590 = vst [vmem:[#allocation2 + $0x40] sm:$0xf] %v589
        %v591 = vld [vmem:[#allocation2 + $0x4c] sm:$0xf]
        %v592 = vsel %vm572, %v564, %v591
        %593 = vst [vmem:[#allocation2 + $0x4c] sm:$0xf] %v592
        %595 = vrot.lane.b32.xlu0 %v235, 96
        %v596 = vpop.permute.xlu0 %595
        %597 = vrot.lane.b32.xlu0 %v236, 96
        %v598 = vpop.permute.xlu0 %597
        %599 = vrot.lane.b32.xlu0 %v237, 96
        %v600 = vpop.permute.xlu0 %599
        %601 = vrot.lane.b32.xlu0 %v238, 96
        %v602 = vpop.permute.xlu0 %601
        %603 = vrot.lane.b32.xlu0 %v239, 96
        %v604 = vpop.permute.xlu0 %603
        %605 = vrot.lane.b32.xlu0 %v240, 96
        %v606 = vpop.permute.xlu0 %605
        %607 = vrot.lane.b32.xlu0 %v241, 96
        %v608 = vpop.permute.xlu0 %607
        %vm616 = vcmask 1044224
        %617 = vst.msk [vmem:[#allocation2 + $0x4] sm:$0xf] %vm616, %v596
        %618 = vst.msk [vmem:[#allocation2 + $0x10] sm:$0xf] %vm616, %v598
        %619 = vst.msk [vmem:[#allocation2 + $0x1c] sm:$0xf] %vm616, %v600
        %620 = vst.msk [vmem:[#allocation2 + $0x28] sm:$0xf] %vm616, %v602
        %621 = vst.msk [vmem:[#allocation2 + $0x34] sm:$0xf] %vm616, %v604
        %622 = vst.msk [vmem:[#allocation2 + $0x40] sm:$0xf] %vm616, %v606
        %623 = vst.msk [vmem:[#allocation2 + $0x4c] sm:$0xf] %vm616, %v608
        %vm631 = vmand %vm299, %vm409
        %v632 = vld [vmem:[#allocation2 + $0x8] sm:$0xf]
        %v633 = vsel %vm631, %v366, %v632
        %634 = vst [vmem:[#allocation2 + $0x8] sm:$0xf] %v633
        %v635 = vld [vmem:[#allocation2 + $0x14] sm:$0xf]
        %v636 = vsel %vm631, %v370, %v635
        %637 = vst [vmem:[#allocation2 + $0x14] sm:$0xf] %v636
        %v638 = vld [vmem:[#allocation2 + $0x20] sm:$0xf]
        %v639 = vsel %vm631, %v374, %v638
        %640 = vst [vmem:[#allocation2 + $0x20] sm:$0xf] %v639
        %v641 = vld [vmem:[#allocation2 + $0x2c] sm:$0xf]
        %v642 = vsel %vm631, %v378, %v641
        %643 = vst [vmem:[#allocation2 + $0x2c] sm:$0xf] %v642
        %v644 = vld [vmem:[#allocation2 + $0x38] sm:$0xf]
        %v645 = vsel %vm631, %v382, %v644
        %646 = vst [vmem:[#allocation2 + $0x38] sm:$0xf] %v645
        %v647 = vld [vmem:[#allocation2 + $0x44] sm:$0xf]
        %v648 = vsel %vm631, %v386, %v647
        %649 = vst [vmem:[#allocation2 + $0x44] sm:$0xf] %v648
        %v650 = vld [vmem:[#allocation2 + $0x50] sm:$0xf]
        %v651 = vsel %vm631, %v500, %v650
        %652 = vst [vmem:[#allocation2 + $0x50] sm:$0xf] %v651
        %v653 = vld [vmem:[#allocation2] sm:$0xff]
        %v654 = vld [vmem:[#allocation2 + $0x8] sm:$0xf]
        %v655 = vld [vmem:[#allocation2 + $0xc] sm:$0xff]
        %v656 = vld [vmem:[#allocation2 + $0x14] sm:$0xf]
        %v657 = vld [vmem:[#allocation2 + $0x18] sm:$0xff]
        %v658 = vld [vmem:[#allocation2 + $0x20] sm:$0xf]
        %v659 = vld [vmem:[#allocation2 + $0x24] sm:$0xff]
        %v660 = vld [vmem:[#allocation2 + $0x2c] sm:$0xf]
        %v661 = vld [vmem:[#allocation2 + $0x30] sm:$0xff]
        %v662 = vld [vmem:[#allocation2 + $0x38] sm:$0xf]
        %v663 = vld [vmem:[#allocation2 + $0x3c] sm:$0xff]
        %v664 = vld [vmem:[#allocation2 + $0x44] sm:$0xf]
        %v665 = vld [vmem:[#allocation2 + $0x48] sm:$0xff]
        %v666 = vld [vmem:[#allocation2 + $0x50] sm:$0xf]
        %v667 = vld [vmem:[#allocation2 + $0x54] sm:$0xff]
        %v668 = vld [vmem:[#allocation2 + $0x5c] sm:$0xf]
        %v669 = vld [vmem:[%s1] sm:$0xf]
        %v670 = vld [vmem:[%s1 + $0x4] sm:$0xf]
        %v671 = vld [vmem:[%s1 + $0x8] sm:$0xf]
        %v672 = vld [vmem:[%s1 + $0xc] sm:$0xf]
        %v673 = vld [vmem:[%s1 + $0x10] sm:$0xf]
        %v674 = vld [vmem:[%s1 + $0x14] sm:$0xf]
        %v675 = vld [vmem:[%s1 + $0x18] sm:$0xf]
        %v676 = vld [vmem:[%s1 + $0x1c] sm:$0xf]
        %v677 = vld [vmem:[%s1 + $0x20] sm:$0xf]
        %v678 = vld [vmem:[%s1 + $0x24] sm:$0xf]
        %v679 = vld [vmem:[%s1 + $0x28] sm:$0xf]
        %v680 = vld [vmem:[%s1 + $0x2c] sm:$0xf]
        %v681 = vld [vmem:[%s1 + $0x30] sm:$0xf]
        %v682 = vld [vmem:[%s1 + $0x34] sm:$0xf]
        %v683 = vld [vmem:[%s1 + $0x38] sm:$0xf]
        %v684 = vld [vmem:[%s1 + $0x3c] sm:$0xf]
        %v685 = vld [vmem:[%s1 + $0x40] sm:$0xf]
        %v686 = vld [vmem:[%s1 + $0x44] sm:$0xf]
        %v687 = vld [vmem:[%s1 + $0x48] sm:$0xf]
        %v688 = vld [vmem:[%s1 + $0x4c] sm:$0xf]
        %v689 = vld [vmem:[%s1 + $0x50] sm:$0xf]
        %v690 = vld [vmem:[%s1 + $0x54] sm:$0xf]
        %v691 = vld [vmem:[%s1 + $0x58] sm:$0xf]
        %v692 = vld [vmem:[%s1 + $0x5c] sm:$0xf]
        %v693 = vld [vmem:[%s1 + $0x60] sm:$0xf]
        %v694 = vld [vmem:[%s1 + $0x64] sm:$0xf]
        %v695 = vld [vmem:[%s1 + $0x68] sm:$0xf]
        %v696 = vld [vmem:[%s1 + $0x6c] sm:$0xf]
        %v697 = vld [vmem:[%s1 + $0x70] sm:$0xf]
        %v698 = vld [vmem:[%s1 + $0x74] sm:$0xf]
        %v699 = vld [vmem:[%s1 + $0x78] sm:$0xf]
        %v700 = vld [vmem:[%s1 + $0x7c] sm:$0xf]
        %v701 = vld [vmem:[%s1 + $0x80] sm:$0xf]
        %v702 = vld [vmem:[%s1 + $0x84] sm:$0xf]
        %v703 = vld [vmem:[%s1 + $0x88] sm:$0xf]
        %v704 = vld [vmem:[%s1 + $0x8c] sm:$0xf]
        %v705 = vld [vmem:[%s2] sm:$0x1]
        %v707 = vperm.slane %v705, 0
        %v725 = vunpack.c.l.b16 %v653
        %v726 = vunpack.c.h.b16 %v653
        %v727 = vunpack.c.l.b16 %v654
        %v728 = vunpack.c.l.b16 %v655
        %v729 = vunpack.c.h.b16 %v655
        %v730 = vunpack.c.l.b16 %v656
        %v731 = vunpack.c.l.b16 %v657
        %v732 = vunpack.c.h.b16 %v657
        %v733 = vunpack.c.l.b16 %v658
        %v734 = vunpack.c.l.b16 %v659
        %v735 = vunpack.c.h.b16 %v659
        %v736 = vunpack.c.l.b16 %v660
        %v737 = vunpack.c.l.b16 %v661
        %v738 = vunpack.c.h.b16 %v661
        %v739 = vunpack.c.l.b16 %v662
        %v740 = vunpack.c.l.b16 %v663
        %v741 = vunpack.c.h.b16 %v663
        %v742 = vunpack.c.l.b16 %v664
        %v743 = vunpack.c.l.b16 %v665
        %v744 = vunpack.c.h.b16 %v665
        %v745 = vunpack.c.l.b16 %v666
        %v746 = vunpack.c.l.b16 %v667
        %v747 = vunpack.c.h.b16 %v667
        %v748 = vunpack.c.l.b16 %v668
        %v749 = vpack.c.b16 %v728, %v725
        %v750 = vpack.c.b16 %v729, %v726
        %v751 = vpack.c.b16 %v730, %v727
        %v752 = vpack.c.b16 %v734, %v731
        %v753 = vpack.c.b16 %v735, %v732
        %v754 = vpack.c.b16 %v736, %v733
        %v755 = vpack.c.b16 %v740, %v737
        %v756 = vpack.c.b16 %v741, %v738
        %v757 = vpack.c.b16 %v742, %v739
        %v758 = vpack.c.b16 %v746, %v743
        %v759 = vpack.c.b16 %v747, %v744
        %v760 = vpack.c.b16 %v748, %v745
        %v805 = vunpack.c.l.b16 %v669
        %v806 = vunpack.c.l.b16 %v670
        %v807 = vunpack.c.l.b16 %v671
        %v808 = vunpack.c.l.b16 %v672
        %v809 = vunpack.c.l.b16 %v673
        %v810 = vunpack.c.l.b16 %v674
        %v811 = vunpack.c.l.b16 %v675
        %v812 = vunpack.c.l.b16 %v676
        %v813 = vunpack.c.l.b16 %v677
        %v814 = vunpack.c.l.b16 %v678
        %v815 = vunpack.c.l.b16 %v679
        %v816 = vunpack.c.l.b16 %v680
        %v817 = vunpack.c.l.b16 %v681
        %v818 = vunpack.c.l.b16 %v682
        %v819 = vunpack.c.l.b16 %v683
        %v820 = vunpack.c.l.b16 %v684
        %v821 = vunpack.c.l.b16 %v685
        %v822 = vunpack.c.l.b16 %v686
        %v823 = vunpack.c.l.b16 %v687
        %v824 = vunpack.c.l.b16 %v688
        %v825 = vunpack.c.l.b16 %v689
        %v826 = vunpack.c.l.b16 %v690
        %v827 = vunpack.c.l.b16 %v691
        %v828 = vunpack.c.l.b16 %v692
        %v829 = vunpack.c.l.b16 %v693
        %v830 = vunpack.c.l.b16 %v694
        %v831 = vunpack.c.l.b16 %v695
        %v832 = vunpack.c.l.b16 %v696
        %v833 = vunpack.c.l.b16 %v697
        %v834 = vunpack.c.l.b16 %v698
        %v835 = vunpack.c.l.b16 %v699
        %v836 = vunpack.c.l.b16 %v700
        %v837 = vunpack.c.l.b16 %v701
        %v838 = vunpack.c.l.b16 %v702
        %v839 = vunpack.c.l.b16 %v703
        %v840 = vunpack.c.l.b16 %v704
        %v841 = vpack.c.b16 %v806, %v805
        %v842 = vpack.c.b16 %v808, %v807
        %v843 = vpack.c.b16 %v810, %v809
        %v844 = vpack.c.b16 %v812, %v811
        %v845 = vpack.c.b16 %v814, %v813
        %v846 = vpack.c.b16 %v816, %v815
        %v847 = vpack.c.b16 %v818, %v817
        %v848 = vpack.c.b16 %v820, %v819
        %v849 = vpack.c.b16 %v822, %v821
        %v850 = vpack.c.b16 %v824, %v823
        %v851 = vpack.c.b16 %v826, %v825
        %v852 = vpack.c.b16 %v828, %v827
        %v853 = vpack.c.b16 %v830, %v829
        %v854 = vpack.c.b16 %v832, %v831
        %v855 = vpack.c.b16 %v834, %v833
        %v856 = vpack.c.b16 %v836, %v835
        %v857 = vpack.c.b16 %v838, %v837
        %v858 = vpack.c.b16 %v840, %v839
        %vm877 = vcmask 261120
        %v879 = vsel %vm877, %v751, 0
        %v882 = vsel %vm877, %v754, 0
        %v885 = vsel %vm877, %v757, 0
        %v888 = vsel %vm877, %v760, 0
        %890 = vmatpush.bf16.msra.mxu0 %v848
        %891 = vmatpush.bf16.msra.mxu0 %v847
        %892 = vmatpush.bf16.msra.mxu0 %v846
        %893 = vmatpush.bf16.msra.mxu0 %v845
        %894 = vmatpush.bf16.msra.mxu0 %v844
        %895 = vmatpush.bf16.msra.mxu0 %v843
        %896 = vmatpush.bf16.msra.mxu0 %v842
        %897 = vmatpush.bf16.msra.mxu0 %v841
        %898 = vmatmul.bf16.gmra.mxu0 %v749
        %v899 = vpop.f32.mrf.mxu0
        %v900 = vadd.f32 %v707, %v899
        %v901 = vpop.f32.mrf.mxu0
        %v902 = vadd.f32 %v707, %v901
        %903 = vmatmul.bf16.gmra.mxu0 %v752
        %v904 = vpop.f32.mrf.mxu0
        %v905 = vadd.f32 %v707, %v904
        %v906 = vpop.f32.mrf.mxu0
        %v907 = vadd.f32 %v707, %v906
        %908 = vmatmul.bf16.gmra.mxu0 %v755
        %v909 = vpop.f32.mrf.mxu0
        %v910 = vadd.f32 %v707, %v909
        %v911 = vpop.f32.mrf.mxu0
        %v912 = vadd.f32 %v707, %v911
        %913 = vmatmul.bf16.gmra.mxu0 %v758
        %v914 = vpop.f32.mrf.mxu0
        %v915 = vadd.f32 %v707, %v914
        %v916 = vpop.f32.mrf.mxu0
        %v917 = vadd.f32 %v707, %v916
        %918 = vdwg.mxu0
        %919 = vmatpush.bf16.msra.mxu0 %v856
        %920 = vmatpush.bf16.msra.mxu0 %v855
        %921 = vmatpush.bf16.msra.mxu0 %v854
        %922 = vmatpush.bf16.msra.mxu0 %v853
        %923 = vmatpush.bf16.msra.mxu0 %v852
        %924 = vmatpush.bf16.msra.mxu0 %v851
        %925 = vmatpush.bf16.msra.mxu0 %v850
        %926 = vmatpush.bf16.msra.mxu0 %v849
        %927 = vmatmul.bf16.gmra.mxu0 %v750
        %v928 = vpop.f32.mrf.mxu0
        %v929 = vadd.f32 %v900, %v928
        %v930 = vpop.f32.mrf.mxu0
        %v931 = vadd.f32 %v902, %v930
        %932 = vmatmul.bf16.gmra.mxu0 %v753
        %v933 = vpop.f32.mrf.mxu0
        %v934 = vadd.f32 %v905, %v933
        %v935 = vpop.f32.mrf.mxu0
        %v936 = vadd.f32 %v907, %v935
        %937 = vmatmul.bf16.gmra.mxu0 %v756
        %v938 = vpop.f32.mrf.mxu0
        %v939 = vadd.f32 %v910, %v938
        %v940 = vpop.f32.mrf.mxu0
        %v941 = vadd.f32 %v912, %v940
        %942 = vmatmul.bf16.gmra.mxu0 %v759
        %v943 = vpop.f32.mrf.mxu0
        %v944 = vadd.f32 %v915, %v943
        %v945 = vpop.f32.mrf.mxu0
        %v946 = vadd.f32 %v917, %v945
        %947 = vdwg.mxu0
        %948 = vmatpush.bf16.msra.mxu0 0
        %949 = vmatpush.bf16.msra.mxu0 0
        %950 = vmatpush.bf16.msra.mxu0 0
        %951 = vmatpush.bf16.msra.mxu0 0
        %952 = vmatpush.bf16.msra.mxu0 0
        %953 = vmatpush.bf16.msra.mxu0 0
        %954 = vmatpush.bf16.msra.mxu0 %v858
        %955 = vmatpush.bf16.msra.mxu0 %v857
        %956 = vmatmul.bf16.gmra.mxu0 %v879
        %v957 = vpop.f32.mrf.mxu0
        %v958 = vadd.f32 %v929, %v957
        %v959 = vpop.f32.mrf.mxu0
        %v960 = vadd.f32 %v931, %v959
        %961 = vmatmul.bf16.gmra.mxu0 %v882
        %v962 = vpop.f32.mrf.mxu0
        %v963 = vadd.f32 %v934, %v962
        %v964 = vpop.f32.mrf.mxu0
        %v965 = vadd.f32 %v936, %v964
        %966 = vmatmul.bf16.gmra.mxu0 %v885
        %v967 = vpop.f32.mrf.mxu0
        %v968 = vadd.f32 %v939, %v967
        %v969 = vpop.f32.mrf.mxu0
        %v970 = vadd.f32 %v941, %v969
        %971 = vmatmul.bf16.gmra.mxu0 %v888
        %v972 = vpop.f32.mrf.mxu0
        %v973 = vadd.f32 %v944, %v972
        %v974 = vpop.f32.mrf.mxu0
        %v975 = vadd.f32 %v946, %v974
        %976 = vdwg.mxu0
        %v977 = vld [vmem:[%s215] sm:$0xff]
        %v978 = vld [vmem:[%s215 + $0x8] sm:$0xff]
        %v979 = vld [vmem:[%s215 + $0x10] sm:$0xff]
        %v980 = vld [vmem:[%s215 + $0x18] sm:$0xff]
        %v981 = vld [vmem:[%s215 + $0x20] sm:$0xff]
        %v982 = vld [vmem:[%s215 + $0x28] sm:$0xff]
        %v983 = vld [vmem:[%s215 + $0x30] sm:$0xff]
        %v984 = vld [vmem:[%s215 + $0x38] sm:$0xff]
        %v985 = vadd.f32 %v958, %v977
        %v986 = vadd.f32 %v960, %v978
        %v987 = vadd.f32 %v963, %v979
        %v988 = vadd.f32 %v965, %v980
        %v989 = vadd.f32 %v968, %v981
        %v990 = vadd.f32 %v970, %v982
        %v991 = vadd.f32 %v973, %v983
        %v992 = vadd.f32 %v975, %v984
        %993 = vst.msk [vmem:[%s205] sm:$0xff] %vm877, %v985
        %994 = vst.msk [vmem:[%s205 + $0x8] sm:$0xff] %vm877, %v986
        %995 = vst.msk [vmem:[%s205 + $0x10] sm:$0xff] %vm877, %v987
        %996 = vst.msk [vmem:[%s205 + $0x18] sm:$0xff] %vm877, %v988
        %997 = vst.msk [vmem:[%s205 + $0x20] sm:$0xff] %vm877, %v989
        %998 = vst.msk [vmem:[%s205 + $0x28] sm:$0xff] %vm877, %v990
        %999 = vst.msk [vmem:[%s205 + $0x30] sm:$0xff] %vm877, %v991
        %1000 = vst.msk [vmem:[%s205 + $0x38] sm:$0xff] %vm877, %v992
        %s1001 = sand.u32 %s120, 1
        %s1002 = scalar_lea.sflag [#allocation4], %s1001
        %s1003 = sand.u32 %s120, 1
        %s1004 = smul.addr %s1003, 64
        %s1005 = scalar_lea.vmem [#allocation3], %s1004
        // Predicated region
        $region37: #{dgb_forward.11} parent=35 // pred_check
          %p1006 = pneg %p130
        $region38: #{dgb_forward.11} parent=35 // pred_check_branch
          %1008 = sbr.rel (%p1006) target = $region40
        $region39: #{dgb_forward.11} parent=35 // pred_region
          %1010 = vsyncadd %s1002, 0
          %s1011 = smul.addr %s18, 8
          %s1012 = smul.addr %s1011, 8
          %s1013 = scalar_lea.hbm %s4, %s1012
          %s1014 = sshll.u32 %s1005, 4
          %s1015 = int_to_ptr.vmem [resolvable:$true] %s1014
          %s1016 = sshll.u32 %s1013, 4
          %s1017 = int_to_ptr.hbm [resolvable:$true] %s1016
          %1022 = dma.vmem_to_hbm [thread:$0]  %s1015, 1024, %s1017, %s1002, 128, 128, 8
        $region40: #{dgb_forward.11} parent=35 // pred_fallthru
          _
      $region36: #{dgb_forward.11} parent=5 // pred_fallthru
        _
      %p1023 = scmp.le.s32.totalorder 2, %s13
      // Predicated region
      $region41: #{dgb_forward.11} parent=5 // pred_check
        %p1024 = pneg %p1023
      $region42: #{dgb_forward.11} parent=5 // pred_check_branch
        %1026 = sbr.rel (%p1024) target = $region44
      $region43: #{dgb_forward.11} parent=5 // pred_region
        %s1027 = ssub.s32 %s13, 2
        // Predicated region
        $region45: #{dgb_forward.11} parent=43 // pred_check
          %p1028 = pneg %p136
        $region46: #{dgb_forward.11} parent=43 // pred_check_branch
          %1030 = sbr.rel (%p1028) target = $region48
        $region47: #{dgb_forward.11} parent=43 // pred_region
          %s1031 = sand.u32 %s121, 1
          %s1032 = scalar_lea.sflag [#allocation4], %s1031
          %s1033 = sand.u32 %s121, 1
          %s1034 = smul.addr %s1033, 64
          %s1035 = scalar_lea.vmem [#allocation3], %s1034
          %1037 = dma.done %s1032, 1024
        $region48: #{dgb_forward.11} parent=43 // pred_fallthru
          _
      $region44: #{dgb_forward.11} parent=5 // pred_fallthru
        _
    $region6: #{dgb_forward.11} parent=1 // loop_footer
      %s17 = sadd.s32 1, %s13
    $region7: #{dgb_forward.11} parent=1 // loop_footer_branch
      %12 = sbr.rel target = $region3
    $region8: #{dgb_forward.11} parent=1 // loop_exit
      _
    %1038 = vsyncpa [#allocation4], 1
    %s1039 = scalar_lea.sflag [#allocation4], 1
    %1040 = vsyncpa %s1039, 1

</llo_original>
